<compile_context>
chip_gen: v7x
topology: tpu7x:2x2x1
jax: 0.10.0
libtpu: 0.0.40
codegen_flags: <defaults>
</compile_context>

<pallas_src>
import jax
import jax.numpy as jnp
from jax import lax
from jax.experimental import pallas as pl
from jax.experimental.pallas import tpu as pltpu


def _vmem_limit_bytes():
    """Per-generation VMEM budget with headroom (v7x: 64 MiB, v5e/v6e: 128 MiB)."""
    try:
        cap = pltpu.get_tpu_info().vmem_capacity_bytes
    except Exception:
        cap = 64 * 1024 * 1024
    return max(32 * 1024 * 1024, min(int(cap) * 3 // 4, 112 * 1024 * 1024))


# ---------------------------------------------------------------------------
# Fused kernel.
#
# Grid = (N, T) with T = D + 3 pipeline steps per batch element.  At step t:
#   * the BlockSpec delivers padded-input depth slice t (each slice once);
#     it is staged into a 3-slot VMEM ring `xr_ref`.
#   * conv1 (+BN+ReLU) for depth e1 = t-2 is computed from ring slots
#     t-2, t-1, t and written (interior only) into the y1 ring `y1_ref`
#     whose borders stay zero (spatial halo for conv2).
#   * conv2 (+BN+ReLU) for depth e2 = t-3 is computed from y1 ring slots
#     e2-1, e2, e2+1 (out-of-range depths are zero slots) and stored.
# ---------------------------------------------------------------------------
def _double_conv_kernel(x_ref, w1_ref, sc1_ref, sh1_ref, w2_ref, sc2_ref,
                        sh2_ref, o_ref, xr_ref, y1_ref):
    t = pl.program_id(1)
    T = pl.num_programs(1)                     # = D + 3
    _, Hp, Wp, _ = xr_ref.shape                # padded H/W, true Cin
    H, W = Hp - 2, Wp - 2
    Cm = y1_ref.shape[-1]
    Cout = o_ref.shape[-1]

    # ---- reset the carried conv1 ring at the start of each batch element ----
    @pl.when(t == 0)
    def _():
        y1_ref[...] = jnp.zeros_like(y1_ref)

    # ---- stage the newly delivered input depth slice into the ring ----
    # (each padded slice is DMA'd from HBM exactly once; last step's delivery
    #  is the trailing zero-pad slice and is not needed)
    @pl.when(t <= T - 2)
    def _():
        xr_ref[t % 3] = x_ref[0, 0]

    def conv_slab(slab, w_ref, kd):
        """One depth tap: kw folded into the contraction (K = 3*C), 3 matmuls."""
        C = slab.shape[-1]
        kw_cat = jnp.concatenate(                      # (Hp, W, 3C), built once
            [slab[:, 0:W, :], slab[:, 1:W + 1, :], slab[:, 2:W + 2, :]],
            axis=-1)
        part = None
        for kh in range(3):
            patch = kw_cat[kh:kh + H].reshape(H * W, 3 * C)
            r = jnp.dot(patch, w_ref[kd, kh],
                        preferred_element_type=jnp.float32)
            part = r if part is None else part + r
        return part

    # ---- SingleConv3D #1 for depth e1 = t - 2 (0 <= e1 <= D-1) ----
    @pl.when(jnp.logical_and(t >= 2, t <= T - 2))
    def _():
        acc = None
        for kd in range(3):
            slab = xr_ref[(t + kd + 1) % 3]            # xp[e1 + kd]
            c = conv_slab(slab, w1_ref, kd)
            acc = c if acc is None else acc + c
        y1 = jnp.maximum(acc * sc1_ref[0] + sh1_ref[0], 0.0)
        y1_ref[(t + 1) % 3, pl.ds(1, H), pl.ds(1, W), :] = (
            y1.reshape(H, W, Cm).astype(y1_ref.dtype))

    # conv1 output at depth D is conv2's zero padding: clear that ring slot.
    @pl.when(t == T - 1)
    def _():
        y1_ref[(t + 1) % 3] = jnp.zeros(y1_ref.shape[1:], y1_ref.dtype)

    # ---- SingleConv3D #2 for depth e2 = t - 3 (0 <= e2 <= D-1) ----
    @pl.when(t >= 3)
    def _():
        acc = None
        for kd in range(3):
            slab = y1_ref[(t + kd + 2) % 3]            # y1[e2 - 1 + kd]
            c = conv_slab(slab, w2_ref, kd)
            acc = c if acc is None else acc + c
        y2 = jnp.maximum(acc * sc2_ref[0] + sh2_ref[0], 0.0)
        o_ref[0, 0] = y2.reshape(H, W, Cout).astype(o_ref.dtype)


def fused_double_conv3d_bn_relu(x, w1, scale1, shift1, w2, scale2, shift2,
                                *, out_dtype=jnp.float32):
    """x: (N, D, H, W, Cin); w1: (3,3,3,Cin,Cm); w2: (3,3,3,Cm,Cout);
    scale*/shift*: per-channel folded (bias + eval BatchNorm) affine.
    Returns (N, D, H, W, Cout) in out_dtype."""
    N, D, H, W, Cin = x.shape
    Cm = w1.shape[4]
    Cout = w2.shape[4]
    Hp, Wp = H + 2, W + 2

    # bf16 activations/weights on the MXU, f32 accumulation + f32 epilogue.
    # Depth pad is (1, 2): front halo, back halo, plus one throwaway slice so
    # the per-step input index map needs no clamping.
    xp = jnp.pad(x.astype(jnp.bfloat16),
                 ((0, 0), (1, 2), (1, 1), (1, 1), (0, 0)))
    # Fold kw into the contraction axis: (3,3,3,C,Co) -> (3,3,3*C,Co).
    w1f = w1.astype(jnp.bfloat16).reshape(3, 3, 3 * Cin, Cm)
    w2f = w2.astype(jnp.bfloat16).reshape(3, 3, 3 * Cm, Cout)
    sc1 = scale1.astype(jnp.float32).reshape(1, Cm)
    sh1 = shift1.astype(jnp.float32).reshape(1, Cm)
    sc2 = scale2.astype(jnp.float32).reshape(1, Cout)
    sh2 = shift2.astype(jnp.float32).reshape(1, Cout)

    T = D + 3   # depth pipeline: warm-up (2 steps) + conv1/conv2 stagger (1)

    cost = pl.CostEstimate(
        flops=2 * N * D * H * W * 27 * (Cin * Cm + Cm * Cout),
        transcendentals=0,
        bytes_accessed=(xp.size * 2 + w1f.size * 2 + w2f.size * 2
                        + (sc1.size + sh1.size + sc2.size + sh2.size) * 4
                        + N * D * H * W * Cout
                        * jnp.dtype(out_dtype).itemsize),
    )

    return pl.pallas_call(
        _double_conv_kernel,
        out_shape=jax.ShapeDtypeStruct((N, D, H, W, Cout), out_dtype),
        grid_spec=pltpu.PrefetchScalarGridSpec(
            num_scalar_prefetch=0,
            grid=(N, T),
            in_specs=[
                # one new padded depth slice per step (fetched exactly once)
                pl.BlockSpec((1, 1, Hp, Wp, Cin),
                             lambda n, t: (n, t, 0, 0, 0)),
                # weights / affine params: constant index -> resident in VMEM
                pl.BlockSpec((3, 3, 3 * Cin, Cm), lambda n, t: (0, 0, 0, 0)),
                pl.BlockSpec((1, Cm), lambda n, t: (0, 0)),
                pl.BlockSpec((1, Cm), lambda n, t: (0, 0)),
                pl.BlockSpec((3, 3, 3 * Cm, Cout), lambda n, t: (0, 0, 0, 0)),
                pl.BlockSpec((1, Cout), lambda n, t: (0, 0)),
                pl.BlockSpec((1, Cout), lambda n, t: (0, 0)),
            ],
            # output depth d is written at step t = d + 3; earlier steps revisit
            # block 0 without writing it (flushed only after it is written).
            out_specs=pl.BlockSpec(
                (1, 1, H, W, Cout),
                lambda n, t: (n, jnp.maximum(t - 3, 0), 0, 0, 0)),
            scratch_shapes=[
                pltpu.VMEM((3, Hp, Wp, Cin), jnp.bfloat16),   # input depth ring
                pltpu.VMEM((3, Hp, Wp, Cm), jnp.bfloat16),    # conv1 out ring
            ]),
        compiler_params=pltpu.CompilerParams(
            dimension_semantics=("parallel", "arbitrary"),
            vmem_limit_bytes=_vmem_limit_bytes()),
        cost_estimate=cost,
    )(xp, w1f, sc1, sh1, w2f, sc2, sh2)


# ---------------------------------------------------------------------------
# Parameter construction (deterministic), eval-mode BN folded into scale/shift.
# ---------------------------------------------------------------------------
def _make_single_conv_params(key, cin, cout, eps=1e-5):
    kw, kb, kg, kbe, km, kv = jax.random.split(key, 6)
    w = 0.1 * jax.random.normal(kw, (3, 3, 3, cin, cout), jnp.float32)
    b = 0.1 * jax.random.normal(kb, (cout,), jnp.float32)
    gamma = 1.0 + 0.1 * jax.random.normal(kg, (cout,), jnp.float32)
    beta = 0.1 * jax.random.normal(kbe, (cout,), jnp.float32)
    running_mean = 0.1 * jax.random.normal(km, (cout,), jnp.float32)
    running_var = jax.random.uniform(kv, (cout,), jnp.float32, 0.5, 1.5)
    scale = gamma / jnp.sqrt(running_var + eps)
    shift = beta + (b - running_mean) * scale
    return {"w": w, "scale": scale, "shift": shift}


@jax.jit
def double_conv3d_dec(x_ncdhw, p1, p2):
    # NCDHW -> NDHWC for the kernel (channels on lanes), back at the end.
    x = jnp.transpose(x_ncdhw, (0, 2, 3, 4, 1))
    y = fused_double_conv3d_bn_relu(
        x, p1["w"], p1["scale"], p1["shift"],
        p2["w"], p2["scale"], p2["shift"], out_dtype=jnp.float32)
    return jnp.transpose(y, (0, 4, 1, 2, 3))


# ---------------------------------------------------------------------------
# Pure-JAX reference (same bf16 inputs / f32 accumulation as the kernel).
# ---------------------------------------------------------------------------
def _ref_single(x_ndhwc, p):
    y = lax.conv_general_dilated(
        x_ndhwc.astype(jnp.bfloat16), p["w"].astype(jnp.bfloat16),
        window_strides=(1, 1, 1), padding=[(1, 1)] * 3,
        dimension_numbers=("NDHWC", "DHWIO", "NDHWC"),
        preferred_element_type=jnp.float32)
    y = y * p["scale"] + p["shift"]
    return jnp.maximum(y, 0.0)


def _ref_double(x_ncdhw, p1, p2):
    x = jnp.transpose(x_ncdhw, (0, 2, 3, 4, 1))
    y = _ref_single(_ref_single(x, p1), p2)
    return jnp.transpose(y, (0, 4, 1, 2, 3))


if __name__ == "__main__":
    # Small shapes: batch=2, in_channels=4, out_channels=8, D=H=W=8 (NCDHW).
    N, CIN, COUT, D, H, W = 2, 4, 8, 8, 8, 8

    key = jax.random.PRNGKey(0)
    kx, k1, k2 = jax.random.split(key, 3)
    x = jax.random.normal(kx, (N, CIN, D, H, W), jnp.float32)
    p1 = _make_single_conv_params(k1, CIN, COUT)
    p2 = _make_single_conv_params(k2, COUT, COUT)

    out = jax.block_until_ready(double_conv3d_dec(x, p1, p2))
    ref = jax.block_until_ready(_ref_double(x, p1, p2))

    assert out.shape == (N, COUT, D, H, W), out.shape
    max_err = float(jnp.max(jnp.abs(out - ref)))
    assert jnp.allclose(out, ref, atol=2e-2, rtol=2e-2), max_err

    print("KERNEL_OK")
</pallas_src>

<mosaic_0001>
module attributes {stable_mosaic.version = 11 : i64} {
  func.func @_double_conv_kernel(%arg0: i32, %arg1: i32, %arg2: memref<1x1x10x10x4xbf16, #tpu.memory_space<vmem>>, %arg3: memref<3x3x12x8xbf16, #tpu.memory_space<vmem>>, %arg4: memref<1x8xf32, #tpu.memory_space<vmem>>, %arg5: memref<1x8xf32, #tpu.memory_space<vmem>>, %arg6: memref<3x3x24x8xbf16, #tpu.memory_space<vmem>>, %arg7: memref<1x8xf32, #tpu.memory_space<vmem>>, %arg8: memref<1x8xf32, #tpu.memory_space<vmem>>, %arg9: memref<1x1x8x8x8xf32, #tpu.memory_space<vmem>>, %arg10: memref<3x10x10x4xbf16, #tpu.memory_space<vmem>>, %arg11: memref<3x10x10x8xbf16, #tpu.memory_space<vmem>>) attributes {dimension_semantics = [#tpu.dimension_semantics<parallel>, #tpu.dimension_semantics<arbitrary>], iteration_bounds = array<i64: 2, 11>, scalar_prefetch = 0 : i64, scratch_operands = 2 : i64, tpu.core_type = #tpu.core_type<tc>, window_params = [{transform_indices = @transform_0, window_bounds = array<i64: 1, 1, 10, 10, 4>}, {pipeline_mode = #tpu.pipeline_mode<synchronous>, transform_indices = @transform_1, window_bounds = array<i64: 3, 3, 12, 8>}, {pipeline_mode = #tpu.pipeline_mode<synchronous>, transform_indices = @transform_2, window_bounds = array<i64: 1, 8>}, {pipeline_mode = #tpu.pipeline_mode<synchronous>, transform_indices = @transform_3, window_bounds = array<i64: 1, 8>}, {pipeline_mode = #tpu.pipeline_mode<synchronous>, transform_indices = @transform_4, window_bounds = array<i64: 3, 3, 24, 8>}, {pipeline_mode = #tpu.pipeline_mode<synchronous>, transform_indices = @transform_5, window_bounds = array<i64: 1, 8>}, {pipeline_mode = #tpu.pipeline_mode<synchronous>, transform_indices = @transform_6, window_bounds = array<i64: 1, 8>}, {transform_indices = @transform_7, window_bounds = array<i64: 1, 1, 8, 8, 8>}]} {
    %c0_i32 = arith.constant 0 : i32
    %0 = arith.cmpi eq, %arg1, %c0_i32 : i32
    %1 = arith.extui %0 : i1 to i32
    %c0_i32_0 = arith.constant 0 : i32
    %2 = arith.cmpi ne, %1, %c0_i32_0 : i32
    scf.if %2 {
      %cst = arith.constant 0.000000e+00 : bf16
      %17 = vector.broadcast %cst : bf16 to vector<3x10x10x8xbf16>
      %c0 = arith.constant 0 : index
      %c0_6 = arith.constant 0 : index
      %c0_7 = arith.constant 0 : index
      %c0_8 = arith.constant 0 : index
      %18 = vector.load %arg11[%c0, %c0_6, %c0_7, %c0_8] : memref<3x10x10x8xbf16, #tpu.memory_space<vmem>>, vector<3x10x10x8xbf16>
      tpu.vector_store %arg11[%c0, %c0_6, %c0_7, %c0_8], %17 {strides = array<i32>} : memref<3x10x10x8xbf16, #tpu.memory_space<vmem>>, vector<3x10x10x8xbf16>,
    } else {
    }
    %c9_i32 = arith.constant 9 : i32
    %3 = arith.cmpi sle, %arg1, %c9_i32 : i32
    %4 = arith.extui %3 : i1 to i32
    %c0_i32_1 = arith.constant 0 : i32
    %5 = arith.cmpi ne, %4, %c0_i32_1 : i32
    scf.if %5 {
      %c0 = arith.constant 0 : index
      %c0_6 = arith.constant 0 : index
      %c0_7 = arith.constant 0 : index
      %c0_8 = arith.constant 0 : index
      %c0_9 = arith.constant 0 : index
      %17 = vector.load %arg2[%c0, %c0_6, %c0_7, %c0_8, %c0_9] : memref<1x1x10x10x4xbf16, #tpu.memory_space<vmem>>, vector<1x1x10x10x4xbf16>
      %18 = vector.shape_cast %17 : vector<1x1x10x10x4xbf16> to vector<10x10x4xbf16>
      %c3_i32_10 = arith.constant 3 : i32
      %c0_i32_11 = arith.constant 0 : i32
      %19 = arith.cmpi eq, %c3_i32_10, %c0_i32_11 : i32
      %c1_i32 = arith.constant 1 : i32
      %20 = arith.select %19, %c1_i32, %c3_i32_10 : i32
      %21 = arith.remsi %arg1, %20 : i32
      %c0_i32_12 = arith.constant 0 : i32
      %22 = arith.cmpi ne, %21, %c0_i32_12 : i32
      %c0_i32_13 = arith.constant 0 : i32
      %23 = arith.cmpi slt, %21, %c0_i32_13 : i32
      %c0_i32_14 = arith.constant 0 : i32
      %24 = arith.cmpi slt, %20, %c0_i32_14 : i32
      %25 = arith.xori %23, %24 : i1
      %26 = arith.andi %25, %22 : i1
      %27 = arith.addi %21, %20 : i32
      %28 = arith.select %26, %27, %21 : i32
      %29 = arith.index_cast %28 : i32 to index
      %c0_15 = arith.constant 0 : index
      %c0_16 = arith.constant 0 : index
      %c0_17 = arith.constant 0 : index
      %30 = vector.load %arg10[%29, %c0_15, %c0_16, %c0_17] : memref<3x10x10x4xbf16, #tpu.memory_space<vmem>>, vector<1x10x10x4xbf16>
      %31 = vector.shape_cast %30 : vector<1x10x10x4xbf16> to vector<10x10x4xbf16>
      %32 = vector.shape_cast %18 : vector<10x10x4xbf16> to vector<1x10x10x4xbf16>
      tpu.vector_store %arg10[%29, %c0_15, %c0_16, %c0_17], %32 {strides = array<i32>} : memref<3x10x10x4xbf16, #tpu.memory_space<vmem>>, vector<1x10x10x4xbf16>,
    } else {
    }
    %c2_i32 = arith.constant 2 : i32
    %6 = arith.cmpi sge, %arg1, %c2_i32 : i32
    %c9_i32_2 = arith.constant 9 : i32
    %7 = arith.cmpi sle, %arg1, %c9_i32_2 : i32
    %8 = arith.andi %6, %7 : i1
    %9 = arith.extui %8 : i1 to i32
    %c0_i32_3 = arith.constant 0 : i32
    %10 = arith.cmpi ne, %9, %c0_i32_3 : i32
    scf.if %10 {
      %c0_i32_6 = arith.constant 0 : i32
      %17 = arith.addi %arg1, %c0_i32_6 : i32
      %c1_i32 = arith.constant 1 : i32
      %18 = arith.addi %17, %c1_i32 : i32
      %c3_i32_7 = arith.constant 3 : i32
      %c0_i32_8 = arith.constant 0 : i32
      %19 = arith.cmpi eq, %c3_i32_7, %c0_i32_8 : i32
      %c1_i32_9 = arith.constant 1 : i32
      %20 = arith.select %19, %c1_i32_9, %c3_i32_7 : i32
      %21 = arith.remsi %18, %20 : i32
      %c0_i32_10 = arith.constant 0 : i32
      %22 = arith.cmpi ne, %21, %c0_i32_10 : i32
      %c0_i32_11 = arith.constant 0 : i32
      %23 = arith.cmpi slt, %21, %c0_i32_11 : i32
      %c0_i32_12 = arith.constant 0 : i32
      %24 = arith.cmpi slt, %20, %c0_i32_12 : i32
      %25 = arith.xori %23, %24 : i1
      %26 = arith.andi %25, %22 : i1
      %27 = arith.addi %21, %20 : i32
      %28 = arith.select %26, %27, %21 : i32
      %29 = arith.index_cast %28 : i32 to index
      %c0 = arith.constant 0 : index
      %c0_13 = arith.constant 0 : index
      %c0_14 = arith.constant 0 : index
      %30 = vector.load %arg10[%29, %c0, %c0_13, %c0_14] : memref<3x10x10x4xbf16, #tpu.memory_space<vmem>>, vector<1x10x10x4xbf16>
      %31 = vector.shape_cast %30 : vector<1x10x10x4xbf16> to vector<10x10x4xbf16>
      %32 = vector.extract_strided_slice %31 {offsets = [0, 0, 0], sizes = [10, 8, 4], strides = [1, 1, 1]} : vector<10x10x4xbf16> to vector<10x8x4xbf16>
      %33 = vector.extract_strided_slice %31 {offsets = [0, 1, 0], sizes = [10, 8, 4], strides = [1, 1, 1]} : vector<10x10x4xbf16> to vector<10x8x4xbf16>
      %34 = vector.extract_strided_slice %31 {offsets = [0, 2, 0], sizes = [10, 8, 4], strides = [1, 1, 1]} : vector<10x10x4xbf16> to vector<10x8x4xbf16>
      %35 = tpu.concatenate %32, %33, %34 in 2 : vector<10x8x4xbf16>, vector<10x8x4xbf16>, vector<10x8x4xbf16> -> vector<10x8x12xbf16>
      %36 = vector.extract_strided_slice %35 {offsets = [0, 0, 0], sizes = [8, 8, 12], strides = [1, 1, 1]} : vector<10x8x12xbf16> to vector<8x8x12xbf16>
      %37 = vector.shape_cast %36 : vector<8x8x12xbf16> to vector<64x12xbf16>
      %c0_15 = arith.constant 0 : index
      %c0_16 = arith.constant 0 : index
      %c0_17 = arith.constant 0 : index
      %c0_18 = arith.constant 0 : index
      %38 = vector.load %arg3[%c0_15, %c0_16, %c0_17, %c0_18] : memref<3x3x12x8xbf16, #tpu.memory_space<vmem>>, vector<1x1x12x8xbf16>
      %39 = vector.shape_cast %38 : vector<1x1x12x8xbf16> to vector<12x8xbf16>
      %cst = arith.constant dense<0.000000e+00> : vector<64x8xf32>
      %40 = tpu.matmul %37, %39, %cst {dimension_numbers = #tpu.dot_dimension_numbers<[1], [0], [0], [1], [0, 0, 1, 1], [], []>} : vector<64x12xbf16>, vector<12x8xbf16>, vector<64x8xf32> -> vector<64x8xf32>
      %41 = vector.extract_strided_slice %35 {offsets = [1, 0, 0], sizes = [8, 8, 12], strides = [1, 1, 1]} : vector<10x8x12xbf16> to vector<8x8x12xbf16>
      %42 = vector.shape_cast %41 : vector<8x8x12xbf16> to vector<64x12xbf16>
      %c0_19 = arith.constant 0 : index
      %c1 = arith.constant 1 : index
      %c0_20 = arith.constant 0 : index
      %c0_21 = arith.constant 0 : index
      %43 = vector.load %arg3[%c0_19, %c1, %c0_20, %c0_21] : memref<3x3x12x8xbf16, #tpu.memory_space<vmem>>, vector<1x1x12x8xbf16>
      %44 = vector.shape_cast %43 : vector<1x1x12x8xbf16> to vector<12x8xbf16>
      %cst_22 = arith.constant dense<0.000000e+00> : vector<64x8xf32>
      %45 = tpu.matmul %42, %44, %cst_22 {dimension_numbers = #tpu.dot_dimension_numbers<[1], [0], [0], [1], [0, 0, 1, 1], [], []>} : vector<64x12xbf16>, vector<12x8xbf16>, vector<64x8xf32> -> vector<64x8xf32>
      %46 = arith.addf %40, %45 : vector<64x8xf32>
      %47 = vector.extract_strided_slice %35 {offsets = [2, 0, 0], sizes = [8, 8, 12], strides = [1, 1, 1]} : vector<10x8x12xbf16> to vector<8x8x12xbf16>
      %48 = vector.shape_cast %47 : vector<8x8x12xbf16> to vector<64x12xbf16>
      %c0_23 = arith.constant 0 : index
      %c2 = arith.constant 2 : index
      %c0_24 = arith.constant 0 : index
      %c0_25 = arith.constant 0 : index
      %49 = vector.load %arg3[%c0_23, %c2, %c0_24, %c0_25] : memref<3x3x12x8xbf16, #tpu.memory_space<vmem>>, vector<1x1x12x8xbf16>
      %50 = vector.shape_cast %49 : vector<1x1x12x8xbf16> to vector<12x8xbf16>
      %cst_26 = arith.constant dense<0.000000e+00> : vector<64x8xf32>
      %51 = tpu.matmul %48, %50, %cst_26 {dimension_numbers = #tpu.dot_dimension_numbers<[1], [0], [0], [1], [0, 0, 1, 1], [], []>} : vector<64x12xbf16>, vector<12x8xbf16>, vector<64x8xf32> -> vector<64x8xf32>
      %52 = arith.addf %46, %51 : vector<64x8xf32>
      %c1_i32_27 = arith.constant 1 : i32
      %53 = arith.addi %arg1, %c1_i32_27 : i32
      %c1_i32_28 = arith.constant 1 : i32
      %54 = arith.addi %53, %c1_i32_28 : i32
      %c3_i32_29 = arith.constant 3 : i32
      %c0_i32_30 = arith.constant 0 : i32
      %55 = arith.cmpi eq, %c3_i32_29, %c0_i32_30 : i32
      %c1_i32_31 = arith.constant 1 : i32
      %56 = arith.select %55, %c1_i32_31, %c3_i32_29 : i32
      %57 = arith.remsi %54, %56 : i32
      %c0_i32_32 = arith.constant 0 : i32
      %58 = arith.cmpi ne, %57, %c0_i32_32 : i32
      %c0_i32_33 = arith.constant 0 : i32
      %59 = arith.cmpi slt, %57, %c0_i32_33 : i32
      %c0_i32_34 = arith.constant 0 : i32
      %60 = arith.cmpi slt, %56, %c0_i32_34 : i32
      %61 = arith.xori %59, %60 : i1
      %62 = arith.andi %61, %58 : i1
      %63 = arith.addi %57, %56 : i32
      %64 = arith.select %62, %63, %57 : i32
      %65 = arith.index_cast %64 : i32 to index
      %c0_35 = arith.constant 0 : index
      %c0_36 = arith.constant 0 : index
      %c0_37 = arith.constant 0 : index
      %66 = vector.load %arg10[%65, %c0_35, %c0_36, %c0_37] : memref<3x10x10x4xbf16, #tpu.memory_space<vmem>>, vector<1x10x10x4xbf16>
      %67 = vector.shape_cast %66 : vector<1x10x10x4xbf16> to vector<10x10x4xbf16>
      %68 = vector.extract_strided_slice %67 {offsets = [0, 0, 0], sizes = [10, 8, 4], strides = [1, 1, 1]} : vector<10x10x4xbf16> to vector<10x8x4xbf16>
      %69 = vector.extract_strided_slice %67 {offsets = [0, 1, 0], sizes = [10, 8, 4], strides = [1, 1, 1]} : vector<10x10x4xbf16> to vector<10x8x4xbf16>
      %70 = vector.extract_strided_slice %67 {offsets = [0, 2, 0], sizes = [10, 8, 4], strides = [1, 1, 1]} : vector<10x10x4xbf16> to vector<10x8x4xbf16>
      %71 = tpu.concatenate %68, %69, %70 in 2 : vector<10x8x4xbf16>, vector<10x8x4xbf16>, vector<10x8x4xbf16> -> vector<10x8x12xbf16>
      %72 = vector.extract_strided_slice %71 {offsets = [0, 0, 0], sizes = [8, 8, 12], strides = [1, 1, 1]} : vector<10x8x12xbf16> to vector<8x8x12xbf16>
      %73 = vector.shape_cast %72 : vector<8x8x12xbf16> to vector<64x12xbf16>
      %c1_38 = arith.constant 1 : index
      %c0_39 = arith.constant 0 : index
      %c0_40 = arith.constant 0 : index
      %c0_41 = arith.constant 0 : index
      %74 = vector.load %arg3[%c1_38, %c0_39, %c0_40, %c0_41] : memref<3x3x12x8xbf16, #tpu.memory_space<vmem>>, vector<1x1x12x8xbf16>
      %75 = vector.shape_cast %74 : vector<1x1x12x8xbf16> to vector<12x8xbf16>
      %cst_42 = arith.constant dense<0.000000e+00> : vector<64x8xf32>
      %76 = tpu.matmul %73, %75, %cst_42 {dimension_numbers = #tpu.dot_dimension_numbers<[1], [0], [0], [1], [0, 0, 1, 1], [], []>} : vector<64x12xbf16>, vector<12x8xbf16>, vector<64x8xf32> -> vector<64x8xf32>
      %77 = vector.extract_strided_slice %71 {offsets = [1, 0, 0], sizes = [8, 8, 12], strides = [1, 1, 1]} : vector<10x8x12xbf16> to vector<8x8x12xbf16>
      %78 = vector.shape_cast %77 : vector<8x8x12xbf16> to vector<64x12xbf16>
      %c1_43 = arith.constant 1 : index
      %c1_44 = arith.constant 1 : index
      %c0_45 = arith.constant 0 : index
      %c0_46 = arith.constant 0 : index
      %79 = vector.load %arg3[%c1_43, %c1_44, %c0_45, %c0_46] : memref<3x3x12x8xbf16, #tpu.memory_space<vmem>>, vector<1x1x12x8xbf16>
      %80 = vector.shape_cast %79 : vector<1x1x12x8xbf16> to vector<12x8xbf16>
      %cst_47 = arith.constant dense<0.000000e+00> : vector<64x8xf32>
      %81 = tpu.matmul %78, %80, %cst_47 {dimension_numbers = #tpu.dot_dimension_numbers<[1], [0], [0], [1], [0, 0, 1, 1], [], []>} : vector<64x12xbf16>, vector<12x8xbf16>, vector<64x8xf32> -> vector<64x8xf32>
      %82 = arith.addf %76, %81 : vector<64x8xf32>
      %83 = vector.extract_strided_slice %71 {offsets = [2, 0, 0], sizes = [8, 8, 12], strides = [1, 1, 1]} : vector<10x8x12xbf16> to vector<8x8x12xbf16>
      %84 = vector.shape_cast %83 : vector<8x8x12xbf16> to vector<64x12xbf16>
      %c1_48 = arith.constant 1 : index
      %c2_49 = arith.constant 2 : index
      %c0_50 = arith.constant 0 : index
      %c0_51 = arith.constant 0 : index
      %85 = vector.load %arg3[%c1_48, %c2_49, %c0_50, %c0_51] : memref<3x3x12x8xbf16, #tpu.memory_space<vmem>>, vector<1x1x12x8xbf16>
      %86 = vector.shape_cast %85 : vector<1x1x12x8xbf16> to vector<12x8xbf16>
      %cst_52 = arith.constant dense<0.000000e+00> : vector<64x8xf32>
      %87 = tpu.matmul %84, %86, %cst_52 {dimension_numbers = #tpu.dot_dimension_numbers<[1], [0], [0], [1], [0, 0, 1, 1], [], []>} : vector<64x12xbf16>, vector<12x8xbf16>, vector<64x8xf32> -> vector<64x8xf32>
      %88 = arith.addf %82, %87 : vector<64x8xf32>
      %89 = arith.addf %52, %88 : vector<64x8xf32>
      %c2_i32_53 = arith.constant 2 : i32
      %90 = arith.addi %arg1, %c2_i32_53 : i32
      %c1_i32_54 = arith.constant 1 : i32
      %91 = arith.addi %90, %c1_i32_54 : i32
      %c3_i32_55 = arith.constant 3 : i32
      %c0_i32_56 = arith.constant 0 : i32
      %92 = arith.cmpi eq, %c3_i32_55, %c0_i32_56 : i32
      %c1_i32_57 = arith.constant 1 : i32
      %93 = arith.select %92, %c1_i32_57, %c3_i32_55 : i32
      %94 = arith.remsi %91, %93 : i32
      %c0_i32_58 = arith.constant 0 : i32
      %95 = arith.cmpi ne, %94, %c0_i32_58 : i32
      %c0_i32_59 = arith.constant 0 : i32
      %96 = arith.cmpi slt, %94, %c0_i32_59 : i32
      %c0_i32_60 = arith.constant 0 : i32
      %97 = arith.cmpi slt, %93, %c0_i32_60 : i32
      %98 = arith.xori %96, %97 : i1
      %99 = arith.andi %98, %95 : i1
      %100 = arith.addi %94, %93 : i32
      %101 = arith.select %99, %100, %94 : i32
      %102 = arith.index_cast %101 : i32 to index
      %c0_61 = arith.constant 0 : index
      %c0_62 = arith.constant 0 : index
      %c0_63 = arith.constant 0 : index
      %103 = vector.load %arg10[%102, %c0_61, %c0_62, %c0_63] : memref<3x10x10x4xbf16, #tpu.memory_space<vmem>>, vector<1x10x10x4xbf16>
      %104 = vector.shape_cast %103 : vector<1x10x10x4xbf16> to vector<10x10x4xbf16>
      %105 = vector.extract_strided_slice %104 {offsets = [0, 0, 0], sizes = [10, 8, 4], strides = [1, 1, 1]} : vector<10x10x4xbf16> to vector<10x8x4xbf16>
      %106 = vector.extract_strided_slice %104 {offsets = [0, 1, 0], sizes = [10, 8, 4], strides = [1, 1, 1]} : vector<10x10x4xbf16> to vector<10x8x4xbf16>
      %107 = vector.extract_strided_slice %104 {offsets = [0, 2, 0], sizes = [10, 8, 4], strides = [1, 1, 1]} : vector<10x10x4xbf16> to vector<10x8x4xbf16>
      %108 = tpu.concatenate %105, %106, %107 in 2 : vector<10x8x4xbf16>, vector<10x8x4xbf16>, vector<10x8x4xbf16> -> vector<10x8x12xbf16>
      %109 = vector.extract_strided_slice %108 {offsets = [0, 0, 0], sizes = [8, 8, 12], strides = [1, 1, 1]} : vector<10x8x12xbf16> to vector<8x8x12xbf16>
      %110 = vector.shape_cast %109 : vector<8x8x12xbf16> to vector<64x12xbf16>
      %c2_64 = arith.constant 2 : index
      %c0_65 = arith.constant 0 : index
      %c0_66 = arith.constant 0 : index
      %c0_67 = arith.constant 0 : index
      %111 = vector.load %arg3[%c2_64, %c0_65, %c0_66, %c0_67] : memref<3x3x12x8xbf16, #tpu.memory_space<vmem>>, vector<1x1x12x8xbf16>
      %112 = vector.shape_cast %111 : vector<1x1x12x8xbf16> to vector<12x8xbf16>
      %cst_68 = arith.constant dense<0.000000e+00> : vector<64x8xf32>
      %113 = tpu.matmul %110, %112, %cst_68 {dimension_numbers = #tpu.dot_dimension_numbers<[1], [0], [0], [1], [0, 0, 1, 1], [], []>} : vector<64x12xbf16>, vector<12x8xbf16>, vector<64x8xf32> -> vector<64x8xf32>
      %114 = vector.extract_strided_slice %108 {offsets = [1, 0, 0], sizes = [8, 8, 12], strides = [1, 1, 1]} : vector<10x8x12xbf16> to vector<8x8x12xbf16>
      %115 = vector.shape_cast %114 : vector<8x8x12xbf16> to vector<64x12xbf16>
      %c2_69 = arith.constant 2 : index
      %c1_70 = arith.constant 1 : index
      %c0_71 = arith.constant 0 : index
      %c0_72 = arith.constant 0 : index
      %116 = vector.load %arg3[%c2_69, %c1_70, %c0_71, %c0_72] : memref<3x3x12x8xbf16, #tpu.memory_space<vmem>>, vector<1x1x12x8xbf16>
      %117 = vector.shape_cast %116 : vector<1x1x12x8xbf16> to vector<12x8xbf16>
      %cst_73 = arith.constant dense<0.000000e+00> : vector<64x8xf32>
      %118 = tpu.matmul %115, %117, %cst_73 {dimension_numbers = #tpu.dot_dimension_numbers<[1], [0], [0], [1], [0, 0, 1, 1], [], []>} : vector<64x12xbf16>, vector<12x8xbf16>, vector<64x8xf32> -> vector<64x8xf32>
      %119 = arith.addf %113, %118 : vector<64x8xf32>
      %120 = vector.extract_strided_slice %108 {offsets = [2, 0, 0], sizes = [8, 8, 12], strides = [1, 1, 1]} : vector<10x8x12xbf16> to vector<8x8x12xbf16>
      %121 = vector.shape_cast %120 : vector<8x8x12xbf16> to vector<64x12xbf16>
      %c2_74 = arith.constant 2 : index
      %c2_75 = arith.constant 2 : index
      %c0_76 = arith.constant 0 : index
      %c0_77 = arith.constant 0 : index
      %122 = vector.load %arg3[%c2_74, %c2_75, %c0_76, %c0_77] : memref<3x3x12x8xbf16, #tpu.memory_space<vmem>>, vector<1x1x12x8xbf16>
      %123 = vector.shape_cast %122 : vector<1x1x12x8xbf16> to vector<12x8xbf16>
      %cst_78 = arith.constant dense<0.000000e+00> : vector<64x8xf32>
      %124 = tpu.matmul %121, %123, %cst_78 {dimension_numbers = #tpu.dot_dimension_numbers<[1], [0], [0], [1], [0, 0, 1, 1], [], []>} : vector<64x12xbf16>, vector<12x8xbf16>, vector<64x8xf32> -> vector<64x8xf32>
      %125 = arith.addf %119, %124 : vector<64x8xf32>
      %126 = arith.addf %89, %125 : vector<64x8xf32>
      %c0_79 = arith.constant 0 : index
      %c0_80 = arith.constant 0 : index
      %127 = vector.load %arg4[%c0_79, %c0_80] : memref<1x8xf32, #tpu.memory_space<vmem>>, vector<1x8xf32>
      %128 = vector.shape_cast %127 : vector<1x8xf32> to vector<8xf32>
      %129 = vector.shape_cast %128 : vector<8xf32> to vector<1x8xf32>
      %130 = vector.broadcast %129 : vector<1x8xf32> to vector<64x8xf32>
      %131 = arith.mulf %126, %130 : vector<64x8xf32>
      %c0_81 = arith.constant 0 : index
      %c0_82 = arith.constant 0 : index
      %132 = vector.load %arg5[%c0_81, %c0_82] : memref<1x8xf32, #tpu.memory_space<vmem>>, vector<1x8xf32>
      %133 = vector.shape_cast %132 : vector<1x8xf32> to vector<8xf32>
      %134 = vector.shape_cast %133 : vector<8xf32> to vector<1x8xf32>
      %135 = vector.broadcast %134 : vector<1x8xf32> to vector<64x8xf32>
      %136 = arith.addf %131, %135 : vector<64x8xf32>
      %cst_83 = arith.constant 0.000000e+00 : f32
      %137 = vector.broadcast %cst_83 : f32 to vector<64x8xf32>
      %138 = arith.maximumf %136, %137 : vector<64x8xf32>
      %139 = vector.shape_cast %138 : vector<64x8xf32> to vector<8x8x8xf32>
      %140 = arith.truncf %139 : vector<8x8x8xf32> to vector<8x8x8xbf16>
      %c1_i32_84 = arith.constant 1 : i32
      %141 = arith.addi %arg1, %c1_i32_84 : i32
      %c3_i32_85 = arith.constant 3 : i32
      %c0_i32_86 = arith.constant 0 : i32
      %142 = arith.cmpi eq, %c3_i32_85, %c0_i32_86 : i32
      %c1_i32_87 = arith.constant 1 : i32
      %143 = arith.select %142, %c1_i32_87, %c3_i32_85 : i32
      %144 = arith.remsi %141, %143 : i32
      %c0_i32_88 = arith.constant 0 : i32
      %145 = arith.cmpi ne, %144, %c0_i32_88 : i32
      %c0_i32_89 = arith.constant 0 : i32
      %146 = arith.cmpi slt, %144, %c0_i32_89 : i32
      %c0_i32_90 = arith.constant 0 : i32
      %147 = arith.cmpi slt, %143, %c0_i32_90 : i32
      %148 = arith.xori %146, %147 : i1
      %149 = arith.andi %148, %145 : i1
      %150 = arith.addi %144, %143 : i32
      %151 = arith.select %149, %150, %144 : i32
      %152 = arith.index_cast %151 : i32 to index
      %c1_91 = arith.constant 1 : index
      %c1_92 = arith.constant 1 : index
      %c0_93 = arith.constant 0 : index
      %153 = vector.load %arg11[%152, %c1_91, %c1_92, %c0_93] : memref<3x10x10x8xbf16, #tpu.memory_space<vmem>>, vector<1x8x8x8xbf16>
      %154 = vector.shape_cast %153 : vector<1x8x8x8xbf16> to vector<8x8x8xbf16>
      %155 = vector.shape_cast %140 : vector<8x8x8xbf16> to vector<1x8x8x8xbf16>
      tpu.vector_store %arg11[%152, %c1_91, %c1_92, %c0_93], %155 {strides = array<i32>} : memref<3x10x10x8xbf16, #tpu.memory_space<vmem>>, vector<1x8x8x8xbf16>,
    } else {
    }
    %c10_i32 = arith.constant 10 : i32
    %11 = arith.cmpi eq, %arg1, %c10_i32 : i32
    %12 = arith.extui %11 : i1 to i32
    %c0_i32_4 = arith.constant 0 : i32
    %13 = arith.cmpi ne, %12, %c0_i32_4 : i32
    scf.if %13 {
      %cst = arith.constant 0.000000e+00 : bf16
      %17 = vector.broadcast %cst : bf16 to vector<10x10x8xbf16>
      %c1_i32 = arith.constant 1 : i32
      %18 = arith.addi %arg1, %c1_i32 : i32
      %c3_i32_6 = arith.constant 3 : i32
      %c0_i32_7 = arith.constant 0 : i32
      %19 = arith.cmpi eq, %c3_i32_6, %c0_i32_7 : i32
      %c1_i32_8 = arith.constant 1 : i32
      %20 = arith.select %19, %c1_i32_8, %c3_i32_6 : i32
      %21 = arith.remsi %18, %20 : i32
      %c0_i32_9 = arith.constant 0 : i32
      %22 = arith.cmpi ne, %21, %c0_i32_9 : i32
      %c0_i32_10 = arith.constant 0 : i32
      %23 = arith.cmpi slt, %21, %c0_i32_10 : i32
      %c0_i32_11 = arith.constant 0 : i32
      %24 = arith.cmpi slt, %20, %c0_i32_11 : i32
      %25 = arith.xori %23, %24 : i1
      %26 = arith.andi %25, %22 : i1
      %27 = arith.addi %21, %20 : i32
      %28 = arith.select %26, %27, %21 : i32
      %29 = arith.index_cast %28 : i32 to index
      %c0 = arith.constant 0 : index
      %c0_12 = arith.constant 0 : index
      %c0_13 = arith.constant 0 : index
      %30 = vector.load %arg11[%29, %c0, %c0_12, %c0_13] : memref<3x10x10x8xbf16, #tpu.memory_space<vmem>>, vector<1x10x10x8xbf16>
      %31 = vector.shape_cast %30 : vector<1x10x10x8xbf16> to vector<10x10x8xbf16>
      %32 = vector.shape_cast %17 : vector<10x10x8xbf16> to vector<1x10x10x8xbf16>
      tpu.vector_store %arg11[%29, %c0, %c0_12, %c0_13], %32 {strides = array<i32>} : memref<3x10x10x8xbf16, #tpu.memory_space<vmem>>, vector<1x10x10x8xbf16>,
    } else {
    }
    %c3_i32 = arith.constant 3 : i32
    %14 = arith.cmpi sge, %arg1, %c3_i32 : i32
    %15 = arith.extui %14 : i1 to i32
    %c0_i32_5 = arith.constant 0 : i32
    %16 = arith.cmpi ne, %15, %c0_i32_5 : i32
    scf.if %16 {
      %c0_i32_6 = arith.constant 0 : i32
      %17 = arith.addi %arg1, %c0_i32_6 : i32
      %c2_i32_7 = arith.constant 2 : i32
      %18 = arith.addi %17, %c2_i32_7 : i32
      %c3_i32_8 = arith.constant 3 : i32
      %c0_i32_9 = arith.constant 0 : i32
      %19 = arith.cmpi eq, %c3_i32_8, %c0_i32_9 : i32
      %c1_i32 = arith.constant 1 : i32
      %20 = arith.select %19, %c1_i32, %c3_i32_8 : i32
      %21 = arith.remsi %18, %20 : i32
      %c0_i32_10 = arith.constant 0 : i32
      %22 = arith.cmpi ne, %21, %c0_i32_10 : i32
      %c0_i32_11 = arith.constant 0 : i32
      %23 = arith.cmpi slt, %21, %c0_i32_11 : i32
      %c0_i32_12 = arith.constant 0 : i32
      %24 = arith.cmpi slt, %20, %c0_i32_12 : i32
      %25 = arith.xori %23, %24 : i1
      %26 = arith.andi %25, %22 : i1
      %27 = arith.addi %21, %20 : i32
      %28 = arith.select %26, %27, %21 : i32
      %29 = arith.index_cast %28 : i32 to index
      %c0 = arith.constant 0 : index
      %c0_13 = arith.constant 0 : index
      %c0_14 = arith.constant 0 : index
      %30 = vector.load %arg11[%29, %c0, %c0_13, %c0_14] : memref<3x10x10x8xbf16, #tpu.memory_space<vmem>>, vector<1x10x10x8xbf16>
      %31 = vector.shape_cast %30 : vector<1x10x10x8xbf16> to vector<10x10x8xbf16>
      %32 = vector.extract_strided_slice %31 {offsets = [0, 0, 0], sizes = [10, 8, 8], strides = [1, 1, 1]} : vector<10x10x8xbf16> to vector<10x8x8xbf16>
      %33 = vector.extract_strided_slice %31 {offsets = [0, 1, 0], sizes = [10, 8, 8], strides = [1, 1, 1]} : vector<10x10x8xbf16> to vector<10x8x8xbf16>
      %34 = vector.extract_strided_slice %31 {offsets = [0, 2, 0], sizes = [10, 8, 8], strides = [1, 1, 1]} : vector<10x10x8xbf16> to vector<10x8x8xbf16>
      %35 = tpu.concatenate %32, %33, %34 in 2 : vector<10x8x8xbf16>, vector<10x8x8xbf16>, vector<10x8x8xbf16> -> vector<10x8x24xbf16>
      %36 = vector.extract_strided_slice %35 {offsets = [0, 0, 0], sizes = [8, 8, 24], strides = [1, 1, 1]} : vector<10x8x24xbf16> to vector<8x8x24xbf16>
      %37 = vector.shape_cast %36 : vector<8x8x24xbf16> to vector<64x24xbf16>
      %c0_15 = arith.constant 0 : index
      %c0_16 = arith.constant 0 : index
      %c0_17 = arith.constant 0 : index
      %c0_18 = arith.constant 0 : index
      %38 = vector.load %arg6[%c0_15, %c0_16, %c0_17, %c0_18] : memref<3x3x24x8xbf16, #tpu.memory_space<vmem>>, vector<1x1x24x8xbf16>
      %39 = vector.shape_cast %38 : vector<1x1x24x8xbf16> to vector<24x8xbf16>
      %cst = arith.constant dense<0.000000e+00> : vector<64x8xf32>
      %40 = tpu.matmul %37, %39, %cst {dimension_numbers = #tpu.dot_dimension_numbers<[1], [0], [0], [1], [0, 0, 1, 1], [], []>} : vector<64x24xbf16>, vector<24x8xbf16>, vector<64x8xf32> -> vector<64x8xf32>
      %41 = vector.extract_strided_slice %35 {offsets = [1, 0, 0], sizes = [8, 8, 24], strides = [1, 1, 1]} : vector<10x8x24xbf16> to vector<8x8x24xbf16>
      %42 = vector.shape_cast %41 : vector<8x8x24xbf16> to vector<64x24xbf16>
      %c0_19 = arith.constant 0 : index
      %c1 = arith.constant 1 : index
      %c0_20 = arith.constant 0 : index
      %c0_21 = arith.constant 0 : index
      %43 = vector.load %arg6[%c0_19, %c1, %c0_20, %c0_21] : memref<3x3x24x8xbf16, #tpu.memory_space<vmem>>, vector<1x1x24x8xbf16>
      %44 = vector.shape_cast %43 : vector<1x1x24x8xbf16> to vector<24x8xbf16>
      %cst_22 = arith.constant dense<0.000000e+00> : vector<64x8xf32>
      %45 = tpu.matmul %42, %44, %cst_22 {dimension_numbers = #tpu.dot_dimension_numbers<[1], [0], [0], [1], [0, 0, 1, 1], [], []>} : vector<64x24xbf16>, vector<24x8xbf16>, vector<64x8xf32> -> vector<64x8xf32>
      %46 = arith.addf %40, %45 : vector<64x8xf32>
      %47 = vector.extract_strided_slice %35 {offsets = [2, 0, 0], sizes = [8, 8, 24], strides = [1, 1, 1]} : vector<10x8x24xbf16> to vector<8x8x24xbf16>
      %48 = vector.shape_cast %47 : vector<8x8x24xbf16> to vector<64x24xbf16>
      %c0_23 = arith.constant 0 : index
      %c2 = arith.constant 2 : index
      %c0_24 = arith.constant 0 : index
      %c0_25 = arith.constant 0 : index
      %49 = vector.load %arg6[%c0_23, %c2, %c0_24, %c0_25] : memref<3x3x24x8xbf16, #tpu.memory_space<vmem>>, vector<1x1x24x8xbf16>
      %50 = vector.shape_cast %49 : vector<1x1x24x8xbf16> to vector<24x8xbf16>
      %cst_26 = arith.constant dense<0.000000e+00> : vector<64x8xf32>
      %51 = tpu.matmul %48, %50, %cst_26 {dimension_numbers = #tpu.dot_dimension_numbers<[1], [0], [0], [1], [0, 0, 1, 1], [], []>} : vector<64x24xbf16>, vector<24x8xbf16>, vector<64x8xf32> -> vector<64x8xf32>
      %52 = arith.addf %46, %51 : vector<64x8xf32>
      %c1_i32_27 = arith.constant 1 : i32
      %53 = arith.addi %arg1, %c1_i32_27 : i32
      %c2_i32_28 = arith.constant 2 : i32
      %54 = arith.addi %53, %c2_i32_28 : i32
      %c3_i32_29 = arith.constant 3 : i32
      %c0_i32_30 = arith.constant 0 : i32
      %55 = arith.cmpi eq, %c3_i32_29, %c0_i32_30 : i32
      %c1_i32_31 = arith.constant 1 : i32
      %56 = arith.select %55, %c1_i32_31, %c3_i32_29 : i32
      %57 = arith.remsi %54, %56 : i32
      %c0_i32_32 = arith.constant 0 : i32
      %58 = arith.cmpi ne, %57, %c0_i32_32 : i32
      %c0_i32_33 = arith.constant 0 : i32
      %59 = arith.cmpi slt, %57, %c0_i32_33 : i32
      %c0_i32_34 = arith.constant 0 : i32
      %60 = arith.cmpi slt, %56, %c0_i32_34 : i32
      %61 = arith.xori %59, %60 : i1
      %62 = arith.andi %61, %58 : i1
      %63 = arith.addi %57, %56 : i32
      %64 = arith.select %62, %63, %57 : i32
      %65 = arith.index_cast %64 : i32 to index
      %c0_35 = arith.constant 0 : index
      %c0_36 = arith.constant 0 : index
      %c0_37 = arith.constant 0 : index
      %66 = vector.load %arg11[%65, %c0_35, %c0_36, %c0_37] : memref<3x10x10x8xbf16, #tpu.memory_space<vmem>>, vector<1x10x10x8xbf16>
      %67 = vector.shape_cast %66 : vector<1x10x10x8xbf16> to vector<10x10x8xbf16>
      %68 = vector.extract_strided_slice %67 {offsets = [0, 0, 0], sizes = [10, 8, 8], strides = [1, 1, 1]} : vector<10x10x8xbf16> to vector<10x8x8xbf16>
      %69 = vector.extract_strided_slice %67 {offsets = [0, 1, 0], sizes = [10, 8, 8], strides = [1, 1, 1]} : vector<10x10x8xbf16> to vector<10x8x8xbf16>
      %70 = vector.extract_strided_slice %67 {offsets = [0, 2, 0], sizes = [10, 8, 8], strides = [1, 1, 1]} : vector<10x10x8xbf16> to vector<10x8x8xbf16>
      %71 = tpu.concatenate %68, %69, %70 in 2 : vector<10x8x8xbf16>, vector<10x8x8xbf16>, vector<10x8x8xbf16> -> vector<10x8x24xbf16>
      %72 = vector.extract_strided_slice %71 {offsets = [0, 0, 0], sizes = [8, 8, 24], strides = [1, 1, 1]} : vector<10x8x24xbf16> to vector<8x8x24xbf16>
      %73 = vector.shape_cast %72 : vector<8x8x24xbf16> to vector<64x24xbf16>
      %c1_38 = arith.constant 1 : index
      %c0_39 = arith.constant 0 : index
      %c0_40 = arith.constant 0 : index
      %c0_41 = arith.constant 0 : index
      %74 = vector.load %arg6[%c1_38, %c0_39, %c0_40, %c0_41] : memref<3x3x24x8xbf16, #tpu.memory_space<vmem>>, vector<1x1x24x8xbf16>
      %75 = vector.shape_cast %74 : vector<1x1x24x8xbf16> to vector<24x8xbf16>
      %cst_42 = arith.constant dense<0.000000e+00> : vector<64x8xf32>
      %76 = tpu.matmul %73, %75, %cst_42 {dimension_numbers = #tpu.dot_dimension_numbers<[1], [0], [0], [1], [0, 0, 1, 1], [], []>} : vector<64x24xbf16>, vector<24x8xbf16>, vector<64x8xf32> -> vector<64x8xf32>
      %77 = vector.extract_strided_slice %71 {offsets = [1, 0, 0], sizes = [8, 8, 24], strides = [1, 1, 1]} : vector<10x8x24xbf16> to vector<8x8x24xbf16>
      %78 = vector.shape_cast %77 : vector<8x8x24xbf16> to vector<64x24xbf16>
      %c1_43 = arith.constant 1 : index
      %c1_44 = arith.constant 1 : index
      %c0_45 = arith.constant 0 : index
      %c0_46 = arith.constant 0 : index
      %79 = vector.load %arg6[%c1_43, %c1_44, %c0_45, %c0_46] : memref<3x3x24x8xbf16, #tpu.memory_space<vmem>>, vector<1x1x24x8xbf16>
      %80 = vector.shape_cast %79 : vector<1x1x24x8xbf16> to vector<24x8xbf16>
      %cst_47 = arith.constant dense<0.000000e+00> : vector<64x8xf32>
      %81 = tpu.matmul %78, %80, %cst_47 {dimension_numbers = #tpu.dot_dimension_numbers<[1], [0], [0], [1], [0, 0, 1, 1], [], []>} : vector<64x24xbf16>, vector<24x8xbf16>, vector<64x8xf32> -> vector<64x8xf32>
      %82 = arith.addf %76, %81 : vector<64x8xf32>
      %83 = vector.extract_strided_slice %71 {offsets = [2, 0, 0], sizes = [8, 8, 24], strides = [1, 1, 1]} : vector<10x8x24xbf16> to vector<8x8x24xbf16>
      %84 = vector.shape_cast %83 : vector<8x8x24xbf16> to vector<64x24xbf16>
      %c1_48 = arith.constant 1 : index
      %c2_49 = arith.constant 2 : index
      %c0_50 = arith.constant 0 : index
      %c0_51 = arith.constant 0 : index
      %85 = vector.load %arg6[%c1_48, %c2_49, %c0_50, %c0_51] : memref<3x3x24x8xbf16, #tpu.memory_space<vmem>>, vector<1x1x24x8xbf16>
      %86 = vector.shape_cast %85 : vector<1x1x24x8xbf16> to vector<24x8xbf16>
      %cst_52 = arith.constant dense<0.000000e+00> : vector<64x8xf32>
      %87 = tpu.matmul %84, %86, %cst_52 {dimension_numbers = #tpu.dot_dimension_numbers<[1], [0], [0], [1], [0, 0, 1, 1], [], []>} : vector<64x24xbf16>, vector<24x8xbf16>, vector<64x8xf32> -> vector<64x8xf32>
      %88 = arith.addf %82, %87 : vector<64x8xf32>
      %89 = arith.addf %52, %88 : vector<64x8xf32>
      %c2_i32_53 = arith.constant 2 : i32
      %90 = arith.addi %arg1, %c2_i32_53 : i32
      %c2_i32_54 = arith.constant 2 : i32
      %91 = arith.addi %90, %c2_i32_54 : i32
      %c3_i32_55 = arith.constant 3 : i32
      %c0_i32_56 = arith.constant 0 : i32
      %92 = arith.cmpi eq, %c3_i32_55, %c0_i32_56 : i32
      %c1_i32_57 = arith.constant 1 : i32
      %93 = arith.select %92, %c1_i32_57, %c3_i32_55 : i32
      %94 = arith.remsi %91, %93 : i32
      %c0_i32_58 = arith.constant 0 : i32
      %95 = arith.cmpi ne, %94, %c0_i32_58 : i32
      %c0_i32_59 = arith.constant 0 : i32
      %96 = arith.cmpi slt, %94, %c0_i32_59 : i32
      %c0_i32_60 = arith.constant 0 : i32
      %97 = arith.cmpi slt, %93, %c0_i32_60 : i32
      %98 = arith.xori %96, %97 : i1
      %99 = arith.andi %98, %95 : i1
      %100 = arith.addi %94, %93 : i32
      %101 = arith.select %99, %100, %94 : i32
      %102 = arith.index_cast %101 : i32 to index
      %c0_61 = arith.constant 0 : index
      %c0_62 = arith.constant 0 : index
      %c0_63 = arith.constant 0 : index
      %103 = vector.load %arg11[%102, %c0_61, %c0_62, %c0_63] : memref<3x10x10x8xbf16, #tpu.memory_space<vmem>>, vector<1x10x10x8xbf16>
      %104 = vector.shape_cast %103 : vector<1x10x10x8xbf16> to vector<10x10x8xbf16>
      %105 = vector.extract_strided_slice %104 {offsets = [0, 0, 0], sizes = [10, 8, 8], strides = [1, 1, 1]} : vector<10x10x8xbf16> to vector<10x8x8xbf16>
      %106 = vector.extract_strided_slice %104 {offsets = [0, 1, 0], sizes = [10, 8, 8], strides = [1, 1, 1]} : vector<10x10x8xbf16> to vector<10x8x8xbf16>
      %107 = vector.extract_strided_slice %104 {offsets = [0, 2, 0], sizes = [10, 8, 8], strides = [1, 1, 1]} : vector<10x10x8xbf16> to vector<10x8x8xbf16>
      %108 = tpu.concatenate %105, %106, %107 in 2 : vector<10x8x8xbf16>, vector<10x8x8xbf16>, vector<10x8x8xbf16> -> vector<10x8x24xbf16>
      %109 = vector.extract_strided_slice %108 {offsets = [0, 0, 0], sizes = [8, 8, 24], strides = [1, 1, 1]} : vector<10x8x24xbf16> to vector<8x8x24xbf16>
      %110 = vector.shape_cast %109 : vector<8x8x24xbf16> to vector<64x24xbf16>
      %c2_64 = arith.constant 2 : index
      %c0_65 = arith.constant 0 : index
      %c0_66 = arith.constant 0 : index
      %c0_67 = arith.constant 0 : index
      %111 = vector.load %arg6[%c2_64, %c0_65, %c0_66, %c0_67] : memref<3x3x24x8xbf16, #tpu.memory_space<vmem>>, vector<1x1x24x8xbf16>
      %112 = vector.shape_cast %111 : vector<1x1x24x8xbf16> to vector<24x8xbf16>
      %cst_68 = arith.constant dense<0.000000e+00> : vector<64x8xf32>
      %113 = tpu.matmul %110, %112, %cst_68 {dimension_numbers = #tpu.dot_dimension_numbers<[1], [0], [0], [1], [0, 0, 1, 1], [], []>} : vector<64x24xbf16>, vector<24x8xbf16>, vector<64x8xf32> -> vector<64x8xf32>
      %114 = vector.extract_strided_slice %108 {offsets = [1, 0, 0], sizes = [8, 8, 24], strides = [1, 1, 1]} : vector<10x8x24xbf16> to vector<8x8x24xbf16>
      %115 = vector.shape_cast %114 : vector<8x8x24xbf16> to vector<64x24xbf16>
      %c2_69 = arith.constant 2 : index
      %c1_70 = arith.constant 1 : index
      %c0_71 = arith.constant 0 : index
      %c0_72 = arith.constant 0 : index
      %116 = vector.load %arg6[%c2_69, %c1_70, %c0_71, %c0_72] : memref<3x3x24x8xbf16, #tpu.memory_space<vmem>>, vector<1x1x24x8xbf16>
      %117 = vector.shape_cast %116 : vector<1x1x24x8xbf16> to vector<24x8xbf16>
      %cst_73 = arith.constant dense<0.000000e+00> : vector<64x8xf32>
      %118 = tpu.matmul %115, %117, %cst_73 {dimension_numbers = #tpu.dot_dimension_numbers<[1], [0], [0], [1], [0, 0, 1, 1], [], []>} : vector<64x24xbf16>, vector<24x8xbf16>, vector<64x8xf32> -> vector<64x8xf32>
      %119 = arith.addf %113, %118 : vector<64x8xf32>
      %120 = vector.extract_strided_slice %108 {offsets = [2, 0, 0], sizes = [8, 8, 24], strides = [1, 1, 1]} : vector<10x8x24xbf16> to vector<8x8x24xbf16>
      %121 = vector.shape_cast %120 : vector<8x8x24xbf16> to vector<64x24xbf16>
      %c2_74 = arith.constant 2 : index
      %c2_75 = arith.constant 2 : index
      %c0_76 = arith.constant 0 : index
      %c0_77 = arith.constant 0 : index
      %122 = vector.load %arg6[%c2_74, %c2_75, %c0_76, %c0_77] : memref<3x3x24x8xbf16, #tpu.memory_space<vmem>>, vector<1x1x24x8xbf16>
      %123 = vector.shape_cast %122 : vector<1x1x24x8xbf16> to vector<24x8xbf16>
      %cst_78 = arith.constant dense<0.000000e+00> : vector<64x8xf32>
      %124 = tpu.matmul %121, %123, %cst_78 {dimension_numbers = #tpu.dot_dimension_numbers<[1], [0], [0], [1], [0, 0, 1, 1], [], []>} : vector<64x24xbf16>, vector<24x8xbf16>, vector<64x8xf32> -> vector<64x8xf32>
      %125 = arith.addf %119, %124 : vector<64x8xf32>
      %126 = arith.addf %89, %125 : vector<64x8xf32>
      %c0_79 = arith.constant 0 : index
      %c0_80 = arith.constant 0 : index
      %127 = vector.load %arg7[%c0_79, %c0_80] : memref<1x8xf32, #tpu.memory_space<vmem>>, vector<1x8xf32>
      %128 = vector.shape_cast %127 : vector<1x8xf32> to vector<8xf32>
      %129 = vector.shape_cast %128 : vector<8xf32> to vector<1x8xf32>
      %130 = vector.broadcast %129 : vector<1x8xf32> to vector<64x8xf32>
      %131 = arith.mulf %126, %130 : vector<64x8xf32>
      %c0_81 = arith.constant 0 : index
      %c0_82 = arith.constant 0 : index
      %132 = vector.load %arg8[%c0_81, %c0_82] : memref<1x8xf32, #tpu.memory_space<vmem>>, vector<1x8xf32>
      %133 = vector.shape_cast %132 : vector<1x8xf32> to vector<8xf32>
      %134 = vector.shape_cast %133 : vector<8xf32> to vector<1x8xf32>
      %135 = vector.broadcast %134 : vector<1x8xf32> to vector<64x8xf32>
      %136 = arith.addf %131, %135 : vector<64x8xf32>
      %cst_83 = arith.constant 0.000000e+00 : f32
      %137 = vector.broadcast %cst_83 : f32 to vector<64x8xf32>
      %138 = arith.maximumf %136, %137 : vector<64x8xf32>
      %139 = vector.shape_cast %138 : vector<64x8xf32> to vector<8x8x8xf32>
      %c0_84 = arith.constant 0 : index
      %c0_85 = arith.constant 0 : index
      %c0_86 = arith.constant 0 : index
      %c0_87 = arith.constant 0 : index
      %c0_88 = arith.constant 0 : index
      %140 = vector.load %arg9[%c0_84, %c0_85, %c0_86, %c0_87, %c0_88] : memref<1x1x8x8x8xf32, #tpu.memory_space<vmem>>, vector<1x1x8x8x8xf32>
      %141 = vector.shape_cast %140 : vector<1x1x8x8x8xf32> to vector<8x8x8xf32>
      %142 = vector.shape_cast %139 : vector<8x8x8xf32> to vector<1x1x8x8x8xf32>
      tpu.vector_store %arg9[%c0_84, %c0_85, %c0_86, %c0_87, %c0_88], %142 {strides = array<i32>} : memref<1x1x8x8x8xf32, #tpu.memory_space<vmem>>, vector<1x1x8x8x8xf32>,
    } else {
    }
    return
  }
  func.func @transform_0(%arg0: i32, %arg1: i32) -> (i32, i32, i32, i32, i32) {
    %c0_i32 = arith.constant 0 : i32
    %c0_i32_0 = arith.constant 0 : i32
    %c0_i32_1 = arith.constant 0 : i32
    %c0_i32_2 = arith.constant 0 : i32
    return %arg0, %arg1, %c0_i32, %c0_i32_0, %c0_i32_1 : i32, i32, i32, i32, i32
  }
  func.func @transform_1(%arg0: i32, %arg1: i32) -> (i32, i32, i32, i32) {
    %c0_i32 = arith.constant 0 : i32
    %c0_i32_0 = arith.constant 0 : i32
    %c0_i32_1 = arith.constant 0 : i32
    %c0_i32_2 = arith.constant 0 : i32
    %c0_i32_3 = arith.constant 0 : i32
    return %c0_i32, %c0_i32_0, %c0_i32_1, %c0_i32_2 : i32, i32, i32, i32
  }
  func.func @transform_2(%arg0: i32, %arg1: i32) -> (i32, i32) {
    %c0_i32 = arith.constant 0 : i32
    %c0_i32_0 = arith.constant 0 : i32
    %c0_i32_1 = arith.constant 0 : i32
    return %c0_i32, %c0_i32_0 : i32, i32
  }
  func.func @transform_3(%arg0: i32, %arg1: i32) -> (i32, i32) {
    %c0_i32 = arith.constant 0 : i32
    %c0_i32_0 = arith.constant 0 : i32
    %c0_i32_1 = arith.constant 0 : i32
    return %c0_i32, %c0_i32_0 : i32, i32
  }
  func.func @transform_4(%arg0: i32, %arg1: i32) -> (i32, i32, i32, i32) {
    %c0_i32 = arith.constant 0 : i32
    %c0_i32_0 = arith.constant 0 : i32
    %c0_i32_1 = arith.constant 0 : i32
    %c0_i32_2 = arith.constant 0 : i32
    %c0_i32_3 = arith.constant 0 : i32
    return %c0_i32, %c0_i32_0, %c0_i32_1, %c0_i32_2 : i32, i32, i32, i32
  }
  func.func @transform_5(%arg0: i32, %arg1: i32) -> (i32, i32) {
    %c0_i32 = arith.constant 0 : i32
    %c0_i32_0 = arith.constant 0 : i32
    %c0_i32_1 = arith.constant 0 : i32
    return %c0_i32, %c0_i32_0 : i32, i32
  }
  func.func @transform_6(%arg0: i32, %arg1: i32) -> (i32, i32) {
    %c0_i32 = arith.constant 0 : i32
    %c0_i32_0 = arith.constant 0 : i32
    %c0_i32_1 = arith.constant 0 : i32
    return %c0_i32, %c0_i32_0 : i32, i32
  }
  func.func @transform_7(%arg0: i32, %arg1: i32) -> (i32, i32, i32, i32, i32) {
    %c3_i32 = arith.constant 3 : i32
    %0 = arith.subi %arg1, %c3_i32 : i32
    %c0_i32 = arith.constant 0 : i32
    %1 = arith.maxsi %0, %c0_i32 : i32
    %c0_i32_0 = arith.constant 0 : i32
    %c0_i32_1 = arith.constant 0 : i32
    %c0_i32_2 = arith.constant 0 : i32
    %c0_i32_3 = arith.constant 0 : i32
    return %arg0, %1, %c0_i32_0, %c0_i32_1, %c0_i32_2 : i32, i32, i32, i32, i32
  }
}

</mosaic_0001>

<llo_original>
// kernel: double_conv3d_dec.1
$region0: #{double_conv3d_dec.1}
  #allocation0 [shape = 'u32[]', space=smem, size = 0x4, offset = 0x4, fixed_abs, tag = 'smem constant byte address 0x4 - core index']
  #allocation1 [shape = 'u32[144,128]{1,0:T(1,128)}', space=vmem, size = 0x12000, scoped, tag = 'internal scratch']
  #allocation2 [shape = 'bf16[3,10,10,4]{3,2,1,0:T(8,128)(2,1)}', space=vmem, size = 0x1e000, scoped, tag = 'scratch operand']
  #allocation3 [shape = 'bf16[3,10,10,8]{3,2,1,0:T(8,128)(2,1)}', space=vmem, size = 0x1e000, scoped, tag = 'scratch operand']
  %s0 = inlined_call_operand.vmem [shape: bf16[2,11,10,10,4], index: 0, kind: input, shape index: {}]
  %s1 = inlined_call_operand.vmem [shape: bf16[3,3,12,8], index: 1, kind: input, shape index: {}]
  %s2 = inlined_call_operand.vmem [shape: f32[1,8], index: 2, kind: input, shape index: {}]
  %s3 = inlined_call_operand.vmem [shape: f32[1,8], index: 3, kind: input, shape index: {}]
  %s4 = inlined_call_operand.vmem [shape: bf16[3,3,24,8], index: 4, kind: input, shape index: {}]
  %s5 = inlined_call_operand.vmem [shape: f32[1,8], index: 5, kind: input, shape index: {}]
  %s6 = inlined_call_operand.vmem [shape: f32[1,8], index: 6, kind: input, shape index: {}]
  %s7 = inlined_call_operand.vmem [shape: f32[2,8,8,8,8], index: 7, kind: output, shape index: {}]
  %s8 = sld [smem:[#allocation0]]
  $region81: #{double_conv3d_dec.1} parent=0
    _
  %s10 = ssub.s32 1, %s8
  %s11 = scalar_select 0, %s10, %s8
  loop: start=0, step=1, limit=24
  $region2: #{double_conv3d_dec.1} parent=0 // loop_pre_header
    _
  $region3: #{double_conv3d_dec.1} parent=0 // loop_header
    %s13 = sphi 0, %s17
    %p14 = scmp.ge.s32.totalorder %s13, 24
    %s20 = sphi 0, %s32
    %s21 = sphi 0, %s28
    %s22 = sphi 0, %s20
    %s23 = sphi 0, %s21
    %s24 = sphi 0, %s22
    %s25 = sphi 0, %s23
    %s37 = sphi 0, %s39
    %s40 = sphi 0, %s37
    %s41 = sphi 0, %s40
    %s57 = sphi 0, %s41
    %s61 = sphi 0, %s61
    %s63 = sphi 0, %s61
    %s64 = sphi 0, %s63
    %s78 = sphi 0, %s64
    %s82 = sphi 0, %s82
    %s84 = sphi 0, %s82
    %s85 = sphi 0, %s84
    %s99 = sphi 0, %s85
    %s103 = sphi 0, %s103
    %s105 = sphi 0, %s103
    %s106 = sphi 0, %s105
    %s120 = sphi 0, %s106
    %s124 = sphi 0, %s124
    %s126 = sphi 0, %s124
    %s127 = sphi 0, %s126
    %s141 = sphi 0, %s127
    %s145 = sphi 0, %s145
    %s147 = sphi 0, %s145
    %s148 = sphi 0, %s147
    %s162 = sphi 0, %s148
    %s166 = sphi 0, %s166
    %s168 = sphi 0, %s166
    %s169 = sphi 0, %s168
    %s183 = sphi 0, %s169
    %s197 = sphi 0, %s199
    %s200 = sphi 0, %s197
    %s201 = sphi 0, %s200
    %s217 = sphi 0, %s201
  $region4: #{double_conv3d_dec.1} parent=0 // loop_header_branch
    %16 = sbr.rel (%p14) target = $region8
  $region5: #{double_conv3d_dec.1} parent=0 // loop_body
    %s18 = ssub.s32 %s13, 1
    %s19 = ssub.s32 %s13, 2
    %s26 = sadd.s32 1, %s21
    %p27 = scmp.ge.s32.totalorder %s26, 11
    %s28 = scalar_select %p27, 0, %s26
    %s29 = sadd.s32 1, %s20
    %s30 = scalar_select %p27, %s29, %s20
    %p31 = scmp.ge.s32.totalorder %s30, 2
    %s32 = scalar_select %p31, 0, %s30
    %s33 = ssub.s32 %s20, %s32
    %s34 = ssub.s32 %s21, %s28
    %s35 = sor.u32 %s33, %s34
    %p36 = scmp.eq.s32.totalorder %s35, 0
    %s38 = sadd.s32 %s37, 1
    %s39 = scalar_select %p36, %s37, %s38
    %p42 = pneg %p36
    %p43 = scmp.eq.s32.totalorder %s13, 21
    %p44 = por %p42, %p43
    %p45 = scmp.ne.s32.totalorder %s37, %s40
    %p46 = scmp.eq.s32.totalorder %s13, 0
    %p47 = por %p45, %p46
    %p48 = scmp.ne.s32.totalorder %s37, %s40
    %p49 = scmp.eq.s32.totalorder %s18, 21
    %p50 = por %p48, %p49
    %p51 = scmp.ne.s32.totalorder %s40, %s41
    %p52 = scmp.eq.s32.totalorder %s18, 0
    %p53 = por %p51, %p52
    %p54 = scmp.ne.s32.totalorder %s40, %s41
    %p55 = scmp.eq.s32.totalorder %s19, 21
    %p56 = por %p54, %p55
    %p58 = scmp.ne.s32.totalorder %s41, %s57
    %p59 = scmp.eq.s32.totalorder %s19, 0
    %p60 = por %p58, %p59
    %s62 = sadd.s32 %s61, 1
    %p65 = scmp.eq.s32.totalorder %s13, 21
    %p66 = scmp.ne.s32.totalorder %s61, %s63
    %p67 = scmp.eq.s32.totalorder %s13, 0
    %p68 = por %p66, %p67
    %p69 = scmp.ne.s32.totalorder %s61, %s63
    %p70 = scmp.eq.s32.totalorder %s18, 21
    %p71 = por %p69, %p70
    %p72 = scmp.ne.s32.totalorder %s63, %s64
    %p73 = scmp.eq.s32.totalorder %s18, 0
    %p74 = por %p72, %p73
    %p75 = scmp.ne.s32.totalorder %s63, %s64
    %p76 = scmp.eq.s32.totalorder %s19, 21
    %p77 = por %p75, %p76
    %p79 = scmp.ne.s32.totalorder %s64, %s78
    %p80 = scmp.eq.s32.totalorder %s19, 0
    %p81 = por %p79, %p80
    %s83 = sadd.s32 %s82, 1
    %p86 = scmp.eq.s32.totalorder %s13, 21
    %p87 = scmp.ne.s32.totalorder %s82, %s84
    %p88 = scmp.eq.s32.totalorder %s13, 0
    %p89 = por %p87, %p88
    %p90 = scmp.ne.s32.totalorder %s82, %s84
    %p91 = scmp.eq.s32.totalorder %s18, 21
    %p92 = por %p90, %p91
    %p93 = scmp.ne.s32.totalorder %s84, %s85
    %p94 = scmp.eq.s32.totalorder %s18, 0
    %p95 = por %p93, %p94
    %p96 = scmp.ne.s32.totalorder %s84, %s85
    %p97 = scmp.eq.s32.totalorder %s19, 21
    %p98 = por %p96, %p97
    %p100 = scmp.ne.s32.totalorder %s85, %s99
    %p101 = scmp.eq.s32.totalorder %s19, 0
    %p102 = por %p100, %p101
    %s104 = sadd.s32 %s103, 1
    %p107 = scmp.eq.s32.totalorder %s13, 21
    %p108 = scmp.ne.s32.totalorder %s103, %s105
    %p109 = scmp.eq.s32.totalorder %s13, 0
    %p110 = por %p108, %p109
    %p111 = scmp.ne.s32.totalorder %s103, %s105
    %p112 = scmp.eq.s32.totalorder %s18, 21
    %p113 = por %p111, %p112
    %p114 = scmp.ne.s32.totalorder %s105, %s106
    %p115 = scmp.eq.s32.totalorder %s18, 0
    %p116 = por %p114, %p115
    %p117 = scmp.ne.s32.totalorder %s105, %s106
    %p118 = scmp.eq.s32.totalorder %s19, 21
    %p119 = por %p117, %p118
    %p121 = scmp.ne.s32.totalorder %s106, %s120
    %p122 = scmp.eq.s32.totalorder %s19, 0
    %p123 = por %p121, %p122
    %s125 = sadd.s32 %s124, 1
    %p128 = scmp.eq.s32.totalorder %s13, 21
    %p129 = scmp.ne.s32.totalorder %s124, %s126
    %p130 = scmp.eq.s32.totalorder %s13, 0
    %p131 = por %p129, %p130
    %p132 = scmp.ne.s32.totalorder %s124, %s126
    %p133 = scmp.eq.s32.totalorder %s18, 21
    %p134 = por %p132, %p133
    %p135 = scmp.ne.s32.totalorder %s126, %s127
    %p136 = scmp.eq.s32.totalorder %s18, 0
    %p137 = por %p135, %p136
    %p138 = scmp.ne.s32.totalorder %s126, %s127
    %p139 = scmp.eq.s32.totalorder %s19, 21
    %p140 = por %p138, %p139
    %p142 = scmp.ne.s32.totalorder %s127, %s141
    %p143 = scmp.eq.s32.totalorder %s19, 0
    %p144 = por %p142, %p143
    %s146 = sadd.s32 %s145, 1
    %p149 = scmp.eq.s32.totalorder %s13, 21
    %p150 = scmp.ne.s32.totalorder %s145, %s147
    %p151 = scmp.eq.s32.totalorder %s13, 0
    %p152 = por %p150, %p151
    %p153 = scmp.ne.s32.totalorder %s145, %s147
    %p154 = scmp.eq.s32.totalorder %s18, 21
    %p155 = por %p153, %p154
    %p156 = scmp.ne.s32.totalorder %s147, %s148
    %p157 = scmp.eq.s32.totalorder %s18, 0
    %p158 = por %p156, %p157
    %p159 = scmp.ne.s32.totalorder %s147, %s148
    %p160 = scmp.eq.s32.totalorder %s19, 21
    %p161 = por %p159, %p160
    %p163 = scmp.ne.s32.totalorder %s148, %s162
    %p164 = scmp.eq.s32.totalorder %s19, 0
    %p165 = por %p163, %p164
    %s167 = sadd.s32 %s166, 1
    %p170 = scmp.eq.s32.totalorder %s13, 21
    %p171 = scmp.ne.s32.totalorder %s166, %s168
    %p172 = scmp.eq.s32.totalorder %s13, 0
    %p173 = por %p171, %p172
    %p174 = scmp.ne.s32.totalorder %s166, %s168
    %p175 = scmp.eq.s32.totalorder %s18, 21
    %p176 = por %p174, %p175
    %p177 = scmp.ne.s32.totalorder %s168, %s169
    %p178 = scmp.eq.s32.totalorder %s18, 0
    %p179 = por %p177, %p178
    %p180 = scmp.ne.s32.totalorder %s168, %s169
    %p181 = scmp.eq.s32.totalorder %s19, 21
    %p182 = por %p180, %p181
    %p184 = scmp.ne.s32.totalorder %s169, %s183
    %p185 = scmp.eq.s32.totalorder %s19, 0
    %p186 = por %p184, %p185
    %s187 = ssub.s32 %s21, 3
    %p188 = scmp.gt.s32.totalorder %s187, 0
    %s189 = scalar_select %p188, %s187, 0
    %s190 = ssub.s32 %s28, 3
    %p191 = scmp.gt.s32.totalorder %s190, 0
    %s192 = scalar_select %p191, %s190, 0
    %s193 = ssub.s32 %s20, %s32
    %s194 = ssub.s32 %s189, %s192
    %s195 = sor.u32 %s193, %s194
    %p196 = scmp.eq.s32.totalorder %s195, 0
    %s198 = sadd.s32 %s197, 1
    %s199 = scalar_select %p196, %s197, %s198
    %p202 = pneg %p196
    %p203 = scmp.eq.s32.totalorder %s13, 21
    %p204 = por %p202, %p203
    %p205 = scmp.ne.s32.totalorder %s197, %s200
    %p206 = scmp.eq.s32.totalorder %s13, 0
    %p207 = por %p205, %p206
    %p208 = scmp.ne.s32.totalorder %s197, %s200
    %p209 = scmp.eq.s32.totalorder %s18, 21
    %p210 = por %p208, %p209
    %p211 = scmp.ne.s32.totalorder %s200, %s201
    %p212 = scmp.eq.s32.totalorder %s18, 0
    %p213 = por %p211, %p212
    %p214 = scmp.ne.s32.totalorder %s200, %s201
    %p215 = scmp.eq.s32.totalorder %s19, 21
    %p216 = por %p214, %p215
    %p218 = scmp.ne.s32.totalorder %s201, %s217
    %p219 = scmp.eq.s32.totalorder %s19, 0
    %p220 = por %p218, %p219
    %p221 = scmp.le.s32.totalorder 1, %s13
    %p222 = scmp.lt.s32.totalorder %s13, 23
    %p223 = pnand %p221, %p222
    %p224 = pneg %p223
    // Predicated region
    $region9: #{double_conv3d_dec.1} parent=5 // pred_check
      _
    $region10: #{double_conv3d_dec.1} parent=5 // pred_check_branch
      %226 = sbr.rel (%p223) target = $region12
    $region11: #{double_conv3d_dec.1} parent=5 // pred_region
      %s227 = ssub.s32 %s13, 1
      // Predicated region
      $region13: #{double_conv3d_dec.1} parent=11 // pred_check
        %p228 = pneg %p74
      $region14: #{double_conv3d_dec.1} parent=11 // pred_check_branch
        %230 = sbr.rel (%p228) target = $region16
      $region15: #{double_conv3d_dec.1} parent=11 // pred_region
        _
      $region16: #{double_conv3d_dec.1} parent=11 // pred_fallthru
        _
      // Predicated region
      $region17: #{double_conv3d_dec.1} parent=11 // pred_check
        %p231 = pneg %p95
      $region18: #{double_conv3d_dec.1} parent=11 // pred_check_branch
        %233 = sbr.rel (%p231) target = $region20
      $region19: #{double_conv3d_dec.1} parent=11 // pred_region
        _
      $region20: #{double_conv3d_dec.1} parent=11 // pred_fallthru
        _
      // Predicated region
      $region21: #{double_conv3d_dec.1} parent=11 // pred_check
        %p234 = pneg %p116
      $region22: #{double_conv3d_dec.1} parent=11 // pred_check_branch
        %236 = sbr.rel (%p234) target = $region24
      $region23: #{double_conv3d_dec.1} parent=11 // pred_region
        _
      $region24: #{double_conv3d_dec.1} parent=11 // pred_fallthru
        _
      // Predicated region
      $region25: #{double_conv3d_dec.1} parent=11 // pred_check
        %p237 = pneg %p137
      $region26: #{double_conv3d_dec.1} parent=11 // pred_check_branch
        %239 = sbr.rel (%p237) target = $region28
      $region27: #{double_conv3d_dec.1} parent=11 // pred_region
        _
      $region28: #{double_conv3d_dec.1} parent=11 // pred_fallthru
        _
      // Predicated region
      $region29: #{double_conv3d_dec.1} parent=11 // pred_check
        %p240 = pneg %p158
      $region30: #{double_conv3d_dec.1} parent=11 // pred_check_branch
        %242 = sbr.rel (%p240) target = $region32
      $region31: #{double_conv3d_dec.1} parent=11 // pred_region
        _
      $region32: #{double_conv3d_dec.1} parent=11 // pred_fallthru
        _
      // Predicated region
      $region33: #{double_conv3d_dec.1} parent=11 // pred_check
        %p243 = pneg %p179
      $region34: #{double_conv3d_dec.1} parent=11 // pred_check_branch
        %245 = sbr.rel (%p243) target = $region36
      $region35: #{double_conv3d_dec.1} parent=11 // pred_region
        _
      $region36: #{double_conv3d_dec.1} parent=11 // pred_fallthru
        _
    $region12: #{double_conv3d_dec.1} parent=5 // pred_fallthru
      _
    %p246 = scmp.lt.s32.totalorder %s13, 22
    // Predicated region
    $region37: #{double_conv3d_dec.1} parent=5 // pred_check
      %p247 = pneg %p246
    $region38: #{double_conv3d_dec.1} parent=5 // pred_check_branch
      %249 = sbr.rel (%p247) target = $region40
    $region39: #{double_conv3d_dec.1} parent=5 // pred_region
      // Predicated region
      $region41: #{double_conv3d_dec.1} parent=39 // pred_check
        %p250 = pneg %p47
      $region42: #{double_conv3d_dec.1} parent=39 // pred_check_branch
        %252 = sbr.rel (%p250) target = $region44
      $region43: #{double_conv3d_dec.1} parent=39 // pred_region
        %p253 = scmp.lt.s32.totalorder %s20, 1
        %s254 = scalar_select %p253, %s20, 1
        %p255 = scmp.lt.s32.totalorder %s21, 10
        %s256 = scalar_select %p255, %s21, 10
        %s257 = smul.addr %s256, 20
        %s258 = smul.addr %s254, 220
        %s259 = sadd.s32 %s257, %s258
        %s260 = smul.addr %s259, 4
        %s261 = scalar_lea.vmem %s0, %s260
      $region44: #{double_conv3d_dec.1} parent=39 // pred_fallthru
        _
    $region40: #{double_conv3d_dec.1} parent=5 // pred_fallthru
      _
    %p262 = scmp.le.s32.totalorder 1, %s13
    %p263 = scmp.lt.s32.totalorder %s13, 23
    %p264 = pnand %p262, %p263
    %p265 = pneg %p264
    // Predicated region
    $region45: #{double_conv3d_dec.1} parent=5 // pred_check
      _
    $region46: #{double_conv3d_dec.1} parent=5 // pred_check_branch
      %267 = sbr.rel (%p264) target = $region48
    $region47: #{double_conv3d_dec.1} parent=5 // pred_region
      %s268 = ssub.s32 %s13, 1
      %p269 = scmp.lt.s32.totalorder %s22, 1
      %s270 = scalar_select %p269, %s22, 1
      %p271 = scmp.lt.s32.totalorder %s23, 10
      %s272 = scalar_select %p271, %s23, 10
      %s273 = smul.addr %s272, 20
      %s274 = smul.addr %s270, 220
      %s275 = sadd.s32 %s273, %s274
      %s276 = smul.addr %s275, 4
      %s277 = scalar_lea.vmem %s0, %s276
      %p278 = pneg %p53
      %p279 = pneg %p50
      %p280 = pneg %p74
      %p281 = pneg %p71
      %p282 = pneg %p95
      %p283 = pneg %p92
      %p284 = pneg %p116
      %p285 = pneg %p113
      %p286 = pneg %p137
      %p287 = pneg %p134
      %p288 = pneg %p158
      %p289 = pneg %p155
      %p290 = pneg %p179
      %p291 = pneg %p176
      %p292 = pneg %p213
      %p293 = pneg %p210
      %s294 = ssub.s32 %s23, 3
      %p295 = scmp.gt.s32.totalorder %s294, 0
      %s296 = scalar_select %p295, %s294, 0
      %p297 = scmp.lt.s32.totalorder %s22, 1
      %s298 = scalar_select %p297, %s22, 1
      %p299 = scmp.lt.s32.totalorder %s296, 7
      %s300 = scalar_select %p299, %s296, 7
      %s301 = smul.addr %s300, 8
      %s302 = smul.addr %s298, 64
      %s303 = sadd.s32 %s301, %s302
      %s304 = smul.addr %s303, 8
      %s305 = scalar_lea.vmem %s7, %s304
      %p306 = scmp.lt.s32.totalorder %s22, 1
      %s307 = scalar_select %p306, %s22, 1
      %p308 = scmp.lt.s32.totalorder %s23, 10
      %s309 = scalar_select %p308, %s23, 10
      %s310 = smul.addr %s309, 20
      %s311 = smul.addr %s307, 220
      %s312 = sadd.s32 %s310, %s311
      %s313 = smul.addr %s312, 4
      %s314 = scalar_lea.vmem %s0, %s313
      %s315 = ssub.s32 %s23, 3
      %p316 = scmp.gt.s32.totalorder %s315, 0
      %s317 = scalar_select %p316, %s315, 0
      %p318 = scmp.lt.s32.totalorder %s22, 1
      %s319 = scalar_select %p318, %s22, 1
      %p320 = scmp.lt.s32.totalorder %s317, 7
      %s321 = scalar_select %p320, %s317, 7
      %s322 = smul.addr %s321, 8
      %s323 = smul.addr %s319, 64
      %s324 = sadd.s32 %s322, %s323
      %s325 = smul.addr %s324, 8
      %s326 = scalar_lea.vmem %s7, %s325
      %s327 = ssub.s32 %s23, 3
      %p328 = scmp.gt.s32.totalorder %s327, 0
      %s329 = scalar_select %p328, %s327, 0
      %p331 = scmp.eq.s32.totalorder %s23, 0
      // Predicated region
      $region49: #{double_conv3d_dec.1} parent=47 // pred_check
        %p332 = pneg %p331
      $region50: #{double_conv3d_dec.1} parent=47 // pred_check_branch
        %334 = sbr.rel (%p332) target = $region52
      $region51: #{double_conv3d_dec.1} parent=47 // pred_region
        %vm335 = vcmask 60416
        %336 = vst.msk [vmem:[#allocation3] sm:$0xf] %vm335, 0
        %vm337 = vcmask 57344
        %338 = vst.msk [vmem:[#allocation3 + $0x4] sm:$0x1] %vm337, 0
        %339 = vst.msk [vmem:[#allocation3 + $0x8] sm:$0xf] %vm335, 0
        %340 = vst.msk [vmem:[#allocation3 + $0xc] sm:$0x1] %vm337, 0
        %341 = vst.msk [vmem:[#allocation3 + $0x10] sm:$0xf] %vm335, 0
        %342 = vst.msk [vmem:[#allocation3 + $0x14] sm:$0x1] %vm337, 0
        %343 = vst.msk [vmem:[#allocation3 + $0x18] sm:$0xf] %vm335, 0
        %344 = vst.msk [vmem:[#allocation3 + $0x1c] sm:$0x1] %vm337, 0
        %345 = vst.msk [vmem:[#allocation3 + $0x20] sm:$0xf] %vm335, 0
        %346 = vst.msk [vmem:[#allocation3 + $0x24] sm:$0x1] %vm337, 0
        %347 = vst.msk [vmem:[#allocation3 + $0x28] sm:$0xf] %vm335, 0
        %348 = vst.msk [vmem:[#allocation3 + $0x2c] sm:$0x1] %vm337, 0
        %349 = vst.msk [vmem:[#allocation3 + $0x30] sm:$0xf] %vm335, 0
        %350 = vst.msk [vmem:[#allocation3 + $0x34] sm:$0x1] %vm337, 0
        %351 = vst.msk [vmem:[#allocation3 + $0x38] sm:$0xf] %vm335, 0
        %352 = vst.msk [vmem:[#allocation3 + $0x3c] sm:$0x1] %vm337, 0
        %353 = vst.msk [vmem:[#allocation3 + $0x40] sm:$0xf] %vm335, 0
        %354 = vst.msk [vmem:[#allocation3 + $0x44] sm:$0x1] %vm337, 0
        %355 = vst.msk [vmem:[#allocation3 + $0x48] sm:$0xf] %vm335, 0
        %356 = vst.msk [vmem:[#allocation3 + $0x4c] sm:$0x1] %vm337, 0
        %357 = vst.msk [vmem:[#allocation3 + $0x50] sm:$0xf] %vm335, 0
        %358 = vst.msk [vmem:[#allocation3 + $0x54] sm:$0x1] %vm337, 0
        %359 = vst.msk [vmem:[#allocation3 + $0x58] sm:$0xf] %vm335, 0
        %360 = vst.msk [vmem:[#allocation3 + $0x5c] sm:$0x1] %vm337, 0
        %361 = vst.msk [vmem:[#allocation3 + $0x60] sm:$0xf] %vm335, 0
        %362 = vst.msk [vmem:[#allocation3 + $0x64] sm:$0x1] %vm337, 0
        %363 = vst.msk [vmem:[#allocation3 + $0x68] sm:$0xf] %vm335, 0
        %364 = vst.msk [vmem:[#allocation3 + $0x6c] sm:$0x1] %vm337, 0
        %365 = vst.msk [vmem:[#allocation3 + $0x70] sm:$0xf] %vm335, 0
        %366 = vst.msk [vmem:[#allocation3 + $0x74] sm:$0x1] %vm337, 0
        %367 = vst.msk [vmem:[#allocation3 + $0x78] sm:$0xf] %vm335, 0
        %368 = vst.msk [vmem:[#allocation3 + $0x7c] sm:$0x1] %vm337, 0
        %369 = vst.msk [vmem:[#allocation3 + $0x80] sm:$0xf] %vm335, 0
        %370 = vst.msk [vmem:[#allocation3 + $0x84] sm:$0x1] %vm337, 0
        %371 = vst.msk [vmem:[#allocation3 + $0x88] sm:$0xf] %vm335, 0
        %372 = vst.msk [vmem:[#allocation3 + $0x8c] sm:$0x1] %vm337, 0
        %373 = vst.msk [vmem:[#allocation3 + $0x90] sm:$0xf] %vm335, 0
        %374 = vst.msk [vmem:[#allocation3 + $0x94] sm:$0x1] %vm337, 0
        %375 = vst.msk [vmem:[#allocation3 + $0x98] sm:$0xf] %vm335, 0
        %376 = vst.msk [vmem:[#allocation3 + $0x9c] sm:$0x1] %vm337, 0
        %377 = vst.msk [vmem:[#allocation3 + $0xa0] sm:$0xf] %vm335, 0
        %378 = vst.msk [vmem:[#allocation3 + $0xa4] sm:$0x1] %vm337, 0
        %379 = vst.msk [vmem:[#allocation3 + $0xa8] sm:$0xf] %vm335, 0
        %380 = vst.msk [vmem:[#allocation3 + $0xac] sm:$0x1] %vm337, 0
        %381 = vst.msk [vmem:[#allocation3 + $0xb0] sm:$0xf] %vm335, 0
        %382 = vst.msk [vmem:[#allocation3 + $0xb4] sm:$0x1] %vm337, 0
        %383 = vst.msk [vmem:[#allocation3 + $0xb8] sm:$0xf] %vm335, 0
        %384 = vst.msk [vmem:[#allocation3 + $0xbc] sm:$0x1] %vm337, 0
        %385 = vst.msk [vmem:[#allocation3 + $0xc0] sm:$0xf] %vm335, 0
        %386 = vst.msk [vmem:[#allocation3 + $0xc4] sm:$0x1] %vm337, 0
        %387 = vst.msk [vmem:[#allocation3 + $0xc8] sm:$0xf] %vm335, 0
        %388 = vst.msk [vmem:[#allocation3 + $0xcc] sm:$0x1] %vm337, 0
        %389 = vst.msk [vmem:[#allocation3 + $0xd0] sm:$0xf] %vm335, 0
        %390 = vst.msk [vmem:[#allocation3 + $0xd4] sm:$0x1] %vm337, 0
        %391 = vst.msk [vmem:[#allocation3 + $0xd8] sm:$0xf] %vm335, 0
        %392 = vst.msk [vmem:[#allocation3 + $0xdc] sm:$0x1] %vm337, 0
        %393 = vst.msk [vmem:[#allocation3 + $0xe0] sm:$0xf] %vm335, 0
        %394 = vst.msk [vmem:[#allocation3 + $0xe4] sm:$0x1] %vm337, 0
        %395 = vst.msk [vmem:[#allocation3 + $0xe8] sm:$0xf] %vm335, 0
        %396 = vst.msk [vmem:[#allocation3 + $0xec] sm:$0x1] %vm337, 0
      $region52: #{double_conv3d_dec.1} parent=47 // pred_fallthru
        _
      %p397 = scmp.le.s32.totalorder %s23, 9
      // Predicated region
      $region53: #{double_conv3d_dec.1} parent=47 // pred_check
        %p398 = pneg %p397
      $region54: #{double_conv3d_dec.1} parent=47 // pred_check_branch
        %400 = sbr.rel (%p398) target = $region56
      $region55: #{double_conv3d_dec.1} parent=47 // pred_region
        %v401 = vld [vmem:[%s314] sm:$0xf]
        %v402 = vld [vmem:[%s314 + $0x4] sm:$0x1]
        %v403 = vld [vmem:[%s314 + $0x8] sm:$0xf]
        %v404 = vld [vmem:[%s314 + $0xc] sm:$0x1]
        %v405 = vld [vmem:[%s314 + $0x10] sm:$0xf]
        %v406 = vld [vmem:[%s314 + $0x14] sm:$0x1]
        %v407 = vld [vmem:[%s314 + $0x18] sm:$0xf]
        %v408 = vld [vmem:[%s314 + $0x1c] sm:$0x1]
        %v409 = vld [vmem:[%s314 + $0x20] sm:$0xf]
        %v410 = vld [vmem:[%s314 + $0x24] sm:$0x1]
        %v411 = vld [vmem:[%s314 + $0x28] sm:$0xf]
        %v412 = vld [vmem:[%s314 + $0x2c] sm:$0x1]
        %v413 = vld [vmem:[%s314 + $0x30] sm:$0xf]
        %v414 = vld [vmem:[%s314 + $0x34] sm:$0x1]
        %v415 = vld [vmem:[%s314 + $0x38] sm:$0xf]
        %v416 = vld [vmem:[%s314 + $0x3c] sm:$0x1]
        %v417 = vld [vmem:[%s314 + $0x40] sm:$0xf]
        %v418 = vld [vmem:[%s314 + $0x44] sm:$0x1]
        %v419 = vld [vmem:[%s314 + $0x48] sm:$0xf]
        %v420 = vld [vmem:[%s314 + $0x4c] sm:$0x1]
        %p421 = scmp.lt.s32.totalorder %s23, 0
        %s422 = ssub.s32 0, %s23
        %s423 = scalar_select %p421, %s422, %s23
        %s424 = sdiv.u32.pop %s423, 3
        %s425 = srem.u32.pop %s423, 3
        %s426 = ssub.s32 0, %s425
        %s427 = scalar_select %p421, %s426, %s425
        %p428 = scmp.ne.s32.totalorder %s427, 0
        %p429 = scmp.lt.s32.totalorder %s427, 0
        %p430 = pnand %p429, %p428
        %p431 = pneg %p430
        %s432 = sadd.s32 %s427, 3
        %s433 = scalar_select %p431, %s432, %s427
        %s434 = smul.u32 %s433, 20
        %s435 = smul.addr %s434, 4
        %s436 = scalar_lea.vmem [#allocation2], %s435
        %vm437 = vcmask 27648
        %438 = vst.msk [vmem:[%s436] sm:$0xf] %vm437, %v401
        %vm439 = vcmask 24576
        %440 = vst.msk [vmem:[%s436 + $0x4] sm:$0x1] %vm439, %v402
        %441 = vst.msk [vmem:[%s436 + $0x8] sm:$0xf] %vm437, %v403
        %442 = vst.msk [vmem:[%s436 + $0xc] sm:$0x1] %vm439, %v404
        %443 = vst.msk [vmem:[%s436 + $0x10] sm:$0xf] %vm437, %v405
        %444 = vst.msk [vmem:[%s436 + $0x14] sm:$0x1] %vm439, %v406
        %445 = vst.msk [vmem:[%s436 + $0x18] sm:$0xf] %vm437, %v407
        %446 = vst.msk [vmem:[%s436 + $0x1c] sm:$0x1] %vm439, %v408
        %447 = vst.msk [vmem:[%s436 + $0x20] sm:$0xf] %vm437, %v409
        %448 = vst.msk [vmem:[%s436 + $0x24] sm:$0x1] %vm439, %v410
        %449 = vst.msk [vmem:[%s436 + $0x28] sm:$0xf] %vm437, %v411
        %450 = vst.msk [vmem:[%s436 + $0x2c] sm:$0x1] %vm439, %v412
        %451 = vst.msk [vmem:[%s436 + $0x30] sm:$0xf] %vm437, %v413
        %452 = vst.msk [vmem:[%s436 + $0x34] sm:$0x1] %vm439, %v414
        %453 = vst.msk [vmem:[%s436 + $0x38] sm:$0xf] %vm437, %v415
        %454 = vst.msk [vmem:[%s436 + $0x3c] sm:$0x1] %vm439, %v416
        %455 = vst.msk [vmem:[%s436 + $0x40] sm:$0xf] %vm437, %v417
        %456 = vst.msk [vmem:[%s436 + $0x44] sm:$0x1] %vm439, %v418
        %457 = vst.msk [vmem:[%s436 + $0x48] sm:$0xf] %vm437, %v419
        %458 = vst.msk [vmem:[%s436 + $0x4c] sm:$0x1] %vm439, %v420
      $region56: #{double_conv3d_dec.1} parent=47 // pred_fallthru
        _
      %p459 = scmp.ge.s32.totalorder %s23, 2
      %p460 = pnand %p459, %p397
      %p461 = pneg %p460
      // Predicated region
      $region57: #{double_conv3d_dec.1} parent=47 // pred_check
        _
      $region58: #{double_conv3d_dec.1} parent=47 // pred_check_branch
        %463 = sbr.rel (%p460) target = $region60
      $region59: #{double_conv3d_dec.1} parent=47 // pred_region
        %s464 = sadd.s32 %s23, 1
        %p465 = scmp.lt.s32.totalorder %s464, 0
        %s466 = ssub.s32 0, %s464
        %s467 = scalar_select %p465, %s466, %s464
        %s468 = sdiv.u32.pop %s467, 3
        %s469 = srem.u32.pop %s467, 3
        %s470 = ssub.s32 0, %s469
        %s471 = scalar_select %p465, %s470, %s469
        %p472 = scmp.ne.s32.totalorder %s471, 0
        %p473 = scmp.lt.s32.totalorder %s471, 0
        %p474 = pnand %p473, %p472
        %p475 = pneg %p474
        %s476 = sadd.s32 %s471, 3
        %s477 = scalar_select %p475, %s476, %s471
        %s478 = smul.u32 %s477, 20
        %s479 = smul.addr %s478, 4
        %s480 = scalar_lea.vmem [#allocation2], %s479
        %v481 = vld [vmem:[%s480] sm:$0xf]
        %v482 = vld [vmem:[%s480 + $0x4] sm:$0x1]
        %v483 = vld [vmem:[%s480 + $0x8] sm:$0xf]
        %v484 = vld [vmem:[%s480 + $0xc] sm:$0x1]
        %v485 = vld [vmem:[%s480 + $0x10] sm:$0xf]
        %v486 = vld [vmem:[%s480 + $0x14] sm:$0x1]
        %v487 = vld [vmem:[%s480 + $0x18] sm:$0xf]
        %v488 = vld [vmem:[%s480 + $0x1c] sm:$0x1]
        %v489 = vld [vmem:[%s480 + $0x20] sm:$0xf]
        %v490 = vld [vmem:[%s480 + $0x24] sm:$0x1]
        %v491 = vld [vmem:[%s480 + $0x28] sm:$0xf]
        %v492 = vld [vmem:[%s480 + $0x2c] sm:$0x1]
        %v493 = vld [vmem:[%s480 + $0x30] sm:$0xf]
        %v494 = vld [vmem:[%s480 + $0x34] sm:$0x1]
        %v495 = vld [vmem:[%s480 + $0x38] sm:$0xf]
        %v496 = vld [vmem:[%s480 + $0x3c] sm:$0x1]
        %v497 = vld [vmem:[%s480 + $0x40] sm:$0xf]
        %v498 = vld [vmem:[%s480 + $0x44] sm:$0x1]
        %v499 = vld [vmem:[%s480 + $0x48] sm:$0xf]
        %v500 = vld [vmem:[%s480 + $0x4c] sm:$0x1]
        %v521 = vunpack.c.l.b16 %v481
        %v522 = vunpack.c.l.b16 %v482
        %v523 = vunpack.c.l.b16 %v483
        %v524 = vunpack.c.l.b16 %v484
        %v525 = vunpack.c.l.b16 %v485
        %v526 = vunpack.c.l.b16 %v486
        %v527 = vunpack.c.l.b16 %v487
        %v528 = vunpack.c.l.b16 %v488
        %v529 = vunpack.c.l.b16 %v489
        %v530 = vunpack.c.l.b16 %v490
        %v531 = vunpack.c.l.b16 %v491
        %v532 = vunpack.c.l.b16 %v492
        %v533 = vunpack.c.l.b16 %v493
        %v534 = vunpack.c.l.b16 %v494
        %v535 = vunpack.c.l.b16 %v495
        %v536 = vunpack.c.l.b16 %v496
        %v537 = vunpack.c.l.b16 %v497
        %v538 = vunpack.c.l.b16 %v498
        %v539 = vunpack.c.l.b16 %v499
        %v540 = vunpack.c.l.b16 %v500
        %v541 = vpack.c.b16 %v522, %v521
        %v542 = vpack.c.b16 %v524, %v523
        %v543 = vpack.c.b16 %v526, %v525
        %v544 = vpack.c.b16 %v528, %v527
        %v545 = vpack.c.b16 %v530, %v529
        %v546 = vpack.c.b16 %v532, %v531
        %v547 = vpack.c.b16 %v534, %v533
        %v548 = vpack.c.b16 %v536, %v535
        %v549 = vpack.c.b16 %v538, %v537
        %v550 = vpack.c.b16 %v540, %v539
        %v552 = vshrl.u32 %v541, 16
        %v554 = vshll.u32 %v541, 16
        %v556 = vrot.slane %v554, 1
        %v557 = vor.u32 %v552, %v556
        %v559 = vshrl.u32 %v542, 16
        %v561 = vshll.u32 %v542, 16
        %v563 = vrot.slane %v561, 1
        %v564 = vor.u32 %v559, %v563
        %v566 = vshrl.u32 %v543, 16
        %v568 = vshll.u32 %v543, 16
        %v570 = vrot.slane %v568, 1
        %v571 = vor.u32 %v566, %v570
        %v573 = vshrl.u32 %v544, 16
        %v575 = vshll.u32 %v544, 16
        %v577 = vrot.slane %v575, 1
        %v578 = vor.u32 %v573, %v577
        %v580 = vshrl.u32 %v545, 16
        %v582 = vshll.u32 %v545, 16
        %v584 = vrot.slane %v582, 1
        %v585 = vor.u32 %v580, %v584
        %v587 = vshrl.u32 %v546, 16
        %v589 = vshll.u32 %v546, 16
        %v591 = vrot.slane %v589, 1
        %v592 = vor.u32 %v587, %v591
        %v594 = vshrl.u32 %v547, 16
        %v596 = vshll.u32 %v547, 16
        %v598 = vrot.slane %v596, 1
        %v599 = vor.u32 %v594, %v598
        %v601 = vshrl.u32 %v548, 16
        %v603 = vshll.u32 %v548, 16
        %v605 = vrot.slane %v603, 1
        %v606 = vor.u32 %v601, %v605
        %v608 = vshrl.u32 %v549, 16
        %v610 = vshll.u32 %v549, 16
        %v612 = vrot.slane %v610, 1
        %v613 = vor.u32 %v608, %v612
        %v615 = vshrl.u32 %v550, 16
        %v617 = vshll.u32 %v550, 16
        %v619 = vrot.slane %v617, 1
        %v620 = vor.u32 %v615, %v619
        %621 = vrot.lane.b32.xlu0 %v557, 4
        %v622 = vpop.permute.xlu0 %621
        %623 = vrot.lane.b32.xlu0 %v564, 4
        %v624 = vpop.permute.xlu0 %623
        %625 = vrot.lane.b32.xlu0 %v571, 4
        %v626 = vpop.permute.xlu0 %625
        %627 = vrot.lane.b32.xlu0 %v578, 4
        %v628 = vpop.permute.xlu0 %627
        %629 = vrot.lane.b32.xlu0 %v585, 4
        %v630 = vpop.permute.xlu0 %629
        %631 = vrot.lane.b32.xlu0 %v592, 4
        %v632 = vpop.permute.xlu0 %631
        %633 = vrot.lane.b32.xlu0 %v599, 4
        %v634 = vpop.permute.xlu0 %633
        %635 = vrot.lane.b32.xlu0 %v606, 4
        %v636 = vpop.permute.xlu0 %635
        %637 = vrot.lane.b32.xlu0 %v613, 4
        %v638 = vpop.permute.xlu0 %637
        %639 = vrot.lane.b32.xlu0 %v620, 4
        %v640 = vpop.permute.xlu0 %639
        %v641 = vrot.slane %v541, 1
        %v642 = vrot.slane %v542, 1
        %v643 = vrot.slane %v543, 1
        %v644 = vrot.slane %v544, 1
        %v645 = vrot.slane %v545, 1
        %v646 = vrot.slane %v546, 1
        %v647 = vrot.slane %v547, 1
        %v648 = vrot.slane %v548, 1
        %v649 = vrot.slane %v549, 1
        %v650 = vrot.slane %v550, 1
        %651 = vrot.lane.b32.xlu0 %v641, 8
        %v652 = vpop.permute.xlu0 %651
        %653 = vrot.lane.b32.xlu0 %v642, 8
        %v654 = vpop.permute.xlu0 %653
        %655 = vrot.lane.b32.xlu0 %v643, 8
        %v656 = vpop.permute.xlu0 %655
        %657 = vrot.lane.b32.xlu0 %v644, 8
        %v658 = vpop.permute.xlu0 %657
        %659 = vrot.lane.b32.xlu0 %v645, 8
        %v660 = vpop.permute.xlu0 %659
        %661 = vrot.lane.b32.xlu0 %v646, 8
        %v662 = vpop.permute.xlu0 %661
        %663 = vrot.lane.b32.xlu0 %v647, 8
        %v664 = vpop.permute.xlu0 %663
        %665 = vrot.lane.b32.xlu0 %v648, 8
        %v666 = vpop.permute.xlu0 %665
        %667 = vrot.lane.b32.xlu0 %v649, 8
        %v668 = vpop.permute.xlu0 %667
        %669 = vrot.lane.b32.xlu0 %v650, 8
        %v670 = vpop.permute.xlu0 %669
        %vm671 = vcmask 31744
        %v674 = vsel %vm671, %v481, %v622
        %v677 = vsel %vm671, %v483, %v624
        %v680 = vsel %vm671, %v485, %v626
        %v683 = vsel %vm671, %v487, %v628
        %v686 = vsel %vm671, %v489, %v630
        %v689 = vsel %vm671, %v491, %v632
        %v692 = vsel %vm671, %v493, %v634
        %v695 = vsel %vm671, %v495, %v636
        %v698 = vsel %vm671, %v497, %v638
        %v701 = vsel %vm671, %v499, %v640
        %vm702 = vcmask 64512
        %v704 = vsel %vm702, %v674, %v652
        %v706 = vsel %vm702, %v677, %v654
        %v708 = vsel %vm702, %v680, %v656
        %v710 = vsel %vm702, %v683, %v658
        %v712 = vsel %vm702, %v686, %v660
        %v714 = vsel %vm702, %v689, %v662
        %v716 = vsel %vm702, %v692, %v664
        %v718 = vsel %vm702, %v695, %v666
        %v720 = vsel %vm702, %v698, %v668
        %v722 = vsel %vm702, %v701, %v670
        %v723 = vld [vmem:[%s1] sm:$0xf]
        %v724 = vld [vmem:[%s1 + $0x4] sm:$0x3]
        %s725 = scalar_lea.vmem %s1, 8
        %v726 = vld [vmem:[%s725] sm:$0xf]
        %v727 = vld [vmem:[%s725 + $0x4] sm:$0x3]
        %v736 = vunpack.c.l.b16 %v706
        %v737 = vunpack.c.l.b16 %v708
        %v738 = vunpack.c.l.b16 %v710
        %v739 = vunpack.c.l.b16 %v712
        %v740 = vunpack.c.l.b16 %v714
        %v741 = vunpack.c.l.b16 %v716
        %v742 = vunpack.c.l.b16 %v718
        %v743 = vunpack.c.l.b16 %v720
        %v744 = vpack.c.b16 %v737, %v736
        %v745 = vpack.c.b16 %v739, %v738
        %v746 = vpack.c.b16 %v741, %v740
        %v747 = vpack.c.b16 %v743, %v742
        %v750 = vunpack.c.l.b16 %v726
        %v751 = vunpack.c.l.b16 %v727
        %v752 = vpack.c.b16 %v751, %v750
        %vm753 = vcmask 97280
        %v755 = vsel %vm753, %v744, 0
        %v758 = vsel %vm753, %v745, 0
        %v761 = vsel %vm753, %v746, 0
        %v764 = vsel %vm753, %v747, 0
        %vm766 = vcmask 1045504
        %v768 = vsel %vm766, %v752, 0
        %770 = vmatprep.subr.bf16.mxu0 0
        %771 = vmatpush1.bf16.msra.mxu0 %v768
        %772 = vmatprep.subr.bf16.mxu0 0
        %773 = vmatpush1.bf16.msra.mxu0 0
        %774 = vmatprep.subr.bf16.mxu0 0
        %775 = vmatpush1.bf16.msra.mxu0 0
        %776 = vmatprep.subr.bf16.mxu0 0
        %777 = vmatpush1.bf16.msra.mxu0 0
        %778 = vmatprep.subr.bf16.mxu0 0
        %779 = vmatpush1.bf16.msra.mxu0 0
        %780 = vmatprep.subr.bf16.mxu0 0
        %781 = vmatpush1.bf16.msra.mxu0 0
        %782 = vmatprep.subr.bf16.mxu0 0
        %783 = vmatpush1.bf16.msra.mxu0 0
        %784 = vmatprep.subr.bf16.mxu0 0
        %785 = vmatpush1.bf16.msra.mxu0 0
        %786 = vmatprep.subr.bf16.mxu0 0
        %787 = vmatpush1.bf16.msra.mxu0 0
        %788 = vmatprep.subr.bf16.mxu0 0
        %789 = vmatpush1.bf16.msra.mxu0 0
        %790 = vmatprep.subr.bf16.mxu0 0
        %791 = vmatpush1.bf16.msra.mxu0 0
        %792 = vmatprep.subr.bf16.mxu0 0
        %793 = vmatpush1.bf16.msra.mxu0 0
        %794 = vmatprep.subr.bf16.mxu0 0
        %795 = vmatpush1.bf16.msra.mxu0 0
        %796 = vmatprep.subr.bf16.mxu0 0
        %797 = vmatpush1.bf16.msra.mxu0 0
        %798 = vmatprep.subr.bf16.mxu0 0
        %799 = vmatpush1.bf16.msra.mxu0 0
        %800 = vmatprep.subr.bf16.mxu0 0
        %801 = vmatpush1.bf16.msra.mxu0 0
        %802 = vmatprep.mubr.bf16.mxu0 0
        %803 = vmatmul.mubr.bf16.gmra.mrb[0].mxu0 %v755
        %v804 = vpop.f32.mrb[0].mxu0
        %v805 = vadd.f32 0.0, %v804
        %v806 = vpop.f32.mrb[0].mxu0
        %v807 = vpop.f32.mrb[0].mxu0
        %v808 = vadd.f32 0.0, %v807
        %v809 = vpop.f32.mrb[0].mxu0
        %810 = vmatprep.mubr.bf16.mxu0 0
        %811 = vmatmul.mubr.bf16.gmra.mrb[0].mxu0 %v758
        %v812 = vpop.f32.mrb[0].mxu0
        %v813 = vadd.f32 0.0, %v812
        %v814 = vpop.f32.mrb[0].mxu0
        %v815 = vpop.f32.mrb[0].mxu0
        %v816 = vadd.f32 0.0, %v815
        %v817 = vpop.f32.mrb[0].mxu0
        %818 = vmatprep.mubr.bf16.mxu0 0
        %819 = vmatmul.mubr.bf16.gmra.mrb[0].mxu0 %v761
        %v820 = vpop.f32.mrb[0].mxu0
        %v821 = vadd.f32 0.0, %v820
        %v822 = vpop.f32.mrb[0].mxu0
        %v823 = vpop.f32.mrb[0].mxu0
        %v824 = vadd.f32 0.0, %v823
        %v825 = vpop.f32.mrb[0].mxu0
        %826 = vmatprep.mubr.bf16.mxu0 0
        %827 = vmatmul.mubr.bf16.gmra.mrb[0].mxu0 %v764
        %v828 = vpop.f32.mrb[0].mxu0
        %v829 = vadd.f32 0.0, %v828
        %v830 = vpop.f32.mrb[0].mxu0
        %v831 = vpop.f32.mrb[0].mxu0
        %v832 = vadd.f32 0.0, %v831
        %v833 = vpop.f32.mrb[0].mxu0
        %834 = vdwg.mxu0
        %v836 = vunpack.c.l.b16 %v704
        %v837 = vpack.c.b16 %v736, %v836
        %v838 = vpack.c.b16 %v738, %v737
        %v839 = vpack.c.b16 %v740, %v739
        %v840 = vpack.c.b16 %v742, %v741
        %v843 = vunpack.c.l.b16 %v723
        %v844 = vunpack.c.l.b16 %v724
        %v845 = vpack.c.b16 %v844, %v843
        %v847 = vsel %vm753, %v837, 0
        %v850 = vsel %vm753, %v838, 0
        %v853 = vsel %vm753, %v839, 0
        %v856 = vsel %vm753, %v840, 0
        %v859 = vsel %vm766, %v845, 0
        %861 = vmatprep.subr.bf16.mxu0 0
        %862 = vmatpush1.bf16.msra.mxu0 %v859
        %863 = vmatprep.subr.bf16.mxu0 0
        %864 = vmatpush1.bf16.msra.mxu0 0
        %865 = vmatprep.subr.bf16.mxu0 0
        %866 = vmatpush1.bf16.msra.mxu0 0
        %867 = vmatprep.subr.bf16.mxu0 0
        %868 = vmatpush1.bf16.msra.mxu0 0
        %869 = vmatprep.subr.bf16.mxu0 0
        %870 = vmatpush1.bf16.msra.mxu0 0
        %871 = vmatprep.subr.bf16.mxu0 0
        %872 = vmatpush1.bf16.msra.mxu0 0
        %873 = vmatprep.subr.bf16.mxu0 0
        %874 = vmatpush1.bf16.msra.mxu0 0
        %875 = vmatprep.subr.bf16.mxu0 0
        %876 = vmatpush1.bf16.msra.mxu0 0
        %877 = vmatprep.subr.bf16.mxu0 0
        %878 = vmatpush1.bf16.msra.mxu0 0
        %879 = vmatprep.subr.bf16.mxu0 0
        %880 = vmatpush1.bf16.msra.mxu0 0
        %881 = vmatprep.subr.bf16.mxu0 0
        %882 = vmatpush1.bf16.msra.mxu0 0
        %883 = vmatprep.subr.bf16.mxu0 0
        %884 = vmatpush1.bf16.msra.mxu0 0
        %885 = vmatprep.subr.bf16.mxu0 0
        %886 = vmatpush1.bf16.msra.mxu0 0
        %887 = vmatprep.subr.bf16.mxu0 0
        %888 = vmatpush1.bf16.msra.mxu0 0
        %889 = vmatprep.subr.bf16.mxu0 0
        %890 = vmatpush1.bf16.msra.mxu0 0
        %891 = vmatprep.subr.bf16.mxu0 0
        %892 = vmatpush1.bf16.msra.mxu0 0
        %893 = vmatprep.mubr.bf16.mxu0 0
        %894 = vmatmul.mubr.bf16.gmra.mrb[0].mxu0 %v847
        %v895 = vpop.f32.mrb[0].mxu0
        %v896 = vadd.f32 %v805, %v895
        %v897 = vpop.f32.mrb[0].mxu0
        %v898 = vpop.f32.mrb[0].mxu0
        %v899 = vadd.f32 %v808, %v898
        %v900 = vpop.f32.mrb[0].mxu0
        %901 = vmatprep.mubr.bf16.mxu0 0
        %902 = vmatmul.mubr.bf16.gmra.mrb[0].mxu0 %v850
        %v903 = vpop.f32.mrb[0].mxu0
        %v904 = vadd.f32 %v813, %v903
        %v905 = vpop.f32.mrb[0].mxu0
        %v906 = vpop.f32.mrb[0].mxu0
        %v907 = vadd.f32 %v816, %v906
        %v908 = vpop.f32.mrb[0].mxu0
        %909 = vmatprep.mubr.bf16.mxu0 0
        %910 = vmatmul.mubr.bf16.gmra.mrb[0].mxu0 %v853
        %v911 = vpop.f32.mrb[0].mxu0
        %v912 = vadd.f32 %v821, %v911
        %v913 = vpop.f32.mrb[0].mxu0
        %v914 = vpop.f32.mrb[0].mxu0
        %v915 = vadd.f32 %v824, %v914
        %v916 = vpop.f32.mrb[0].mxu0
        %917 = vmatprep.mubr.bf16.mxu0 0
        %918 = vmatmul.mubr.bf16.gmra.mrb[0].mxu0 %v856
        %v919 = vpop.f32.mrb[0].mxu0
        %v920 = vadd.f32 %v829, %v919
        %v921 = vpop.f32.mrb[0].mxu0
        %v922 = vpop.f32.mrb[0].mxu0
        %v923 = vadd.f32 %v832, %v922
        %v924 = vpop.f32.mrb[0].mxu0
        %925 = vdwg.mxu0
        %s926 = scalar_lea.vmem %s1, 16
        %v927 = vld [vmem:[%s926] sm:$0xf]
        %v928 = vld [vmem:[%s926 + $0x4] sm:$0x3]
        %v930 = vunpack.c.l.b16 %v722
        %v931 = vpack.c.b16 %v930, %v743
        %v934 = vunpack.c.l.b16 %v927
        %v935 = vunpack.c.l.b16 %v928
        %v936 = vpack.c.b16 %v935, %v934
        %v938 = vsel %vm753, %v931, 0
        %v941 = vsel %vm766, %v936, 0
        %943 = vmatprep.subr.bf16.mxu0 0
        %944 = vmatpush1.bf16.msra.mxu0 %v941
        %945 = vmatprep.subr.bf16.mxu0 0
        %946 = vmatpush1.bf16.msra.mxu0 0
        %947 = vmatprep.subr.bf16.mxu0 0
        %948 = vmatpush1.bf16.msra.mxu0 0
        %949 = vmatprep.subr.bf16.mxu0 0
        %950 = vmatpush1.bf16.msra.mxu0 0
        %951 = vmatprep.subr.bf16.mxu0 0
        %952 = vmatpush1.bf16.msra.mxu0 0
        %953 = vmatprep.subr.bf16.mxu0 0
        %954 = vmatpush1.bf16.msra.mxu0 0
        %955 = vmatprep.subr.bf16.mxu0 0
        %956 = vmatpush1.bf16.msra.mxu0 0
        %957 = vmatprep.subr.bf16.mxu0 0
        %958 = vmatpush1.bf16.msra.mxu0 0
        %959 = vmatprep.subr.bf16.mxu0 0
        %960 = vmatpush1.bf16.msra.mxu0 0
        %961 = vmatprep.subr.bf16.mxu0 0
        %962 = vmatpush1.bf16.msra.mxu0 0
        %963 = vmatprep.subr.bf16.mxu0 0
        %964 = vmatpush1.bf16.msra.mxu0 0
        %965 = vmatprep.subr.bf16.mxu0 0
        %966 = vmatpush1.bf16.msra.mxu0 0
        %967 = vmatprep.subr.bf16.mxu0 0
        %968 = vmatpush1.bf16.msra.mxu0 0
        %969 = vmatprep.subr.bf16.mxu0 0
        %970 = vmatpush1.bf16.msra.mxu0 0
        %971 = vmatprep.subr.bf16.mxu0 0
        %972 = vmatpush1.bf16.msra.mxu0 0
        %973 = vmatprep.subr.bf16.mxu0 0
        %974 = vmatpush1.bf16.msra.mxu0 0
        %975 = vmatprep.mubr.bf16.mxu0 0
        %976 = vmatmul.mubr.bf16.gmra.mrb[0].mxu0 %v850
        %v977 = vpop.f32.mrb[0].mxu0
        %v978 = vadd.f32 0.0, %v977
        %v979 = vpop.f32.mrb[0].mxu0
        %v980 = vpop.f32.mrb[0].mxu0
        %v981 = vadd.f32 0.0, %v980
        %v982 = vpop.f32.mrb[0].mxu0
        %983 = vmatprep.mubr.bf16.mxu0 0
        %984 = vmatmul.mubr.bf16.gmra.mrb[0].mxu0 %v853
        %v985 = vpop.f32.mrb[0].mxu0
        %v986 = vadd.f32 0.0, %v985
        %v987 = vpop.f32.mrb[0].mxu0
        %v988 = vpop.f32.mrb[0].mxu0
        %v989 = vadd.f32 0.0, %v988
        %v990 = vpop.f32.mrb[0].mxu0
        %991 = vmatprep.mubr.bf16.mxu0 0
        %992 = vmatmul.mubr.bf16.gmra.mrb[0].mxu0 %v856
        %v993 = vpop.f32.mrb[0].mxu0
        %v994 = vadd.f32 0.0, %v993
        %v995 = vpop.f32.mrb[0].mxu0
        %v996 = vpop.f32.mrb[0].mxu0
        %v997 = vadd.f32 0.0, %v996
        %v998 = vpop.f32.mrb[0].mxu0
        %999 = vmatprep.mubr.bf16.mxu0 0
        %1000 = vmatmul.mubr.bf16.gmra.mrb[0].mxu0 %v938
        %v1001 = vpop.f32.mrb[0].mxu0
        %v1002 = vadd.f32 0.0, %v1001
        %v1003 = vpop.f32.mrb[0].mxu0
        %v1004 = vpop.f32.mrb[0].mxu0
        %v1005 = vadd.f32 0.0, %v1004
        %v1006 = vpop.f32.mrb[0].mxu0
        %1007 = vdwg.mxu0
        %v1008 = vadd.f32 %v896, %v978
        %v1009 = vadd.f32 %v899, %v981
        %v1010 = vadd.f32 %v904, %v986
        %v1011 = vadd.f32 %v907, %v989
        %v1012 = vadd.f32 %v912, %v994
        %v1013 = vadd.f32 %v915, %v997
        %v1014 = vadd.f32 %v920, %v1002
        %v1015 = vadd.f32 %v923, %v1005
        %s1016 = sadd.s32 %s23, 2
        %p1017 = scmp.lt.s32.totalorder %s1016, 0
        %s1018 = ssub.s32 0, %s1016
        %s1019 = scalar_select %p1017, %s1018, %s1016
        %s1020 = sdiv.u32.pop %s1019, 3
        %s1021 = srem.u32.pop %s1019, 3
        %s1022 = ssub.s32 0, %s1021
        %s1023 = scalar_select %p1017, %s1022, %s1021
        %p1024 = scmp.ne.s32.totalorder %s1023, 0
        %p1025 = scmp.lt.s32.totalorder %s1023, 0
        %p1026 = pnand %p1025, %p1024
        %p1027 = pneg %p1026
        %s1028 = sadd.s32 %s1023, 3
        %s1029 = scalar_select %p1027, %s1028, %s1023
        %s1030 = smul.u32 %s1029, 20
        %s1031 = smul.addr %s1030, 4
        %s1032 = scalar_lea.vmem [#allocation2], %s1031
        %v1033 = vld [vmem:[%s1032] sm:$0xf]
        %v1034 = vld [vmem:[%s1032 + $0x4] sm:$0x1]
        %v1035 = vld [vmem:[%s1032 + $0x8] sm:$0xf]
        %v1036 = vld [vmem:[%s1032 + $0xc] sm:$0x1]
        %v1037 = vld [vmem:[%s1032 + $0x10] sm:$0xf]
        %v1038 = vld [vmem:[%s1032 + $0x14] sm:$0x1]
        %v1039 = vld [vmem:[%s1032 + $0x18] sm:$0xf]
        %v1040 = vld [vmem:[%s1032 + $0x1c] sm:$0x1]
        %v1041 = vld [vmem:[%s1032 + $0x20] sm:$0xf]
        %v1042 = vld [vmem:[%s1032 + $0x24] sm:$0x1]
        %v1043 = vld [vmem:[%s1032 + $0x28] sm:$0xf]
        %v1044 = vld [vmem:[%s1032 + $0x2c] sm:$0x1]
        %v1045 = vld [vmem:[%s1032 + $0x30] sm:$0xf]
        %v1046 = vld [vmem:[%s1032 + $0x34] sm:$0x1]
        %v1047 = vld [vmem:[%s1032 + $0x38] sm:$0xf]
        %v1048 = vld [vmem:[%s1032 + $0x3c] sm:$0x1]
        %v1049 = vld [vmem:[%s1032 + $0x40] sm:$0xf]
        %v1050 = vld [vmem:[%s1032 + $0x44] sm:$0x1]
        %v1051 = vld [vmem:[%s1032 + $0x48] sm:$0xf]
        %v1052 = vld [vmem:[%s1032 + $0x4c] sm:$0x1]
        %v1073 = vunpack.c.l.b16 %v1033
        %v1074 = vunpack.c.l.b16 %v1034
        %v1075 = vunpack.c.l.b16 %v1035
        %v1076 = vunpack.c.l.b16 %v1036
        %v1077 = vunpack.c.l.b16 %v1037
        %v1078 = vunpack.c.l.b16 %v1038
        %v1079 = vunpack.c.l.b16 %v1039
        %v1080 = vunpack.c.l.b16 %v1040
        %v1081 = vunpack.c.l.b16 %v1041
        %v1082 = vunpack.c.l.b16 %v1042
        %v1083 = vunpack.c.l.b16 %v1043
        %v1084 = vunpack.c.l.b16 %v1044
        %v1085 = vunpack.c.l.b16 %v1045
        %v1086 = vunpack.c.l.b16 %v1046
        %v1087 = vunpack.c.l.b16 %v1047
        %v1088 = vunpack.c.l.b16 %v1048
        %v1089 = vunpack.c.l.b16 %v1049
        %v1090 = vunpack.c.l.b16 %v1050
        %v1091 = vunpack.c.l.b16 %v1051
        %v1092 = vunpack.c.l.b16 %v1052
        %v1093 = vpack.c.b16 %v1074, %v1073
        %v1094 = vpack.c.b16 %v1076, %v1075
        %v1095 = vpack.c.b16 %v1078, %v1077
        %v1096 = vpack.c.b16 %v1080, %v1079
        %v1097 = vpack.c.b16 %v1082, %v1081
        %v1098 = vpack.c.b16 %v1084, %v1083
        %v1099 = vpack.c.b16 %v1086, %v1085
        %v1100 = vpack.c.b16 %v1088, %v1087
        %v1101 = vpack.c.b16 %v1090, %v1089
        %v1102 = vpack.c.b16 %v1092, %v1091
        %v1104 = vshrl.u32 %v1093, 16
        %v1106 = vshll.u32 %v1093, 16
        %v1108 = vrot.slane %v1106, 1
        %v1109 = vor.u32 %v1104, %v1108
        %v1111 = vshrl.u32 %v1094, 16
        %v1113 = vshll.u32 %v1094, 16
        %v1115 = vrot.slane %v1113, 1
        %v1116 = vor.u32 %v1111, %v1115
        %v1118 = vshrl.u32 %v1095, 16
        %v1120 = vshll.u32 %v1095, 16
        %v1122 = vrot.slane %v1120, 1
        %v1123 = vor.u32 %v1118, %v1122
        %v1125 = vshrl.u32 %v1096, 16
        %v1127 = vshll.u32 %v1096, 16
        %v1129 = vrot.slane %v1127, 1
        %v1130 = vor.u32 %v1125, %v1129
        %v1132 = vshrl.u32 %v1097, 16
        %v1134 = vshll.u32 %v1097, 16
        %v1136 = vrot.slane %v1134, 1
        %v1137 = vor.u32 %v1132, %v1136
        %v1139 = vshrl.u32 %v1098, 16
        %v1141 = vshll.u32 %v1098, 16
        %v1143 = vrot.slane %v1141, 1
        %v1144 = vor.u32 %v1139, %v1143
        %v1146 = vshrl.u32 %v1099, 16
        %v1148 = vshll.u32 %v1099, 16
        %v1150 = vrot.slane %v1148, 1
        %v1151 = vor.u32 %v1146, %v1150
        %v1153 = vshrl.u32 %v1100, 16
        %v1155 = vshll.u32 %v1100, 16
        %v1157 = vrot.slane %v1155, 1
        %v1158 = vor.u32 %v1153, %v1157
        %v1160 = vshrl.u32 %v1101, 16
        %v1162 = vshll.u32 %v1101, 16
        %v1164 = vrot.slane %v1162, 1
        %v1165 = vor.u32 %v1160, %v1164
        %v1167 = vshrl.u32 %v1102, 16
        %v1169 = vshll.u32 %v1102, 16
        %v1171 = vrot.slane %v1169, 1
        %v1172 = vor.u32 %v1167, %v1171
        %1173 = vrot.lane.b32.xlu0 %v1109, 4
        %v1174 = vpop.permute.xlu0 %1173
        %1175 = vrot.lane.b32.xlu0 %v1116, 4
        %v1176 = vpop.permute.xlu0 %1175
        %1177 = vrot.lane.b32.xlu0 %v1123, 4
        %v1178 = vpop.permute.xlu0 %1177
        %1179 = vrot.lane.b32.xlu0 %v1130, 4
        %v1180 = vpop.permute.xlu0 %1179
        %1181 = vrot.lane.b32.xlu0 %v1137, 4
        %v1182 = vpop.permute.xlu0 %1181
        %1183 = vrot.lane.b32.xlu0 %v1144, 4
        %v1184 = vpop.permute.xlu0 %1183
        %1185 = vrot.lane.b32.xlu0 %v1151, 4
        %v1186 = vpop.permute.xlu0 %1185
        %1187 = vrot.lane.b32.xlu0 %v1158, 4
        %v1188 = vpop.permute.xlu0 %1187
        %1189 = vrot.lane.b32.xlu0 %v1165, 4
        %v1190 = vpop.permute.xlu0 %1189
        %1191 = vrot.lane.b32.xlu0 %v1172, 4
        %v1192 = vpop.permute.xlu0 %1191
        %v1193 = vrot.slane %v1093, 1
        %v1194 = vrot.slane %v1094, 1
        %v1195 = vrot.slane %v1095, 1
        %v1196 = vrot.slane %v1096, 1
        %v1197 = vrot.slane %v1097, 1
        %v1198 = vrot.slane %v1098, 1
        %v1199 = vrot.slane %v1099, 1
        %v1200 = vrot.slane %v1100, 1
        %v1201 = vrot.slane %v1101, 1
        %v1202 = vrot.slane %v1102, 1
        %1203 = vrot.lane.b32.xlu0 %v1193, 8
        %v1204 = vpop.permute.xlu0 %1203
        %1205 = vrot.lane.b32.xlu0 %v1194, 8
        %v1206 = vpop.permute.xlu0 %1205
        %1207 = vrot.lane.b32.xlu0 %v1195, 8
        %v1208 = vpop.permute.xlu0 %1207
        %1209 = vrot.lane.b32.xlu0 %v1196, 8
        %v1210 = vpop.permute.xlu0 %1209
        %1211 = vrot.lane.b32.xlu0 %v1197, 8
        %v1212 = vpop.permute.xlu0 %1211
        %1213 = vrot.lane.b32.xlu0 %v1198, 8
        %v1214 = vpop.permute.xlu0 %1213
        %1215 = vrot.lane.b32.xlu0 %v1199, 8
        %v1216 = vpop.permute.xlu0 %1215
        %1217 = vrot.lane.b32.xlu0 %v1200, 8
        %v1218 = vpop.permute.xlu0 %1217
        %1219 = vrot.lane.b32.xlu0 %v1201, 8
        %v1220 = vpop.permute.xlu0 %1219
        %1221 = vrot.lane.b32.xlu0 %v1202, 8
        %v1222 = vpop.permute.xlu0 %1221
        %v1225 = vsel %vm671, %v1033, %v1174
        %v1228 = vsel %vm671, %v1035, %v1176
        %v1231 = vsel %vm671, %v1037, %v1178
        %v1234 = vsel %vm671, %v1039, %v1180
        %v1237 = vsel %vm671, %v1041, %v1182
        %v1240 = vsel %vm671, %v1043, %v1184
        %v1243 = vsel %vm671, %v1045, %v1186
        %v1246 = vsel %vm671, %v1047, %v1188
        %v1249 = vsel %vm671, %v1049, %v1190
        %v1252 = vsel %vm671, %v1051, %v1192
        %v1254 = vsel %vm702, %v1225, %v1204
        %v1256 = vsel %vm702, %v1228, %v1206
        %v1258 = vsel %vm702, %v1231, %v1208
        %v1260 = vsel %vm702, %v1234, %v1210
        %v1262 = vsel %vm702, %v1237, %v1212
        %v1264 = vsel %vm702, %v1240, %v1214
        %v1266 = vsel %vm702, %v1243, %v1216
        %v1268 = vsel %vm702, %v1246, %v1218
        %v1270 = vsel %vm702, %v1249, %v1220
        %v1272 = vsel %vm702, %v1252, %v1222
        %s1273 = scalar_lea.vmem %s1, 24
        %v1274 = vld [vmem:[%s1273] sm:$0xf]
        %v1275 = vld [vmem:[%s1273 + $0x4] sm:$0x3]
        %s1276 = scalar_lea.vmem %s1, 32
        %v1277 = vld [vmem:[%s1276] sm:$0xf]
        %v1278 = vld [vmem:[%s1276 + $0x4] sm:$0x3]
        %v1287 = vunpack.c.l.b16 %v1256
        %v1288 = vunpack.c.l.b16 %v1258
        %v1289 = vunpack.c.l.b16 %v1260
        %v1290 = vunpack.c.l.b16 %v1262
        %v1291 = vunpack.c.l.b16 %v1264
        %v1292 = vunpack.c.l.b16 %v1266
        %v1293 = vunpack.c.l.b16 %v1268
        %v1294 = vunpack.c.l.b16 %v1270
        %v1295 = vpack.c.b16 %v1288, %v1287
        %v1296 = vpack.c.b16 %v1290, %v1289
        %v1297 = vpack.c.b16 %v1292, %v1291
        %v1298 = vpack.c.b16 %v1294, %v1293
        %v1301 = vunpack.c.l.b16 %v1277
        %v1302 = vunpack.c.l.b16 %v1278
        %v1303 = vpack.c.b16 %v1302, %v1301
        %v1305 = vsel %vm753, %v1295, 0
        %v1308 = vsel %vm753, %v1296, 0
        %v1311 = vsel %vm753, %v1297, 0
        %v1314 = vsel %vm753, %v1298, 0
        %v1317 = vsel %vm766, %v1303, 0
        %1319 = vmatprep.subr.bf16.mxu0 0
        %1320 = vmatpush1.bf16.msra.mxu0 %v1317
        %1321 = vmatprep.subr.bf16.mxu0 0
        %1322 = vmatpush1.bf16.msra.mxu0 0
        %1323 = vmatprep.subr.bf16.mxu0 0
        %1324 = vmatpush1.bf16.msra.mxu0 0
        %1325 = vmatprep.subr.bf16.mxu0 0
        %1326 = vmatpush1.bf16.msra.mxu0 0
        %1327 = vmatprep.subr.bf16.mxu0 0
        %1328 = vmatpush1.bf16.msra.mxu0 0
        %1329 = vmatprep.subr.bf16.mxu0 0
        %1330 = vmatpush1.bf16.msra.mxu0 0
        %1331 = vmatprep.subr.bf16.mxu0 0
        %1332 = vmatpush1.bf16.msra.mxu0 0
        %1333 = vmatprep.subr.bf16.mxu0 0
        %1334 = vmatpush1.bf16.msra.mxu0 0
        %1335 = vmatprep.subr.bf16.mxu0 0
        %1336 = vmatpush1.bf16.msra.mxu0 0
        %1337 = vmatprep.subr.bf16.mxu0 0
        %1338 = vmatpush1.bf16.msra.mxu0 0
        %1339 = vmatprep.subr.bf16.mxu0 0
        %1340 = vmatpush1.bf16.msra.mxu0 0
        %1341 = vmatprep.subr.bf16.mxu0 0
        %1342 = vmatpush1.bf16.msra.mxu0 0
        %1343 = vmatprep.subr.bf16.mxu0 0
        %1344 = vmatpush1.bf16.msra.mxu0 0
        %1345 = vmatprep.subr.bf16.mxu0 0
        %1346 = vmatpush1.bf16.msra.mxu0 0
        %1347 = vmatprep.subr.bf16.mxu0 0
        %1348 = vmatpush1.bf16.msra.mxu0 0
        %1349 = vmatprep.subr.bf16.mxu0 0
        %1350 = vmatpush1.bf16.msra.mxu0 0
        %1351 = vmatprep.mubr.bf16.mxu0 0
        %1352 = vmatmul.mubr.bf16.gmra.mrb[0].mxu0 %v1305
        %v1353 = vpop.f32.mrb[0].mxu0
        %v1354 = vadd.f32 0.0, %v1353
        %v1355 = vpop.f32.mrb[0].mxu0
        %v1356 = vpop.f32.mrb[0].mxu0
        %v1357 = vadd.f32 0.0, %v1356
        %v1358 = vpop.f32.mrb[0].mxu0
        %1359 = vmatprep.mubr.bf16.mxu0 0
        %1360 = vmatmul.mubr.bf16.gmra.mrb[0].mxu0 %v1308
        %v1361 = vpop.f32.mrb[0].mxu0
        %v1362 = vadd.f32 0.0, %v1361
        %v1363 = vpop.f32.mrb[0].mxu0
        %v1364 = vpop.f32.mrb[0].mxu0
        %v1365 = vadd.f32 0.0, %v1364
        %v1366 = vpop.f32.mrb[0].mxu0
        %1367 = vmatprep.mubr.bf16.mxu0 0
        %1368 = vmatmul.mubr.bf16.gmra.mrb[0].mxu0 %v1311
        %v1369 = vpop.f32.mrb[0].mxu0
        %v1370 = vadd.f32 0.0, %v1369
        %v1371 = vpop.f32.mrb[0].mxu0
        %v1372 = vpop.f32.mrb[0].mxu0
        %v1373 = vadd.f32 0.0, %v1372
        %v1374 = vpop.f32.mrb[0].mxu0
        %1375 = vmatprep.mubr.bf16.mxu0 0
        %1376 = vmatmul.mubr.bf16.gmra.mrb[0].mxu0 %v1314
        %v1377 = vpop.f32.mrb[0].mxu0
        %v1378 = vadd.f32 0.0, %v1377
        %v1379 = vpop.f32.mrb[0].mxu0
        %v1380 = vpop.f32.mrb[0].mxu0
        %v1381 = vadd.f32 0.0, %v1380
        %v1382 = vpop.f32.mrb[0].mxu0
        %1383 = vdwg.mxu0
        %v1385 = vunpack.c.l.b16 %v1254
        %v1386 = vpack.c.b16 %v1287, %v1385
        %v1387 = vpack.c.b16 %v1289, %v1288
        %v1388 = vpack.c.b16 %v1291, %v1290
        %v1389 = vpack.c.b16 %v1293, %v1292
        %v1392 = vunpack.c.l.b16 %v1274
        %v1393 = vunpack.c.l.b16 %v1275
        %v1394 = vpack.c.b16 %v1393, %v1392
        %v1396 = vsel %vm753, %v1386, 0
        %v1399 = vsel %vm753, %v1387, 0
        %v1402 = vsel %vm753, %v1388, 0
        %v1405 = vsel %vm753, %v1389, 0
        %v1408 = vsel %vm766, %v1394, 0
        %1410 = vmatprep.subr.bf16.mxu0 0
        %1411 = vmatpush1.bf16.msra.mxu0 %v1408
        %1412 = vmatprep.subr.bf16.mxu0 0
        %1413 = vmatpush1.bf16.msra.mxu0 0
        %1414 = vmatprep.subr.bf16.mxu0 0
        %1415 = vmatpush1.bf16.msra.mxu0 0
        %1416 = vmatprep.subr.bf16.mxu0 0
        %1417 = vmatpush1.bf16.msra.mxu0 0
        %1418 = vmatprep.subr.bf16.mxu0 0
        %1419 = vmatpush1.bf16.msra.mxu0 0
        %1420 = vmatprep.subr.bf16.mxu0 0
        %1421 = vmatpush1.bf16.msra.mxu0 0
        %1422 = vmatprep.subr.bf16.mxu0 0
        %1423 = vmatpush1.bf16.msra.mxu0 0
        %1424 = vmatprep.subr.bf16.mxu0 0
        %1425 = vmatpush1.bf16.msra.mxu0 0
        %1426 = vmatprep.subr.bf16.mxu0 0
        %1427 = vmatpush1.bf16.msra.mxu0 0
        %1428 = vmatprep.subr.bf16.mxu0 0
        %1429 = vmatpush1.bf16.msra.mxu0 0
        %1430 = vmatprep.subr.bf16.mxu0 0
        %1431 = vmatpush1.bf16.msra.mxu0 0
        %1432 = vmatprep.subr.bf16.mxu0 0
        %1433 = vmatpush1.bf16.msra.mxu0 0
        %1434 = vmatprep.subr.bf16.mxu0 0
        %1435 = vmatpush1.bf16.msra.mxu0 0
        %1436 = vmatprep.subr.bf16.mxu0 0
        %1437 = vmatpush1.bf16.msra.mxu0 0
        %1438 = vmatprep.subr.bf16.mxu0 0
        %1439 = vmatpush1.bf16.msra.mxu0 0
        %1440 = vmatprep.subr.bf16.mxu0 0
        %1441 = vmatpush1.bf16.msra.mxu0 0
        %1442 = vmatprep.mubr.bf16.mxu0 0
        %1443 = vmatmul.mubr.bf16.gmra.mrb[0].mxu0 %v1396
        %v1444 = vpop.f32.mrb[0].mxu0
        %v1445 = vadd.f32 %v1354, %v1444
        %v1446 = vpop.f32.mrb[0].mxu0
        %v1447 = vpop.f32.mrb[0].mxu0
        %v1448 = vadd.f32 %v1357, %v1447
        %v1449 = vpop.f32.mrb[0].mxu0
        %1450 = vmatprep.mubr.bf16.mxu0 0
        %1451 = vmatmul.mubr.bf16.gmra.mrb[0].mxu0 %v1399
        %v1452 = vpop.f32.mrb[0].mxu0
        %v1453 = vadd.f32 %v1362, %v1452
        %v1454 = vpop.f32.mrb[0].mxu0
        %v1455 = vpop.f32.mrb[0].mxu0
        %v1456 = vadd.f32 %v1365, %v1455
        %v1457 = vpop.f32.mrb[0].mxu0
        %1458 = vmatprep.mubr.bf16.mxu0 0
        %1459 = vmatmul.mubr.bf16.gmra.mrb[0].mxu0 %v1402
        %v1460 = vpop.f32.mrb[0].mxu0
        %v1461 = vadd.f32 %v1370, %v1460
        %v1462 = vpop.f32.mrb[0].mxu0
        %v1463 = vpop.f32.mrb[0].mxu0
        %v1464 = vadd.f32 %v1373, %v1463
        %v1465 = vpop.f32.mrb[0].mxu0
        %1466 = vmatprep.mubr.bf16.mxu0 0
        %1467 = vmatmul.mubr.bf16.gmra.mrb[0].mxu0 %v1405
        %v1468 = vpop.f32.mrb[0].mxu0
        %v1469 = vadd.f32 %v1378, %v1468
        %v1470 = vpop.f32.mrb[0].mxu0
        %v1471 = vpop.f32.mrb[0].mxu0
        %v1472 = vadd.f32 %v1381, %v1471
        %v1473 = vpop.f32.mrb[0].mxu0
        %1474 = vdwg.mxu0
        %s1475 = scalar_lea.vmem %s1, 40
        %v1476 = vld [vmem:[%s1475] sm:$0xf]
        %v1477 = vld [vmem:[%s1475 + $0x4] sm:$0x3]
        %v1479 = vunpack.c.l.b16 %v1272
        %v1480 = vpack.c.b16 %v1479, %v1294
        %v1483 = vunpack.c.l.b16 %v1476
        %v1484 = vunpack.c.l.b16 %v1477
        %v1485 = vpack.c.b16 %v1484, %v1483
        %v1487 = vsel %vm753, %v1480, 0
        %v1490 = vsel %vm766, %v1485, 0
        %1492 = vmatprep.subr.bf16.mxu0 0
        %1493 = vmatpush1.bf16.msra.mxu0 %v1490
        %1494 = vmatprep.subr.bf16.mxu0 0
        %1495 = vmatpush1.bf16.msra.mxu0 0
        %1496 = vmatprep.subr.bf16.mxu0 0
        %1497 = vmatpush1.bf16.msra.mxu0 0
        %1498 = vmatprep.subr.bf16.mxu0 0
        %1499 = vmatpush1.bf16.msra.mxu0 0
        %1500 = vmatprep.subr.bf16.mxu0 0
        %1501 = vmatpush1.bf16.msra.mxu0 0
        %1502 = vmatprep.subr.bf16.mxu0 0
        %1503 = vmatpush1.bf16.msra.mxu0 0
        %1504 = vmatprep.subr.bf16.mxu0 0
        %1505 = vmatpush1.bf16.msra.mxu0 0
        %1506 = vmatprep.subr.bf16.mxu0 0
        %1507 = vmatpush1.bf16.msra.mxu0 0
        %1508 = vmatprep.subr.bf16.mxu0 0
        %1509 = vmatpush1.bf16.msra.mxu0 0
        %1510 = vmatprep.subr.bf16.mxu0 0
        %1511 = vmatpush1.bf16.msra.mxu0 0
        %1512 = vmatprep.subr.bf16.mxu0 0
        %1513 = vmatpush1.bf16.msra.mxu0 0
        %1514 = vmatprep.subr.bf16.mxu0 0
        %1515 = vmatpush1.bf16.msra.mxu0 0
        %1516 = vmatprep.subr.bf16.mxu0 0
        %1517 = vmatpush1.bf16.msra.mxu0 0
        %1518 = vmatprep.subr.bf16.mxu0 0
        %1519 = vmatpush1.bf16.msra.mxu0 0
        %1520 = vmatprep.subr.bf16.mxu0 0
        %1521 = vmatpush1.bf16.msra.mxu0 0
        %1522 = vmatprep.subr.bf16.mxu0 0
        %1523 = vmatpush1.bf16.msra.mxu0 0
        %1524 = vmatprep.mubr.bf16.mxu0 0
        %1525 = vmatmul.mubr.bf16.gmra.mrb[0].mxu0 %v1399
        %v1526 = vpop.f32.mrb[0].mxu0
        %v1527 = vadd.f32 0.0, %v1526
        %v1528 = vpop.f32.mrb[0].mxu0
        %v1529 = vpop.f32.mrb[0].mxu0
        %v1530 = vadd.f32 0.0, %v1529
        %v1531 = vpop.f32.mrb[0].mxu0
        %1532 = vmatprep.mubr.bf16.mxu0 0
        %1533 = vmatmul.mubr.bf16.gmra.mrb[0].mxu0 %v1402
        %v1534 = vpop.f32.mrb[0].mxu0
        %v1535 = vadd.f32 0.0, %v1534
        %v1536 = vpop.f32.mrb[0].mxu0
        %v1537 = vpop.f32.mrb[0].mxu0
        %v1538 = vadd.f32 0.0, %v1537
        %v1539 = vpop.f32.mrb[0].mxu0
        %1540 = vmatprep.mubr.bf16.mxu0 0
        %1541 = vmatmul.mubr.bf16.gmra.mrb[0].mxu0 %v1405
        %v1542 = vpop.f32.mrb[0].mxu0
        %v1543 = vadd.f32 0.0, %v1542
        %v1544 = vpop.f32.mrb[0].mxu0
        %v1545 = vpop.f32.mrb[0].mxu0
        %v1546 = vadd.f32 0.0, %v1545
        %v1547 = vpop.f32.mrb[0].mxu0
        %1548 = vmatprep.mubr.bf16.mxu0 0
        %1549 = vmatmul.mubr.bf16.gmra.mrb[0].mxu0 %v1487
        %v1550 = vpop.f32.mrb[0].mxu0
        %v1551 = vadd.f32 0.0, %v1550
        %v1552 = vpop.f32.mrb[0].mxu0
        %v1553 = vpop.f32.mrb[0].mxu0
        %v1554 = vadd.f32 0.0, %v1553
        %v1555 = vpop.f32.mrb[0].mxu0
        %1556 = vdwg.mxu0
        %v1557 = vadd.f32 %v1445, %v1527
        %v1558 = vadd.f32 %v1448, %v1530
        %v1559 = vadd.f32 %v1453, %v1535
        %v1560 = vadd.f32 %v1456, %v1538
        %v1561 = vadd.f32 %v1461, %v1543
        %v1562 = vadd.f32 %v1464, %v1546
        %v1563 = vadd.f32 %v1469, %v1551
        %v1564 = vadd.f32 %v1472, %v1554
        %v1565 = vadd.f32 %v1008, %v1557
        %v1566 = vadd.f32 %v1009, %v1558
        %v1567 = vadd.f32 %v1010, %v1559
        %v1568 = vadd.f32 %v1011, %v1560
        %v1569 = vadd.f32 %v1012, %v1561
        %v1570 = vadd.f32 %v1013, %v1562
        %v1571 = vadd.f32 %v1014, %v1563
        %v1572 = vadd.f32 %v1015, %v1564
        %s1573 = sadd.s32 %s23, 3
        %p1574 = scmp.lt.s32.totalorder %s1573, 0
        %s1575 = ssub.s32 0, %s1573
        %s1576 = scalar_select %p1574, %s1575, %s1573
        %s1577 = sdiv.u32.pop %s1576, 3
        %s1578 = srem.u32.pop %s1576, 3
        %s1579 = ssub.s32 0, %s1578
        %s1580 = scalar_select %p1574, %s1579, %s1578
        %p1581 = scmp.ne.s32.totalorder %s1580, 0
        %p1582 = scmp.lt.s32.totalorder %s1580, 0
        %p1583 = pnand %p1582, %p1581
        %p1584 = pneg %p1583
        %s1585 = sadd.s32 %s1580, 3
        %s1586 = scalar_select %p1584, %s1585, %s1580
        %s1587 = smul.u32 %s1586, 20
        %s1588 = smul.addr %s1587, 4
        %s1589 = scalar_lea.vmem [#allocation2], %s1588
        %v1590 = vld [vmem:[%s1589] sm:$0xf]
        %v1591 = vld [vmem:[%s1589 + $0x4] sm:$0x1]
        %v1592 = vld [vmem:[%s1589 + $0x8] sm:$0xf]
        %v1593 = vld [vmem:[%s1589 + $0xc] sm:$0x1]
        %v1594 = vld [vmem:[%s1589 + $0x10] sm:$0xf]
        %v1595 = vld [vmem:[%s1589 + $0x14] sm:$0x1]
        %v1596 = vld [vmem:[%s1589 + $0x18] sm:$0xf]
        %v1597 = vld [vmem:[%s1589 + $0x1c] sm:$0x1]
        %v1598 = vld [vmem:[%s1589 + $0x20] sm:$0xf]
        %v1599 = vld [vmem:[%s1589 + $0x24] sm:$0x1]
        %v1600 = vld [vmem:[%s1589 + $0x28] sm:$0xf]
        %v1601 = vld [vmem:[%s1589 + $0x2c] sm:$0x1]
        %v1602 = vld [vmem:[%s1589 + $0x30] sm:$0xf]
        %v1603 = vld [vmem:[%s1589 + $0x34] sm:$0x1]
        %v1604 = vld [vmem:[%s1589 + $0x38] sm:$0xf]
        %v1605 = vld [vmem:[%s1589 + $0x3c] sm:$0x1]
        %v1606 = vld [vmem:[%s1589 + $0x40] sm:$0xf]
        %v1607 = vld [vmem:[%s1589 + $0x44] sm:$0x1]
        %v1608 = vld [vmem:[%s1589 + $0x48] sm:$0xf]
        %v1609 = vld [vmem:[%s1589 + $0x4c] sm:$0x1]
        %v1630 = vunpack.c.l.b16 %v1590
        %v1631 = vunpack.c.l.b16 %v1591
        %v1632 = vunpack.c.l.b16 %v1592
        %v1633 = vunpack.c.l.b16 %v1593
        %v1634 = vunpack.c.l.b16 %v1594
        %v1635 = vunpack.c.l.b16 %v1595
        %v1636 = vunpack.c.l.b16 %v1596
        %v1637 = vunpack.c.l.b16 %v1597
        %v1638 = vunpack.c.l.b16 %v1598
        %v1639 = vunpack.c.l.b16 %v1599
        %v1640 = vunpack.c.l.b16 %v1600
        %v1641 = vunpack.c.l.b16 %v1601
        %v1642 = vunpack.c.l.b16 %v1602
        %v1643 = vunpack.c.l.b16 %v1603
        %v1644 = vunpack.c.l.b16 %v1604
        %v1645 = vunpack.c.l.b16 %v1605
        %v1646 = vunpack.c.l.b16 %v1606
        %v1647 = vunpack.c.l.b16 %v1607
        %v1648 = vunpack.c.l.b16 %v1608
        %v1649 = vunpack.c.l.b16 %v1609
        %v1650 = vpack.c.b16 %v1631, %v1630
        %v1651 = vpack.c.b16 %v1633, %v1632
        %v1652 = vpack.c.b16 %v1635, %v1634
        %v1653 = vpack.c.b16 %v1637, %v1636
        %v1654 = vpack.c.b16 %v1639, %v1638
        %v1655 = vpack.c.b16 %v1641, %v1640
        %v1656 = vpack.c.b16 %v1643, %v1642
        %v1657 = vpack.c.b16 %v1645, %v1644
        %v1658 = vpack.c.b16 %v1647, %v1646
        %v1659 = vpack.c.b16 %v1649, %v1648
        %v1661 = vshrl.u32 %v1650, 16
        %v1663 = vshll.u32 %v1650, 16
        %v1665 = vrot.slane %v1663, 1
        %v1666 = vor.u32 %v1661, %v1665
        %v1668 = vshrl.u32 %v1651, 16
        %v1670 = vshll.u32 %v1651, 16
        %v1672 = vrot.slane %v1670, 1
        %v1673 = vor.u32 %v1668, %v1672
        %v1675 = vshrl.u32 %v1652, 16
        %v1677 = vshll.u32 %v1652, 16
        %v1679 = vrot.slane %v1677, 1
        %v1680 = vor.u32 %v1675, %v1679
        %v1682 = vshrl.u32 %v1653, 16
        %v1684 = vshll.u32 %v1653, 16
        %v1686 = vrot.slane %v1684, 1
        %v1687 = vor.u32 %v1682, %v1686
        %v1689 = vshrl.u32 %v1654, 16
        %v1691 = vshll.u32 %v1654, 16
        %v1693 = vrot.slane %v1691, 1
        %v1694 = vor.u32 %v1689, %v1693
        %v1696 = vshrl.u32 %v1655, 16
        %v1698 = vshll.u32 %v1655, 16
        %v1700 = vrot.slane %v1698, 1
        %v1701 = vor.u32 %v1696, %v1700
        %v1703 = vshrl.u32 %v1656, 16
        %v1705 = vshll.u32 %v1656, 16
        %v1707 = vrot.slane %v1705, 1
        %v1708 = vor.u32 %v1703, %v1707
        %v1710 = vshrl.u32 %v1657, 16
        %v1712 = vshll.u32 %v1657, 16
        %v1714 = vrot.slane %v1712, 1
        %v1715 = vor.u32 %v1710, %v1714
        %v1717 = vshrl.u32 %v1658, 16
        %v1719 = vshll.u32 %v1658, 16
        %v1721 = vrot.slane %v1719, 1
        %v1722 = vor.u32 %v1717, %v1721
        %v1724 = vshrl.u32 %v1659, 16
        %v1726 = vshll.u32 %v1659, 16
        %v1728 = vrot.slane %v1726, 1
        %v1729 = vor.u32 %v1724, %v1728
        %1730 = vrot.lane.b32.xlu0 %v1666, 4
        %v1731 = vpop.permute.xlu0 %1730
        %1732 = vrot.lane.b32.xlu0 %v1673, 4
        %v1733 = vpop.permute.xlu0 %1732
        %1734 = vrot.lane.b32.xlu0 %v1680, 4
        %v1735 = vpop.permute.xlu0 %1734
        %1736 = vrot.lane.b32.xlu0 %v1687, 4
        %v1737 = vpop.permute.xlu0 %1736
        %1738 = vrot.lane.b32.xlu0 %v1694, 4
        %v1739 = vpop.permute.xlu0 %1738
        %1740 = vrot.lane.b32.xlu0 %v1701, 4
        %v1741 = vpop.permute.xlu0 %1740
        %1742 = vrot.lane.b32.xlu0 %v1708, 4
        %v1743 = vpop.permute.xlu0 %1742
        %1744 = vrot.lane.b32.xlu0 %v1715, 4
        %v1745 = vpop.permute.xlu0 %1744
        %1746 = vrot.lane.b32.xlu0 %v1722, 4
        %v1747 = vpop.permute.xlu0 %1746
        %1748 = vrot.lane.b32.xlu0 %v1729, 4
        %v1749 = vpop.permute.xlu0 %1748
        %v1750 = vrot.slane %v1650, 1
        %v1751 = vrot.slane %v1651, 1
        %v1752 = vrot.slane %v1652, 1
        %v1753 = vrot.slane %v1653, 1
        %v1754 = vrot.slane %v1654, 1
        %v1755 = vrot.slane %v1655, 1
        %v1756 = vrot.slane %v1656, 1
        %v1757 = vrot.slane %v1657, 1
        %v1758 = vrot.slane %v1658, 1
        %v1759 = vrot.slane %v1659, 1
        %1760 = vrot.lane.b32.xlu0 %v1750, 8
        %v1761 = vpop.permute.xlu0 %1760
        %1762 = vrot.lane.b32.xlu0 %v1751, 8
        %v1763 = vpop.permute.xlu0 %1762
        %1764 = vrot.lane.b32.xlu0 %v1752, 8
        %v1765 = vpop.permute.xlu0 %1764
        %1766 = vrot.lane.b32.xlu0 %v1753, 8
        %v1767 = vpop.permute.xlu0 %1766
        %1768 = vrot.lane.b32.xlu0 %v1754, 8
        %v1769 = vpop.permute.xlu0 %1768
        %1770 = vrot.lane.b32.xlu0 %v1755, 8
        %v1771 = vpop.permute.xlu0 %1770
        %1772 = vrot.lane.b32.xlu0 %v1756, 8
        %v1773 = vpop.permute.xlu0 %1772
        %1774 = vrot.lane.b32.xlu0 %v1757, 8
        %v1775 = vpop.permute.xlu0 %1774
        %1776 = vrot.lane.b32.xlu0 %v1758, 8
        %v1777 = vpop.permute.xlu0 %1776
        %1778 = vrot.lane.b32.xlu0 %v1759, 8
        %v1779 = vpop.permute.xlu0 %1778
        %v1782 = vsel %vm671, %v1590, %v1731
        %v1785 = vsel %vm671, %v1592, %v1733
        %v1788 = vsel %vm671, %v1594, %v1735
        %v1791 = vsel %vm671, %v1596, %v1737
        %v1794 = vsel %vm671, %v1598, %v1739
        %v1797 = vsel %vm671, %v1600, %v1741
        %v1800 = vsel %vm671, %v1602, %v1743
        %v1803 = vsel %vm671, %v1604, %v1745
        %v1806 = vsel %vm671, %v1606, %v1747
        %v1809 = vsel %vm671, %v1608, %v1749
        %v1811 = vsel %vm702, %v1782, %v1761
        %v1813 = vsel %vm702, %v1785, %v1763
        %v1815 = vsel %vm702, %v1788, %v1765
        %v1817 = vsel %vm702, %v1791, %v1767
        %v1819 = vsel %vm702, %v1794, %v1769
        %v1821 = vsel %vm702, %v1797, %v1771
        %v1823 = vsel %vm702, %v1800, %v1773
        %v1825 = vsel %vm702, %v1803, %v1775
        %v1827 = vsel %vm702, %v1806, %v1777
        %v1829 = vsel %vm702, %v1809, %v1779
        %s1830 = scalar_lea.vmem %s1, 48
        %v1831 = vld [vmem:[%s1830] sm:$0xf]
        %v1832 = vld [vmem:[%s1830 + $0x4] sm:$0x3]
        %s1833 = scalar_lea.vmem %s1, 56
        %v1834 = vld [vmem:[%s1833] sm:$0xf]
        %v1835 = vld [vmem:[%s1833 + $0x4] sm:$0x3]
        %v1844 = vunpack.c.l.b16 %v1813
        %v1845 = vunpack.c.l.b16 %v1815
        %v1846 = vunpack.c.l.b16 %v1817
        %v1847 = vunpack.c.l.b16 %v1819
        %v1848 = vunpack.c.l.b16 %v1821
        %v1849 = vunpack.c.l.b16 %v1823
        %v1850 = vunpack.c.l.b16 %v1825
        %v1851 = vunpack.c.l.b16 %v1827
        %v1852 = vpack.c.b16 %v1845, %v1844
        %v1853 = vpack.c.b16 %v1847, %v1846
        %v1854 = vpack.c.b16 %v1849, %v1848
        %v1855 = vpack.c.b16 %v1851, %v1850
        %v1858 = vunpack.c.l.b16 %v1834
        %v1859 = vunpack.c.l.b16 %v1835
        %v1860 = vpack.c.b16 %v1859, %v1858
        %v1862 = vsel %vm753, %v1852, 0
        %v1865 = vsel %vm753, %v1853, 0
        %v1868 = vsel %vm753, %v1854, 0
        %v1871 = vsel %vm753, %v1855, 0
        %v1874 = vsel %vm766, %v1860, 0
        %1876 = vmatprep.subr.bf16.mxu0 0
        %1877 = vmatpush1.bf16.msra.mxu0 %v1874
        %1878 = vmatprep.subr.bf16.mxu0 0
        %1879 = vmatpush1.bf16.msra.mxu0 0
        %1880 = vmatprep.subr.bf16.mxu0 0
        %1881 = vmatpush1.bf16.msra.mxu0 0
        %1882 = vmatprep.subr.bf16.mxu0 0
        %1883 = vmatpush1.bf16.msra.mxu0 0
        %1884 = vmatprep.subr.bf16.mxu0 0
        %1885 = vmatpush1.bf16.msra.mxu0 0
        %1886 = vmatprep.subr.bf16.mxu0 0
        %1887 = vmatpush1.bf16.msra.mxu0 0
        %1888 = vmatprep.subr.bf16.mxu0 0
        %1889 = vmatpush1.bf16.msra.mxu0 0
        %1890 = vmatprep.subr.bf16.mxu0 0
        %1891 = vmatpush1.bf16.msra.mxu0 0
        %1892 = vmatprep.subr.bf16.mxu0 0
        %1893 = vmatpush1.bf16.msra.mxu0 0
        %1894 = vmatprep.subr.bf16.mxu0 0
        %1895 = vmatpush1.bf16.msra.mxu0 0
        %1896 = vmatprep.subr.bf16.mxu0 0
        %1897 = vmatpush1.bf16.msra.mxu0 0
        %1898 = vmatprep.subr.bf16.mxu0 0
        %1899 = vmatpush1.bf16.msra.mxu0 0
        %1900 = vmatprep.subr.bf16.mxu0 0
        %1901 = vmatpush1.bf16.msra.mxu0 0
        %1902 = vmatprep.subr.bf16.mxu0 0
        %1903 = vmatpush1.bf16.msra.mxu0 0
        %1904 = vmatprep.subr.bf16.mxu0 0
        %1905 = vmatpush1.bf16.msra.mxu0 0
        %1906 = vmatprep.subr.bf16.mxu0 0
        %1907 = vmatpush1.bf16.msra.mxu0 0
        %1908 = vmatprep.mubr.bf16.mxu0 0
        %1909 = vmatmul.mubr.bf16.gmra.mrb[0].mxu0 %v1862
        %v1910 = vpop.f32.mrb[0].mxu0
        %v1911 = vadd.f32 0.0, %v1910
        %v1912 = vpop.f32.mrb[0].mxu0
        %v1913 = vpop.f32.mrb[0].mxu0
        %v1914 = vadd.f32 0.0, %v1913
        %v1915 = vpop.f32.mrb[0].mxu0
        %1916 = vmatprep.mubr.bf16.mxu0 0
        %1917 = vmatmul.mubr.bf16.gmra.mrb[0].mxu0 %v1865
        %v1918 = vpop.f32.mrb[0].mxu0
        %v1919 = vadd.f32 0.0, %v1918
        %v1920 = vpop.f32.mrb[0].mxu0
        %v1921 = vpop.f32.mrb[0].mxu0
        %v1922 = vadd.f32 0.0, %v1921
        %v1923 = vpop.f32.mrb[0].mxu0
        %1924 = vmatprep.mubr.bf16.mxu0 0
        %1925 = vmatmul.mubr.bf16.gmra.mrb[0].mxu0 %v1868
        %v1926 = vpop.f32.mrb[0].mxu0
        %v1927 = vadd.f32 0.0, %v1926
        %v1928 = vpop.f32.mrb[0].mxu0
        %v1929 = vpop.f32.mrb[0].mxu0
        %v1930 = vadd.f32 0.0, %v1929
        %v1931 = vpop.f32.mrb[0].mxu0
        %1932 = vmatprep.mubr.bf16.mxu0 0
        %1933 = vmatmul.mubr.bf16.gmra.mrb[0].mxu0 %v1871
        %v1934 = vpop.f32.mrb[0].mxu0
        %v1935 = vadd.f32 0.0, %v1934
        %v1936 = vpop.f32.mrb[0].mxu0
        %v1937 = vpop.f32.mrb[0].mxu0
        %v1938 = vadd.f32 0.0, %v1937
        %v1939 = vpop.f32.mrb[0].mxu0
        %1940 = vdwg.mxu0
        %v1942 = vunpack.c.l.b16 %v1811
        %v1943 = vpack.c.b16 %v1844, %v1942
        %v1944 = vpack.c.b16 %v1846, %v1845
        %v1945 = vpack.c.b16 %v1848, %v1847
        %v1946 = vpack.c.b16 %v1850, %v1849
        %v1949 = vunpack.c.l.b16 %v1831
        %v1950 = vunpack.c.l.b16 %v1832
        %v1951 = vpack.c.b16 %v1950, %v1949
        %v1953 = vsel %vm753, %v1943, 0
        %v1956 = vsel %vm753, %v1944, 0
        %v1959 = vsel %vm753, %v1945, 0
        %v1962 = vsel %vm753, %v1946, 0
        %v1965 = vsel %vm766, %v1951, 0
        %1967 = vmatprep.subr.bf16.mxu0 0
        %1968 = vmatpush1.bf16.msra.mxu0 %v1965
        %1969 = vmatprep.subr.bf16.mxu0 0
        %1970 = vmatpush1.bf16.msra.mxu0 0
        %1971 = vmatprep.subr.bf16.mxu0 0
        %1972 = vmatpush1.bf16.msra.mxu0 0
        %1973 = vmatprep.subr.bf16.mxu0 0
        %1974 = vmatpush1.bf16.msra.mxu0 0
        %1975 = vmatprep.subr.bf16.mxu0 0
        %1976 = vmatpush1.bf16.msra.mxu0 0
        %1977 = vmatprep.subr.bf16.mxu0 0
        %1978 = vmatpush1.bf16.msra.mxu0 0
        %1979 = vmatprep.subr.bf16.mxu0 0
        %1980 = vmatpush1.bf16.msra.mxu0 0
        %1981 = vmatprep.subr.bf16.mxu0 0
        %1982 = vmatpush1.bf16.msra.mxu0 0
        %1983 = vmatprep.subr.bf16.mxu0 0
        %1984 = vmatpush1.bf16.msra.mxu0 0
        %1985 = vmatprep.subr.bf16.mxu0 0
        %1986 = vmatpush1.bf16.msra.mxu0 0
        %1987 = vmatprep.subr.bf16.mxu0 0
        %1988 = vmatpush1.bf16.msra.mxu0 0
        %1989 = vmatprep.subr.bf16.mxu0 0
        %1990 = vmatpush1.bf16.msra.mxu0 0
        %1991 = vmatprep.subr.bf16.mxu0 0
        %1992 = vmatpush1.bf16.msra.mxu0 0
        %1993 = vmatprep.subr.bf16.mxu0 0
        %1994 = vmatpush1.bf16.msra.mxu0 0
        %1995 = vmatprep.subr.bf16.mxu0 0
        %1996 = vmatpush1.bf16.msra.mxu0 0
        %1997 = vmatprep.subr.bf16.mxu0 0
        %1998 = vmatpush1.bf16.msra.mxu0 0
        %1999 = vmatprep.mubr.bf16.mxu0 0
        %2000 = vmatmul.mubr.bf16.gmra.mrb[0].mxu0 %v1953
        %v2001 = vpop.f32.mrb[0].mxu0
        %v2002 = vadd.f32 %v1911, %v2001
        %v2003 = vpop.f32.mrb[0].mxu0
        %v2004 = vpop.f32.mrb[0].mxu0
        %v2005 = vadd.f32 %v1914, %v2004
        %v2006 = vpop.f32.mrb[0].mxu0
        %2007 = vmatprep.mubr.bf16.mxu0 0
        %2008 = vmatmul.mubr.bf16.gmra.mrb[0].mxu0 %v1956
        %v2009 = vpop.f32.mrb[0].mxu0
        %v2010 = vadd.f32 %v1919, %v2009
        %v2011 = vpop.f32.mrb[0].mxu0
        %v2012 = vpop.f32.mrb[0].mxu0
        %v2013 = vadd.f32 %v1922, %v2012
        %v2014 = vpop.f32.mrb[0].mxu0
        %2015 = vmatprep.mubr.bf16.mxu0 0
        %2016 = vmatmul.mubr.bf16.gmra.mrb[0].mxu0 %v1959
        %v2017 = vpop.f32.mrb[0].mxu0
        %v2018 = vadd.f32 %v1927, %v2017
        %v2019 = vpop.f32.mrb[0].mxu0
        %v2020 = vpop.f32.mrb[0].mxu0
        %v2021 = vadd.f32 %v1930, %v2020
        %v2022 = vpop.f32.mrb[0].mxu0
        %2023 = vmatprep.mubr.bf16.mxu0 0
        %2024 = vmatmul.mubr.bf16.gmra.mrb[0].mxu0 %v1962
        %v2025 = vpop.f32.mrb[0].mxu0
        %v2026 = vadd.f32 %v1935, %v2025
        %v2027 = vpop.f32.mrb[0].mxu0
        %v2028 = vpop.f32.mrb[0].mxu0
        %v2029 = vadd.f32 %v1938, %v2028
        %v2030 = vpop.f32.mrb[0].mxu0
        %2031 = vdwg.mxu0
        %s2032 = scalar_lea.vmem %s1, 64
        %v2033 = vld [vmem:[%s2032] sm:$0xf]
        %v2034 = vld [vmem:[%s2032 + $0x4] sm:$0x3]
        %v2036 = vunpack.c.l.b16 %v1829
        %v2037 = vpack.c.b16 %v2036, %v1851
        %v2040 = vunpack.c.l.b16 %v2033
        %v2041 = vunpack.c.l.b16 %v2034
        %v2042 = vpack.c.b16 %v2041, %v2040
        %v2044 = vsel %vm753, %v2037, 0
        %v2047 = vsel %vm766, %v2042, 0
        %2049 = vmatprep.subr.bf16.mxu0 0
        %2050 = vmatpush1.bf16.msra.mxu0 %v2047
        %2051 = vmatprep.subr.bf16.mxu0 0
        %2052 = vmatpush1.bf16.msra.mxu0 0
        %2053 = vmatprep.subr.bf16.mxu0 0
        %2054 = vmatpush1.bf16.msra.mxu0 0
        %2055 = vmatprep.subr.bf16.mxu0 0
        %2056 = vmatpush1.bf16.msra.mxu0 0
        %2057 = vmatprep.subr.bf16.mxu0 0
        %2058 = vmatpush1.bf16.msra.mxu0 0
        %2059 = vmatprep.subr.bf16.mxu0 0
        %2060 = vmatpush1.bf16.msra.mxu0 0
        %2061 = vmatprep.subr.bf16.mxu0 0
        %2062 = vmatpush1.bf16.msra.mxu0 0
        %2063 = vmatprep.subr.bf16.mxu0 0
        %2064 = vmatpush1.bf16.msra.mxu0 0
        %2065 = vmatprep.subr.bf16.mxu0 0
        %2066 = vmatpush1.bf16.msra.mxu0 0
        %2067 = vmatprep.subr.bf16.mxu0 0
        %2068 = vmatpush1.bf16.msra.mxu0 0
        %2069 = vmatprep.subr.bf16.mxu0 0
        %2070 = vmatpush1.bf16.msra.mxu0 0
        %2071 = vmatprep.subr.bf16.mxu0 0
        %2072 = vmatpush1.bf16.msra.mxu0 0
        %2073 = vmatprep.subr.bf16.mxu0 0
        %2074 = vmatpush1.bf16.msra.mxu0 0
        %2075 = vmatprep.subr.bf16.mxu0 0
        %2076 = vmatpush1.bf16.msra.mxu0 0
        %2077 = vmatprep.subr.bf16.mxu0 0
        %2078 = vmatpush1.bf16.msra.mxu0 0
        %2079 = vmatprep.subr.bf16.mxu0 0
        %2080 = vmatpush1.bf16.msra.mxu0 0
        %2081 = vmatprep.mubr.bf16.mxu0 0
        %2082 = vmatmul.mubr.bf16.gmra.mrb[0].mxu0 %v1956
        %v2083 = vpop.f32.mrb[0].mxu0
        %v2084 = vadd.f32 0.0, %v2083
        %v2085 = vpop.f32.mrb[0].mxu0
        %v2086 = vpop.f32.mrb[0].mxu0
        %v2087 = vadd.f32 0.0, %v2086
        %v2088 = vpop.f32.mrb[0].mxu0
        %2089 = vmatprep.mubr.bf16.mxu0 0
        %2090 = vmatmul.mubr.bf16.gmra.mrb[0].mxu0 %v1959
        %v2091 = vpop.f32.mrb[0].mxu0
        %v2092 = vadd.f32 0.0, %v2091
        %v2093 = vpop.f32.mrb[0].mxu0
        %v2094 = vpop.f32.mrb[0].mxu0
        %v2095 = vadd.f32 0.0, %v2094
        %v2096 = vpop.f32.mrb[0].mxu0
        %2097 = vmatprep.mubr.bf16.mxu0 0
        %2098 = vmatmul.mubr.bf16.gmra.mrb[0].mxu0 %v1962
        %v2099 = vpop.f32.mrb[0].mxu0
        %v2100 = vadd.f32 0.0, %v2099
        %v2101 = vpop.f32.mrb[0].mxu0
        %v2102 = vpop.f32.mrb[0].mxu0
        %v2103 = vadd.f32 0.0, %v2102
        %v2104 = vpop.f32.mrb[0].mxu0
        %2105 = vmatprep.mubr.bf16.mxu0 0
        %2106 = vmatmul.mubr.bf16.gmra.mrb[0].mxu0 %v2044
        %v2107 = vpop.f32.mrb[0].mxu0
        %v2108 = vadd.f32 0.0, %v2107
        %v2109 = vpop.f32.mrb[0].mxu0
        %v2110 = vpop.f32.mrb[0].mxu0
        %v2111 = vadd.f32 0.0, %v2110
        %v2112 = vpop.f32.mrb[0].mxu0
        %2113 = vdwg.mxu0
        %v2114 = vadd.f32 %v2002, %v2084
        %v2115 = vadd.f32 %v2005, %v2087
        %v2116 = vadd.f32 %v2010, %v2092
        %v2117 = vadd.f32 %v2013, %v2095
        %v2118 = vadd.f32 %v2018, %v2100
        %v2119 = vadd.f32 %v2021, %v2103
        %v2120 = vadd.f32 %v2026, %v2108
        %v2121 = vadd.f32 %v2029, %v2111
        %v2122 = vadd.f32 %v1565, %v2114
        %v2123 = vadd.f32 %v1566, %v2115
        %v2124 = vadd.f32 %v1567, %v2116
        %v2125 = vadd.f32 %v1568, %v2117
        %v2126 = vadd.f32 %v1569, %v2118
        %v2127 = vadd.f32 %v1570, %v2119
        %v2128 = vadd.f32 %v1571, %v2120
        %v2129 = vadd.f32 %v1572, %v2121
        %v2130 = vld [vmem:[%s2] sm:$0x1]
        %v2132 = vlaneseq
        %v2133 = vshrl.u32 %v2132, 7
        %v2134 = vsub.s32 0, %v2133
        %v2135 = vrot.slane %v2130, %v2134
        %v2137 = vmul.f32 %v2122, %v2135
        %v2138 = vmul.f32 %v2123, %v2135
        %v2139 = vmul.f32 %v2124, %v2135
        %v2140 = vmul.f32 %v2125, %v2135
        %v2141 = vmul.f32 %v2126, %v2135
        %v2142 = vmul.f32 %v2127, %v2135
        %v2143 = vmul.f32 %v2128, %v2135
        %v2144 = vmul.f32 %v2129, %v2135
        %v2145 = vld [vmem:[%s3] sm:$0x1]
        %v2147 = vlaneseq
        %v2148 = vshrl.u32 %v2147, 7
        %v2149 = vsub.s32 0, %v2148
        %v2150 = vrot.slane %v2145, %v2149
        %v2152 = vadd.f32 %v2137, %v2150
        %v2153 = vadd.f32 %v2138, %v2150
        %v2154 = vadd.f32 %v2139, %v2150
        %v2155 = vadd.f32 %v2140, %v2150
        %v2156 = vadd.f32 %v2141, %v2150
        %v2157 = vadd.f32 %v2142, %v2150
        %v2158 = vadd.f32 %v2143, %v2150
        %v2159 = vadd.f32 %v2144, %v2150
        %v2160 = vmax.f32 %v2152, 0.0
        %v2161 = vmax.f32 %v2153, 0.0
        %v2162 = vmax.f32 %v2154, 0.0
        %v2163 = vmax.f32 %v2155, 0.0
        %v2164 = vmax.f32 %v2156, 0.0
        %v2165 = vmax.f32 %v2157, 0.0
        %v2166 = vmax.f32 %v2158, 0.0
        %v2167 = vmax.f32 %v2159, 0.0
        %v2168 = vpack.c.bf16 %v2160, %v2160
        %v2169 = vpack.c.bf16 %v2161, %v2161
        %v2170 = vpack.c.bf16 %v2162, %v2162
        %v2171 = vpack.c.bf16 %v2163, %v2163
        %v2172 = vpack.c.bf16 %v2164, %v2164
        %v2173 = vpack.c.bf16 %v2165, %v2165
        %v2174 = vpack.c.bf16 %v2166, %v2166
        %v2175 = vpack.c.bf16 %v2167, %v2167
        %v2184 = vunpack.c.l.b16 %v2168
        %v2185 = vunpack.c.l.b16 %v2169
        %v2186 = vunpack.c.l.b16 %v2170
        %v2187 = vunpack.c.l.b16 %v2171
        %v2188 = vunpack.c.l.b16 %v2172
        %v2189 = vunpack.c.l.b16 %v2173
        %v2190 = vunpack.c.l.b16 %v2174
        %v2191 = vunpack.c.l.b16 %v2175
        %v2192 = vpack.c.b16 %v2184, %v2184
        %v2193 = vpack.c.b16 %v2185, %v2185
        %v2194 = vpack.c.b16 %v2186, %v2186
        %v2195 = vpack.c.b16 %v2187, %v2187
        %v2196 = vpack.c.b16 %v2188, %v2188
        %v2197 = vpack.c.b16 %v2189, %v2189
        %v2198 = vpack.c.b16 %v2190, %v2190
        %v2199 = vpack.c.b16 %v2191, %v2191
        %v2201 = vshrl.u32 %v2192, 16
        %v2203 = vrot.slane %v2201, 7
        %v2204 = vshll.u32 %v2192, 16
        %v2206 = vor.u32 %v2203, %v2204
        %v2207 = vrot.slane %v2203, 4
        %v2209 = vshrl.u32 %v2193, 16
        %v2211 = vrot.slane %v2209, 7
        %v2212 = vshll.u32 %v2193, 16
        %v2214 = vor.u32 %v2211, %v2212
        %v2215 = vrot.slane %v2211, 4
        %v2217 = vshrl.u32 %v2194, 16
        %v2219 = vrot.slane %v2217, 7
        %v2220 = vshll.u32 %v2194, 16
        %v2222 = vor.u32 %v2219, %v2220
        %v2223 = vrot.slane %v2219, 4
        %v2225 = vshrl.u32 %v2195, 16
        %v2227 = vrot.slane %v2225, 7
        %v2228 = vshll.u32 %v2195, 16
        %v2230 = vor.u32 %v2227, %v2228
        %v2231 = vrot.slane %v2227, 4
        %v2233 = vshrl.u32 %v2196, 16
        %v2235 = vrot.slane %v2233, 7
        %v2236 = vshll.u32 %v2196, 16
        %v2238 = vor.u32 %v2235, %v2236
        %v2239 = vrot.slane %v2235, 4
        %v2241 = vshrl.u32 %v2197, 16
        %v2243 = vrot.slane %v2241, 7
        %v2244 = vshll.u32 %v2197, 16
        %v2246 = vor.u32 %v2243, %v2244
        %v2247 = vrot.slane %v2243, 4
        %v2249 = vshrl.u32 %v2198, 16
        %v2251 = vrot.slane %v2249, 7
        %v2252 = vshll.u32 %v2198, 16
        %v2254 = vor.u32 %v2251, %v2252
        %v2255 = vrot.slane %v2251, 4
        %v2257 = vshrl.u32 %v2199, 16
        %v2259 = vrot.slane %v2257, 7
        %v2260 = vshll.u32 %v2199, 16
        %v2262 = vor.u32 %v2259, %v2260
        %v2263 = vrot.slane %v2259, 4
        %s2280 = sadd.s32 2, %s478
        %s2281 = smul.addr %s2280, 4
        %s2282 = scalar_lea.vmem [#allocation3], %s2281
        %vm2283 = vcmask 60416
        %vm2284 = vsmask.f32 7938
        %vm2285 = vmand %vm2283, %vm2284
        %v2286 = vld [vmem:[%s2282] sm:$0xf]
        %v2287 = vsel %vm2285, %v2206, %v2286
        %2288 = vst [vmem:[%s2282] sm:$0xf] %v2287
        %vm2289 = vcmask 57344
        %vm2290 = vsmask.f32 256
        %vm2291 = vmand %vm2289, %vm2290
        %v2292 = vld [vmem:[%s2282 + $0x4] sm:$0x1]
        %v2293 = vsel %vm2291, %v2207, %v2292
        %2294 = vst [vmem:[%s2282 + $0x4] sm:$0x1] %v2293
        %v2295 = vld [vmem:[%s2282 + $0x8] sm:$0xf]
        %v2296 = vsel %vm2285, %v2214, %v2295
        %2297 = vst [vmem:[%s2282 + $0x8] sm:$0xf] %v2296
        %v2298 = vld [vmem:[%s2282 + $0xc] sm:$0x1]
        %v2299 = vsel %vm2291, %v2215, %v2298
        %2300 = vst [vmem:[%s2282 + $0xc] sm:$0x1] %v2299
        %v2301 = vld [vmem:[%s2282 + $0x10] sm:$0xf]
        %v2302 = vsel %vm2285, %v2222, %v2301
        %2303 = vst [vmem:[%s2282 + $0x10] sm:$0xf] %v2302
        %v2304 = vld [vmem:[%s2282 + $0x14] sm:$0x1]
        %v2305 = vsel %vm2291, %v2223, %v2304
        %2306 = vst [vmem:[%s2282 + $0x14] sm:$0x1] %v2305
        %v2307 = vld [vmem:[%s2282 + $0x18] sm:$0xf]
        %v2308 = vsel %vm2285, %v2230, %v2307
        %2309 = vst [vmem:[%s2282 + $0x18] sm:$0xf] %v2308
        %v2310 = vld [vmem:[%s2282 + $0x1c] sm:$0x1]
        %v2311 = vsel %vm2291, %v2231, %v2310
        %2312 = vst [vmem:[%s2282 + $0x1c] sm:$0x1] %v2311
        %v2313 = vld [vmem:[%s2282 + $0x20] sm:$0xf]
        %v2314 = vsel %vm2285, %v2238, %v2313
        %2315 = vst [vmem:[%s2282 + $0x20] sm:$0xf] %v2314
        %v2316 = vld [vmem:[%s2282 + $0x24] sm:$0x1]
        %v2317 = vsel %vm2291, %v2239, %v2316
        %2318 = vst [vmem:[%s2282 + $0x24] sm:$0x1] %v2317
        %v2319 = vld [vmem:[%s2282 + $0x28] sm:$0xf]
        %v2320 = vsel %vm2285, %v2246, %v2319
        %2321 = vst [vmem:[%s2282 + $0x28] sm:$0xf] %v2320
        %v2322 = vld [vmem:[%s2282 + $0x2c] sm:$0x1]
        %v2323 = vsel %vm2291, %v2247, %v2322
        %2324 = vst [vmem:[%s2282 + $0x2c] sm:$0x1] %v2323
        %v2325 = vld [vmem:[%s2282 + $0x30] sm:$0xf]
        %v2326 = vsel %vm2285, %v2254, %v2325
        %2327 = vst [vmem:[%s2282 + $0x30] sm:$0xf] %v2326
        %v2328 = vld [vmem:[%s2282 + $0x34] sm:$0x1]
        %v2329 = vsel %vm2291, %v2255, %v2328
        %2330 = vst [vmem:[%s2282 + $0x34] sm:$0x1] %v2329
        %v2331 = vld [vmem:[%s2282 + $0x38] sm:$0xf]
        %v2332 = vsel %vm2285, %v2262, %v2331
        %2333 = vst [vmem:[%s2282 + $0x38] sm:$0xf] %v2332
        %v2334 = vld [vmem:[%s2282 + $0x3c] sm:$0x1]
        %v2335 = vsel %vm2291, %v2263, %v2334
        %2336 = vst [vmem:[%s2282 + $0x3c] sm:$0x1] %v2335
      $region60: #{double_conv3d_dec.1} parent=47 // pred_fallthru
        _
      %p2337 = scmp.eq.s32.totalorder %s23, 10
      // Predicated region
      $region61: #{double_conv3d_dec.1} parent=47 // pred_check
        %p2338 = pneg %p2337
      $region62: #{double_conv3d_dec.1} parent=47 // pred_check_branch
        %2340 = sbr.rel (%p2338) target = $region64
      $region63: #{double_conv3d_dec.1} parent=47 // pred_region
        %s2341 = sadd.s32 %s23, 1
        %p2342 = scmp.lt.s32.totalorder %s2341, 0
        %s2343 = ssub.s32 0, %s2341
        %s2344 = scalar_select %p2342, %s2343, %s2341
        %s2345 = sdiv.u32.pop %s2344, 3
        %s2346 = srem.u32.pop %s2344, 3
        %s2347 = ssub.s32 0, %s2346
        %s2348 = scalar_select %p2342, %s2347, %s2346
        %p2349 = scmp.ne.s32.totalorder %s2348, 0
        %p2350 = scmp.lt.s32.totalorder %s2348, 0
        %p2351 = pnand %p2350, %p2349
        %p2352 = pneg %p2351
        %s2353 = sadd.s32 %s2348, 3
        %s2354 = scalar_select %p2352, %s2353, %s2348
        %s2355 = smul.u32 %s2354, 20
        %s2356 = smul.addr %s2355, 4
        %s2357 = scalar_lea.vmem [#allocation3], %s2356
        %vm2358 = vcmask 60416
        %2359 = vst.msk [vmem:[%s2357] sm:$0xf] %vm2358, 0
        %vm2360 = vcmask 57344
        %2361 = vst.msk [vmem:[%s2357 + $0x4] sm:$0x1] %vm2360, 0
        %2362 = vst.msk [vmem:[%s2357 + $0x8] sm:$0xf] %vm2358, 0
        %2363 = vst.msk [vmem:[%s2357 + $0xc] sm:$0x1] %vm2360, 0
        %2364 = vst.msk [vmem:[%s2357 + $0x10] sm:$0xf] %vm2358, 0
        %2365 = vst.msk [vmem:[%s2357 + $0x14] sm:$0x1] %vm2360, 0
        %2366 = vst.msk [vmem:[%s2357 + $0x18] sm:$0xf] %vm2358, 0
        %2367 = vst.msk [vmem:[%s2357 + $0x1c] sm:$0x1] %vm2360, 0
        %2368 = vst.msk [vmem:[%s2357 + $0x20] sm:$0xf] %vm2358, 0
        %2369 = vst.msk [vmem:[%s2357 + $0x24] sm:$0x1] %vm2360, 0
        %2370 = vst.msk [vmem:[%s2357 + $0x28] sm:$0xf] %vm2358, 0
        %2371 = vst.msk [vmem:[%s2357 + $0x2c] sm:$0x1] %vm2360, 0
        %2372 = vst.msk [vmem:[%s2357 + $0x30] sm:$0xf] %vm2358, 0
        %2373 = vst.msk [vmem:[%s2357 + $0x34] sm:$0x1] %vm2360, 0
        %2374 = vst.msk [vmem:[%s2357 + $0x38] sm:$0xf] %vm2358, 0
        %2375 = vst.msk [vmem:[%s2357 + $0x3c] sm:$0x1] %vm2360, 0
        %2376 = vst.msk [vmem:[%s2357 + $0x40] sm:$0xf] %vm2358, 0
        %2377 = vst.msk [vmem:[%s2357 + $0x44] sm:$0x1] %vm2360, 0
        %2378 = vst.msk [vmem:[%s2357 + $0x48] sm:$0xf] %vm2358, 0
        %2379 = vst.msk [vmem:[%s2357 + $0x4c] sm:$0x1] %vm2360, 0
      $region64: #{double_conv3d_dec.1} parent=47 // pred_fallthru
        _
      %p2380 = scmp.ge.s32.totalorder %s23, 3
      // Predicated region
      $region65: #{double_conv3d_dec.1} parent=47 // pred_check
        %p2381 = pneg %p2380
      $region66: #{double_conv3d_dec.1} parent=47 // pred_check_branch
        %2383 = sbr.rel (%p2381) target = $region68
      $region67: #{double_conv3d_dec.1} parent=47 // pred_region
        %s2384 = sadd.s32 %s23, 2
        %p2385 = scmp.lt.s32.totalorder %s2384, 0
        %s2386 = ssub.s32 0, %s2384
        %s2387 = scalar_select %p2385, %s2386, %s2384
        %s2388 = sdiv.u32.pop %s2387, 3
        %s2389 = srem.u32.pop %s2387, 3
        %s2390 = ssub.s32 0, %s2389
        %s2391 = scalar_select %p2385, %s2390, %s2389
        %p2392 = scmp.ne.s32.totalorder %s2391, 0
        %p2393 = scmp.lt.s32.totalorder %s2391, 0
        %p2394 = pnand %p2393, %p2392
        %p2395 = pneg %p2394
        %s2396 = sadd.s32 %s2391, 3
        %s2397 = scalar_select %p2395, %s2396, %s2391
        %s2398 = smul.u32 %s2397, 20
        %s2399 = smul.addr %s2398, 4
        %s2400 = scalar_lea.vmem [#allocation3], %s2399
        %v2401 = vld [vmem:[%s2400] sm:$0xf]
        %v2402 = vld [vmem:[%s2400 + $0x4] sm:$0x1]
        %v2403 = vld [vmem:[%s2400 + $0x8] sm:$0xf]
        %v2404 = vld [vmem:[%s2400 + $0xc] sm:$0x1]
        %v2405 = vld [vmem:[%s2400 + $0x10] sm:$0xf]
        %v2406 = vld [vmem:[%s2400 + $0x14] sm:$0x1]
        %v2407 = vld [vmem:[%s2400 + $0x18] sm:$0xf]
        %v2408 = vld [vmem:[%s2400 + $0x1c] sm:$0x1]
        %v2409 = vld [vmem:[%s2400 + $0x20] sm:$0xf]
        %v2410 = vld [vmem:[%s2400 + $0x24] sm:$0x1]
        %v2411 = vld [vmem:[%s2400 + $0x28] sm:$0xf]
        %v2412 = vld [vmem:[%s2400 + $0x2c] sm:$0x1]
        %v2413 = vld [vmem:[%s2400 + $0x30] sm:$0xf]
        %v2414 = vld [vmem:[%s2400 + $0x34] sm:$0x1]
        %v2415 = vld [vmem:[%s2400 + $0x38] sm:$0xf]
        %v2416 = vld [vmem:[%s2400 + $0x3c] sm:$0x1]
        %v2417 = vld [vmem:[%s2400 + $0x40] sm:$0xf]
        %v2418 = vld [vmem:[%s2400 + $0x44] sm:$0x1]
        %v2419 = vld [vmem:[%s2400 + $0x48] sm:$0xf]
        %v2420 = vld [vmem:[%s2400 + $0x4c] sm:$0x1]
        %v2441 = vunpack.c.l.b16 %v2401
        %v2442 = vunpack.c.l.b16 %v2402
        %v2443 = vunpack.c.l.b16 %v2403
        %v2444 = vunpack.c.l.b16 %v2404
        %v2445 = vunpack.c.l.b16 %v2405
        %v2446 = vunpack.c.l.b16 %v2406
        %v2447 = vunpack.c.l.b16 %v2407
        %v2448 = vunpack.c.l.b16 %v2408
        %v2449 = vunpack.c.l.b16 %v2409
        %v2450 = vunpack.c.l.b16 %v2410
        %v2451 = vunpack.c.l.b16 %v2411
        %v2452 = vunpack.c.l.b16 %v2412
        %v2453 = vunpack.c.l.b16 %v2413
        %v2454 = vunpack.c.l.b16 %v2414
        %v2455 = vunpack.c.l.b16 %v2415
        %v2456 = vunpack.c.l.b16 %v2416
        %v2457 = vunpack.c.l.b16 %v2417
        %v2458 = vunpack.c.l.b16 %v2418
        %v2459 = vunpack.c.l.b16 %v2419
        %v2460 = vunpack.c.l.b16 %v2420
        %v2461 = vpack.c.b16 %v2442, %v2441
        %v2462 = vpack.c.b16 %v2444, %v2443
        %v2463 = vpack.c.b16 %v2446, %v2445
        %v2464 = vpack.c.b16 %v2448, %v2447
        %v2465 = vpack.c.b16 %v2450, %v2449
        %v2466 = vpack.c.b16 %v2452, %v2451
        %v2467 = vpack.c.b16 %v2454, %v2453
        %v2468 = vpack.c.b16 %v2456, %v2455
        %v2469 = vpack.c.b16 %v2458, %v2457
        %v2470 = vpack.c.b16 %v2460, %v2459
        %v2472 = vshrl.u32 %v2461, 16
        %v2474 = vshll.u32 %v2461, 16
        %v2476 = vrot.slane %v2474, 1
        %v2477 = vor.u32 %v2472, %v2476
        %v2479 = vshrl.u32 %v2462, 16
        %v2481 = vshll.u32 %v2462, 16
        %v2483 = vrot.slane %v2481, 1
        %v2484 = vor.u32 %v2479, %v2483
        %v2486 = vshrl.u32 %v2463, 16
        %v2488 = vshll.u32 %v2463, 16
        %v2490 = vrot.slane %v2488, 1
        %v2491 = vor.u32 %v2486, %v2490
        %v2493 = vshrl.u32 %v2464, 16
        %v2495 = vshll.u32 %v2464, 16
        %v2497 = vrot.slane %v2495, 1
        %v2498 = vor.u32 %v2493, %v2497
        %v2500 = vshrl.u32 %v2465, 16
        %v2502 = vshll.u32 %v2465, 16
        %v2504 = vrot.slane %v2502, 1
        %v2505 = vor.u32 %v2500, %v2504
        %v2507 = vshrl.u32 %v2466, 16
        %v2509 = vshll.u32 %v2466, 16
        %v2511 = vrot.slane %v2509, 1
        %v2512 = vor.u32 %v2507, %v2511
        %v2514 = vshrl.u32 %v2467, 16
        %v2516 = vshll.u32 %v2467, 16
        %v2518 = vrot.slane %v2516, 1
        %v2519 = vor.u32 %v2514, %v2518
        %v2521 = vshrl.u32 %v2468, 16
        %v2523 = vshll.u32 %v2468, 16
        %v2525 = vrot.slane %v2523, 1
        %v2526 = vor.u32 %v2521, %v2525
        %v2528 = vshrl.u32 %v2469, 16
        %v2530 = vshll.u32 %v2469, 16
        %v2532 = vrot.slane %v2530, 1
        %v2533 = vor.u32 %v2528, %v2532
        %v2535 = vshrl.u32 %v2470, 16
        %v2537 = vshll.u32 %v2470, 16
        %v2539 = vrot.slane %v2537, 1
        %v2540 = vor.u32 %v2535, %v2539
        %2541 = vrot.lane.b32.xlu0 %v2477, 8
        %v2542 = vpop.permute.xlu0 %2541
        %2543 = vrot.lane.b32.xlu0 %v2484, 8
        %v2544 = vpop.permute.xlu0 %2543
        %2545 = vrot.lane.b32.xlu0 %v2491, 8
        %v2546 = vpop.permute.xlu0 %2545
        %2547 = vrot.lane.b32.xlu0 %v2498, 8
        %v2548 = vpop.permute.xlu0 %2547
        %2549 = vrot.lane.b32.xlu0 %v2505, 8
        %v2550 = vpop.permute.xlu0 %2549
        %2551 = vrot.lane.b32.xlu0 %v2512, 8
        %v2552 = vpop.permute.xlu0 %2551
        %2553 = vrot.lane.b32.xlu0 %v2519, 8
        %v2554 = vpop.permute.xlu0 %2553
        %2555 = vrot.lane.b32.xlu0 %v2526, 8
        %v2556 = vpop.permute.xlu0 %2555
        %2557 = vrot.lane.b32.xlu0 %v2533, 8
        %v2558 = vpop.permute.xlu0 %2557
        %2559 = vrot.lane.b32.xlu0 %v2540, 8
        %v2560 = vpop.permute.xlu0 %2559
        %v2561 = vrot.slane %v2461, 1
        %v2562 = vrot.slane %v2462, 1
        %v2563 = vrot.slane %v2463, 1
        %v2564 = vrot.slane %v2464, 1
        %v2565 = vrot.slane %v2465, 1
        %v2566 = vrot.slane %v2466, 1
        %v2567 = vrot.slane %v2467, 1
        %v2568 = vrot.slane %v2468, 1
        %v2569 = vrot.slane %v2469, 1
        %v2570 = vrot.slane %v2470, 1
        %2571 = vrot.lane.b32.xlu0 %v2561, 16
        %v2572 = vpop.permute.xlu0 %2571
        %2573 = vrot.lane.b32.xlu0 %v2562, 16
        %v2574 = vpop.permute.xlu0 %2573
        %2575 = vrot.lane.b32.xlu0 %v2563, 16
        %v2576 = vpop.permute.xlu0 %2575
        %2577 = vrot.lane.b32.xlu0 %v2564, 16
        %v2578 = vpop.permute.xlu0 %2577
        %2579 = vrot.lane.b32.xlu0 %v2565, 16
        %v2580 = vpop.permute.xlu0 %2579
        %2581 = vrot.lane.b32.xlu0 %v2566, 16
        %v2582 = vpop.permute.xlu0 %2581
        %2583 = vrot.lane.b32.xlu0 %v2567, 16
        %v2584 = vpop.permute.xlu0 %2583
        %2585 = vrot.lane.b32.xlu0 %v2568, 16
        %v2586 = vpop.permute.xlu0 %2585
        %2587 = vrot.lane.b32.xlu0 %v2569, 16
        %v2588 = vpop.permute.xlu0 %2587
        %2589 = vrot.lane.b32.xlu0 %v2570, 16
        %v2590 = vpop.permute.xlu0 %2589
        %vm2591 = vcmask 64512
        %v2594 = vsel %vm2591, %v2401, %v2542
        %v2597 = vsel %vm2591, %v2403, %v2544
        %v2600 = vsel %vm2591, %v2405, %v2546
        %v2603 = vsel %vm2591, %v2407, %v2548
        %v2606 = vsel %vm2591, %v2409, %v2550
        %v2609 = vsel %vm2591, %v2411, %v2552
        %v2612 = vsel %vm2591, %v2413, %v2554
        %v2615 = vsel %vm2591, %v2415, %v2556
        %v2618 = vsel %vm2591, %v2417, %v2558
        %v2621 = vsel %vm2591, %v2419, %v2560
        %vm2622 = vcmask 130048
        %v2624 = vsel %vm2622, %v2594, %v2572
        %v2626 = vsel %vm2622, %v2597, %v2574
        %v2628 = vsel %vm2622, %v2600, %v2576
        %v2630 = vsel %vm2622, %v2603, %v2578
        %v2632 = vsel %vm2622, %v2606, %v2580
        %v2634 = vsel %vm2622, %v2609, %v2582
        %v2636 = vsel %vm2622, %v2612, %v2584
        %v2638 = vsel %vm2622, %v2615, %v2586
        %v2640 = vsel %vm2622, %v2618, %v2588
        %v2642 = vsel %vm2622, %v2621, %v2590
        %v2643 = vld [vmem:[%s4] sm:$0xf]
        %v2644 = vld [vmem:[%s4 + $0x4] sm:$0xf]
        %v2645 = vld [vmem:[%s4 + $0x8] sm:$0xf]
        %s2646 = scalar_lea.vmem %s4, 12
        %v2647 = vld [vmem:[%s2646] sm:$0xf]
        %v2648 = vld [vmem:[%s2646 + $0x4] sm:$0xf]
        %v2649 = vld [vmem:[%s2646 + $0x8] sm:$0xf]
        %v2658 = vunpack.c.l.b16 %v2626
        %v2659 = vunpack.c.l.b16 %v2628
        %v2660 = vunpack.c.l.b16 %v2630
        %v2661 = vunpack.c.l.b16 %v2632
        %v2662 = vunpack.c.l.b16 %v2634
        %v2663 = vunpack.c.l.b16 %v2636
        %v2664 = vunpack.c.l.b16 %v2638
        %v2665 = vunpack.c.l.b16 %v2640
        %v2666 = vpack.c.b16 %v2659, %v2658
        %v2667 = vpack.c.b16 %v2661, %v2660
        %v2668 = vpack.c.b16 %v2663, %v2662
        %v2669 = vpack.c.b16 %v2665, %v2664
        %v2673 = vunpack.c.l.b16 %v2647
        %v2674 = vunpack.c.l.b16 %v2648
        %v2675 = vunpack.c.l.b16 %v2649
        %v2676 = vpack.c.b16 %v2674, %v2673
        %v2677 = vpack.c.b16 %v2675, %v2675
        %vm2679 = vcmask 195584
        %v2681 = vsel %vm2679, %v2666, 0
        %v2684 = vsel %vm2679, %v2667, 0
        %v2687 = vsel %vm2679, %v2668, 0
        %v2690 = vsel %vm2679, %v2669, 0
        %vm2692 = vcmask 1043456
        %v2694 = vsel %vm2692, %v2677, 0
        %2696 = vmatprep.subr.bf16.mxu0 0
        %2697 = vmatpush1.bf16.msra.mxu0 %v2676
        %2698 = vmatprep.subr.bf16.mxu0 0
        %2699 = vmatpush1.bf16.msra.mxu0 %v2694
        %2700 = vmatprep.subr.bf16.mxu0 0
        %2701 = vmatpush1.bf16.msra.mxu0 0
        %2702 = vmatprep.subr.bf16.mxu0 0
        %2703 = vmatpush1.bf16.msra.mxu0 0
        %2704 = vmatprep.subr.bf16.mxu0 0
        %2705 = vmatpush1.bf16.msra.mxu0 0
        %2706 = vmatprep.subr.bf16.mxu0 0
        %2707 = vmatpush1.bf16.msra.mxu0 0
        %2708 = vmatprep.subr.bf16.mxu0 0
        %2709 = vmatpush1.bf16.msra.mxu0 0
        %2710 = vmatprep.subr.bf16.mxu0 0
        %2711 = vmatpush1.bf16.msra.mxu0 0
        %2712 = vmatprep.subr.bf16.mxu0 0
        %2713 = vmatpush1.bf16.msra.mxu0 0
        %2714 = vmatprep.subr.bf16.mxu0 0
        %2715 = vmatpush1.bf16.msra.mxu0 0
        %2716 = vmatprep.subr.bf16.mxu0 0
        %2717 = vmatpush1.bf16.msra.mxu0 0
        %2718 = vmatprep.subr.bf16.mxu0 0
        %2719 = vmatpush1.bf16.msra.mxu0 0
        %2720 = vmatprep.subr.bf16.mxu0 0
        %2721 = vmatpush1.bf16.msra.mxu0 0
        %2722 = vmatprep.subr.bf16.mxu0 0
        %2723 = vmatpush1.bf16.msra.mxu0 0
        %2724 = vmatprep.subr.bf16.mxu0 0
        %2725 = vmatpush1.bf16.msra.mxu0 0
        %2726 = vmatprep.subr.bf16.mxu0 0
        %2727 = vmatpush1.bf16.msra.mxu0 0
        %2728 = vmatprep.mubr.bf16.mxu0 0
        %2729 = vmatmul.mubr.bf16.gmra.mrb[0].mxu0 %v2681
        %v2730 = vpop.f32.mrb[0].mxu0
        %v2731 = vadd.f32 0.0, %v2730
        %v2732 = vpop.f32.mrb[0].mxu0
        %v2733 = vpop.f32.mrb[0].mxu0
        %v2734 = vadd.f32 0.0, %v2733
        %v2735 = vpop.f32.mrb[0].mxu0
        %2736 = vmatprep.mubr.bf16.mxu0 0
        %2737 = vmatmul.mubr.bf16.gmra.mrb[0].mxu0 %v2684
        %v2738 = vpop.f32.mrb[0].mxu0
        %v2739 = vadd.f32 0.0, %v2738
        %v2740 = vpop.f32.mrb[0].mxu0
        %v2741 = vpop.f32.mrb[0].mxu0
        %v2742 = vadd.f32 0.0, %v2741
        %v2743 = vpop.f32.mrb[0].mxu0
        %2744 = vmatprep.mubr.bf16.mxu0 0
        %2745 = vmatmul.mubr.bf16.gmra.mrb[0].mxu0 %v2687
        %v2746 = vpop.f32.mrb[0].mxu0
        %v2747 = vadd.f32 0.0, %v2746
        %v2748 = vpop.f32.mrb[0].mxu0
        %v2749 = vpop.f32.mrb[0].mxu0
        %v2750 = vadd.f32 0.0, %v2749
        %v2751 = vpop.f32.mrb[0].mxu0
        %2752 = vmatprep.mubr.bf16.mxu0 0
        %2753 = vmatmul.mubr.bf16.gmra.mrb[0].mxu0 %v2690
        %v2754 = vpop.f32.mrb[0].mxu0
        %v2755 = vadd.f32 0.0, %v2754
        %v2756 = vpop.f32.mrb[0].mxu0
        %v2757 = vpop.f32.mrb[0].mxu0
        %v2758 = vadd.f32 0.0, %v2757
        %v2759 = vpop.f32.mrb[0].mxu0
        %2760 = vdwg.mxu0
        %v2762 = vunpack.c.l.b16 %v2624
        %v2763 = vpack.c.b16 %v2658, %v2762
        %v2764 = vpack.c.b16 %v2660, %v2659
        %v2765 = vpack.c.b16 %v2662, %v2661
        %v2766 = vpack.c.b16 %v2664, %v2663
        %v2770 = vunpack.c.l.b16 %v2643
        %v2771 = vunpack.c.l.b16 %v2644
        %v2772 = vunpack.c.l.b16 %v2645
        %v2773 = vpack.c.b16 %v2771, %v2770
        %v2774 = vpack.c.b16 %v2772, %v2772
        %v2777 = vsel %vm2679, %v2763, 0
        %v2780 = vsel %vm2679, %v2764, 0
        %v2783 = vsel %vm2679, %v2765, 0
        %v2786 = vsel %vm2679, %v2766, 0
        %v2789 = vsel %vm2692, %v2774, 0
        %2791 = vmatprep.subr.bf16.mxu0 0
        %2792 = vmatpush1.bf16.msra.mxu0 %v2773
        %2793 = vmatprep.subr.bf16.mxu0 0
        %2794 = vmatpush1.bf16.msra.mxu0 %v2789
        %2795 = vmatprep.subr.bf16.mxu0 0
        %2796 = vmatpush1.bf16.msra.mxu0 0
        %2797 = vmatprep.subr.bf16.mxu0 0
        %2798 = vmatpush1.bf16.msra.mxu0 0
        %2799 = vmatprep.subr.bf16.mxu0 0
        %2800 = vmatpush1.bf16.msra.mxu0 0
        %2801 = vmatprep.subr.bf16.mxu0 0
        %2802 = vmatpush1.bf16.msra.mxu0 0
        %2803 = vmatprep.subr.bf16.mxu0 0
        %2804 = vmatpush1.bf16.msra.mxu0 0
        %2805 = vmatprep.subr.bf16.mxu0 0
        %2806 = vmatpush1.bf16.msra.mxu0 0
        %2807 = vmatprep.subr.bf16.mxu0 0
        %2808 = vmatpush1.bf16.msra.mxu0 0
        %2809 = vmatprep.subr.bf16.mxu0 0
        %2810 = vmatpush1.bf16.msra.mxu0 0
        %2811 = vmatprep.subr.bf16.mxu0 0
        %2812 = vmatpush1.bf16.msra.mxu0 0
        %2813 = vmatprep.subr.bf16.mxu0 0
        %2814 = vmatpush1.bf16.msra.mxu0 0
        %2815 = vmatprep.subr.bf16.mxu0 0
        %2816 = vmatpush1.bf16.msra.mxu0 0
        %2817 = vmatprep.subr.bf16.mxu0 0
        %2818 = vmatpush1.bf16.msra.mxu0 0
        %2819 = vmatprep.subr.bf16.mxu0 0
        %2820 = vmatpush1.bf16.msra.mxu0 0
        %2821 = vmatprep.subr.bf16.mxu0 0
        %2822 = vmatpush1.bf16.msra.mxu0 0
        %2823 = vmatprep.mubr.bf16.mxu0 0
        %2824 = vmatmul.mubr.bf16.gmra.mrb[0].mxu0 %v2777
        %v2825 = vpop.f32.mrb[0].mxu0
        %v2826 = vadd.f32 %v2731, %v2825
        %v2827 = vpop.f32.mrb[0].mxu0
        %v2828 = vpop.f32.mrb[0].mxu0
        %v2829 = vadd.f32 %v2734, %v2828
        %v2830 = vpop.f32.mrb[0].mxu0
        %2831 = vmatprep.mubr.bf16.mxu0 0
        %2832 = vmatmul.mubr.bf16.gmra.mrb[0].mxu0 %v2780
        %v2833 = vpop.f32.mrb[0].mxu0
        %v2834 = vadd.f32 %v2739, %v2833
        %v2835 = vpop.f32.mrb[0].mxu0
        %v2836 = vpop.f32.mrb[0].mxu0
        %v2837 = vadd.f32 %v2742, %v2836
        %v2838 = vpop.f32.mrb[0].mxu0
        %2839 = vmatprep.mubr.bf16.mxu0 0
        %2840 = vmatmul.mubr.bf16.gmra.mrb[0].mxu0 %v2783
        %v2841 = vpop.f32.mrb[0].mxu0
        %v2842 = vadd.f32 %v2747, %v2841
        %v2843 = vpop.f32.mrb[0].mxu0
        %v2844 = vpop.f32.mrb[0].mxu0
        %v2845 = vadd.f32 %v2750, %v2844
        %v2846 = vpop.f32.mrb[0].mxu0
        %2847 = vmatprep.mubr.bf16.mxu0 0
        %2848 = vmatmul.mubr.bf16.gmra.mrb[0].mxu0 %v2786
        %v2849 = vpop.f32.mrb[0].mxu0
        %v2850 = vadd.f32 %v2755, %v2849
        %v2851 = vpop.f32.mrb[0].mxu0
        %v2852 = vpop.f32.mrb[0].mxu0
        %v2853 = vadd.f32 %v2758, %v2852
        %v2854 = vpop.f32.mrb[0].mxu0
        %2855 = vdwg.mxu0
        %s2856 = scalar_lea.vmem %s4, 24
        %v2857 = vld [vmem:[%s2856] sm:$0xf]
        %v2858 = vld [vmem:[%s2856 + $0x4] sm:$0xf]
        %v2859 = vld [vmem:[%s2856 + $0x8] sm:$0xf]
        %v2861 = vunpack.c.l.b16 %v2642
        %v2862 = vpack.c.b16 %v2861, %v2665
        %v2866 = vunpack.c.l.b16 %v2857
        %v2867 = vunpack.c.l.b16 %v2858
        %v2868 = vunpack.c.l.b16 %v2859
        %v2869 = vpack.c.b16 %v2867, %v2866
        %v2870 = vpack.c.b16 %v2868, %v2868
        %v2873 = vsel %vm2679, %v2862, 0
        %v2876 = vsel %vm2692, %v2870, 0
        %2878 = vmatprep.subr.bf16.mxu0 0
        %2879 = vmatpush1.bf16.msra.mxu0 %v2869
        %2880 = vmatprep.subr.bf16.mxu0 0
        %2881 = vmatpush1.bf16.msra.mxu0 %v2876
        %2882 = vmatprep.subr.bf16.mxu0 0
        %2883 = vmatpush1.bf16.msra.mxu0 0
        %2884 = vmatprep.subr.bf16.mxu0 0
        %2885 = vmatpush1.bf16.msra.mxu0 0
        %2886 = vmatprep.subr.bf16.mxu0 0
        %2887 = vmatpush1.bf16.msra.mxu0 0
        %2888 = vmatprep.subr.bf16.mxu0 0
        %2889 = vmatpush1.bf16.msra.mxu0 0
        %2890 = vmatprep.subr.bf16.mxu0 0
        %2891 = vmatpush1.bf16.msra.mxu0 0
        %2892 = vmatprep.subr.bf16.mxu0 0
        %2893 = vmatpush1.bf16.msra.mxu0 0
        %2894 = vmatprep.subr.bf16.mxu0 0
        %2895 = vmatpush1.bf16.msra.mxu0 0
        %2896 = vmatprep.subr.bf16.mxu0 0
        %2897 = vmatpush1.bf16.msra.mxu0 0
        %2898 = vmatprep.subr.bf16.mxu0 0
        %2899 = vmatpush1.bf16.msra.mxu0 0
        %2900 = vmatprep.subr.bf16.mxu0 0
        %2901 = vmatpush1.bf16.msra.mxu0 0
        %2902 = vmatprep.subr.bf16.mxu0 0
        %2903 = vmatpush1.bf16.msra.mxu0 0
        %2904 = vmatprep.subr.bf16.mxu0 0
        %2905 = vmatpush1.bf16.msra.mxu0 0
        %2906 = vmatprep.subr.bf16.mxu0 0
        %2907 = vmatpush1.bf16.msra.mxu0 0
        %2908 = vmatprep.subr.bf16.mxu0 0
        %2909 = vmatpush1.bf16.msra.mxu0 0
        %2910 = vmatprep.mubr.bf16.mxu0 0
        %2911 = vmatmul.mubr.bf16.gmra.mrb[0].mxu0 %v2780
        %v2912 = vpop.f32.mrb[0].mxu0
        %v2913 = vadd.f32 0.0, %v2912
        %v2914 = vpop.f32.mrb[0].mxu0
        %v2915 = vpop.f32.mrb[0].mxu0
        %v2916 = vadd.f32 0.0, %v2915
        %v2917 = vpop.f32.mrb[0].mxu0
        %2918 = vmatprep.mubr.bf16.mxu0 0
        %2919 = vmatmul.mubr.bf16.gmra.mrb[0].mxu0 %v2783
        %v2920 = vpop.f32.mrb[0].mxu0
        %v2921 = vadd.f32 0.0, %v2920
        %v2922 = vpop.f32.mrb[0].mxu0
        %v2923 = vpop.f32.mrb[0].mxu0
        %v2924 = vadd.f32 0.0, %v2923
        %v2925 = vpop.f32.mrb[0].mxu0
        %2926 = vmatprep.mubr.bf16.mxu0 0
        %2927 = vmatmul.mubr.bf16.gmra.mrb[0].mxu0 %v2786
        %v2928 = vpop.f32.mrb[0].mxu0
        %v2929 = vadd.f32 0.0, %v2928
        %v2930 = vpop.f32.mrb[0].mxu0
        %v2931 = vpop.f32.mrb[0].mxu0
        %v2932 = vadd.f32 0.0, %v2931
        %v2933 = vpop.f32.mrb[0].mxu0
        %2934 = vmatprep.mubr.bf16.mxu0 0
        %2935 = vmatmul.mubr.bf16.gmra.mrb[0].mxu0 %v2873
        %v2936 = vpop.f32.mrb[0].mxu0
        %v2937 = vadd.f32 0.0, %v2936
        %v2938 = vpop.f32.mrb[0].mxu0
        %v2939 = vpop.f32.mrb[0].mxu0
        %v2940 = vadd.f32 0.0, %v2939
        %v2941 = vpop.f32.mrb[0].mxu0
        %2942 = vdwg.mxu0
        %v2943 = vadd.f32 %v2826, %v2913
        %v2944 = vadd.f32 %v2829, %v2916
        %v2945 = vadd.f32 %v2834, %v2921
        %v2946 = vadd.f32 %v2837, %v2924
        %v2947 = vadd.f32 %v2842, %v2929
        %v2948 = vadd.f32 %v2845, %v2932
        %v2949 = vadd.f32 %v2850, %v2937
        %v2950 = vadd.f32 %v2853, %v2940
        %s2951 = sadd.s32 %s23, 3
        %p2952 = scmp.lt.s32.totalorder %s2951, 0
        %s2953 = ssub.s32 0, %s2951
        %s2954 = scalar_select %p2952, %s2953, %s2951
        %s2955 = sdiv.u32.pop %s2954, 3
        %s2956 = srem.u32.pop %s2954, 3
        %s2957 = ssub.s32 0, %s2956
        %s2958 = scalar_select %p2952, %s2957, %s2956
        %p2959 = scmp.ne.s32.totalorder %s2958, 0
        %p2960 = scmp.lt.s32.totalorder %s2958, 0
        %p2961 = pnand %p2960, %p2959
        %p2962 = pneg %p2961
        %s2963 = sadd.s32 %s2958, 3
        %s2964 = scalar_select %p2962, %s2963, %s2958
        %s2965 = smul.u32 %s2964, 20
        %s2966 = smul.addr %s2965, 4
        %s2967 = scalar_lea.vmem [#allocation3], %s2966
        %v2968 = vld [vmem:[%s2967] sm:$0xf]
        %v2969 = vld [vmem:[%s2967 + $0x4] sm:$0x1]
        %v2970 = vld [vmem:[%s2967 + $0x8] sm:$0xf]
        %v2971 = vld [vmem:[%s2967 + $0xc] sm:$0x1]
        %v2972 = vld [vmem:[%s2967 + $0x10] sm:$0xf]
        %v2973 = vld [vmem:[%s2967 + $0x14] sm:$0x1]
        %v2974 = vld [vmem:[%s2967 + $0x18] sm:$0xf]
        %v2975 = vld [vmem:[%s2967 + $0x1c] sm:$0x1]
        %v2976 = vld [vmem:[%s2967 + $0x20] sm:$0xf]
        %v2977 = vld [vmem:[%s2967 + $0x24] sm:$0x1]
        %v2978 = vld [vmem:[%s2967 + $0x28] sm:$0xf]
        %v2979 = vld [vmem:[%s2967 + $0x2c] sm:$0x1]
        %v2980 = vld [vmem:[%s2967 + $0x30] sm:$0xf]
        %v2981 = vld [vmem:[%s2967 + $0x34] sm:$0x1]
        %v2982 = vld [vmem:[%s2967 + $0x38] sm:$0xf]
        %v2983 = vld [vmem:[%s2967 + $0x3c] sm:$0x1]
        %v2984 = vld [vmem:[%s2967 + $0x40] sm:$0xf]
        %v2985 = vld [vmem:[%s2967 + $0x44] sm:$0x1]
        %v2986 = vld [vmem:[%s2967 + $0x48] sm:$0xf]
        %v2987 = vld [vmem:[%s2967 + $0x4c] sm:$0x1]
        %v3008 = vunpack.c.l.b16 %v2968
        %v3009 = vunpack.c.l.b16 %v2969
        %v3010 = vunpack.c.l.b16 %v2970
        %v3011 = vunpack.c.l.b16 %v2971
        %v3012 = vunpack.c.l.b16 %v2972
        %v3013 = vunpack.c.l.b16 %v2973
        %v3014 = vunpack.c.l.b16 %v2974
        %v3015 = vunpack.c.l.b16 %v2975
        %v3016 = vunpack.c.l.b16 %v2976
        %v3017 = vunpack.c.l.b16 %v2977
        %v3018 = vunpack.c.l.b16 %v2978
        %v3019 = vunpack.c.l.b16 %v2979
        %v3020 = vunpack.c.l.b16 %v2980
        %v3021 = vunpack.c.l.b16 %v2981
        %v3022 = vunpack.c.l.b16 %v2982
        %v3023 = vunpack.c.l.b16 %v2983
        %v3024 = vunpack.c.l.b16 %v2984
        %v3025 = vunpack.c.l.b16 %v2985
        %v3026 = vunpack.c.l.b16 %v2986
        %v3027 = vunpack.c.l.b16 %v2987
        %v3028 = vpack.c.b16 %v3009, %v3008
        %v3029 = vpack.c.b16 %v3011, %v3010
        %v3030 = vpack.c.b16 %v3013, %v3012
        %v3031 = vpack.c.b16 %v3015, %v3014
        %v3032 = vpack.c.b16 %v3017, %v3016
        %v3033 = vpack.c.b16 %v3019, %v3018
        %v3034 = vpack.c.b16 %v3021, %v3020
        %v3035 = vpack.c.b16 %v3023, %v3022
        %v3036 = vpack.c.b16 %v3025, %v3024
        %v3037 = vpack.c.b16 %v3027, %v3026
        %v3039 = vshrl.u32 %v3028, 16
        %v3041 = vshll.u32 %v3028, 16
        %v3043 = vrot.slane %v3041, 1
        %v3044 = vor.u32 %v3039, %v3043
        %v3046 = vshrl.u32 %v3029, 16
        %v3048 = vshll.u32 %v3029, 16
        %v3050 = vrot.slane %v3048, 1
        %v3051 = vor.u32 %v3046, %v3050
        %v3053 = vshrl.u32 %v3030, 16
        %v3055 = vshll.u32 %v3030, 16
        %v3057 = vrot.slane %v3055, 1
        %v3058 = vor.u32 %v3053, %v3057
        %v3060 = vshrl.u32 %v3031, 16
        %v3062 = vshll.u32 %v3031, 16
        %v3064 = vrot.slane %v3062, 1
        %v3065 = vor.u32 %v3060, %v3064
        %v3067 = vshrl.u32 %v3032, 16
        %v3069 = vshll.u32 %v3032, 16
        %v3071 = vrot.slane %v3069, 1
        %v3072 = vor.u32 %v3067, %v3071
        %v3074 = vshrl.u32 %v3033, 16
        %v3076 = vshll.u32 %v3033, 16
        %v3078 = vrot.slane %v3076, 1
        %v3079 = vor.u32 %v3074, %v3078
        %v3081 = vshrl.u32 %v3034, 16
        %v3083 = vshll.u32 %v3034, 16
        %v3085 = vrot.slane %v3083, 1
        %v3086 = vor.u32 %v3081, %v3085
        %v3088 = vshrl.u32 %v3035, 16
        %v3090 = vshll.u32 %v3035, 16
        %v3092 = vrot.slane %v3090, 1
        %v3093 = vor.u32 %v3088, %v3092
        %v3095 = vshrl.u32 %v3036, 16
        %v3097 = vshll.u32 %v3036, 16
        %v3099 = vrot.slane %v3097, 1
        %v3100 = vor.u32 %v3095, %v3099
        %v3102 = vshrl.u32 %v3037, 16
        %v3104 = vshll.u32 %v3037, 16
        %v3106 = vrot.slane %v3104, 1
        %v3107 = vor.u32 %v3102, %v3106
        %3108 = vrot.lane.b32.xlu0 %v3044, 8
        %v3109 = vpop.permute.xlu0 %3108
        %3110 = vrot.lane.b32.xlu0 %v3051, 8
        %v3111 = vpop.permute.xlu0 %3110
        %3112 = vrot.lane.b32.xlu0 %v3058, 8
        %v3113 = vpop.permute.xlu0 %3112
        %3114 = vrot.lane.b32.xlu0 %v3065, 8
        %v3115 = vpop.permute.xlu0 %3114
        %3116 = vrot.lane.b32.xlu0 %v3072, 8
        %v3117 = vpop.permute.xlu0 %3116
        %3118 = vrot.lane.b32.xlu0 %v3079, 8
        %v3119 = vpop.permute.xlu0 %3118
        %3120 = vrot.lane.b32.xlu0 %v3086, 8
        %v3121 = vpop.permute.xlu0 %3120
        %3122 = vrot.lane.b32.xlu0 %v3093, 8
        %v3123 = vpop.permute.xlu0 %3122
        %3124 = vrot.lane.b32.xlu0 %v3100, 8
        %v3125 = vpop.permute.xlu0 %3124
        %3126 = vrot.lane.b32.xlu0 %v3107, 8
        %v3127 = vpop.permute.xlu0 %3126
        %v3128 = vrot.slane %v3028, 1
        %v3129 = vrot.slane %v3029, 1
        %v3130 = vrot.slane %v3030, 1
        %v3131 = vrot.slane %v3031, 1
        %v3132 = vrot.slane %v3032, 1
        %v3133 = vrot.slane %v3033, 1
        %v3134 = vrot.slane %v3034, 1
        %v3135 = vrot.slane %v3035, 1
        %v3136 = vrot.slane %v3036, 1
        %v3137 = vrot.slane %v3037, 1
        %3138 = vrot.lane.b32.xlu0 %v3128, 16
        %v3139 = vpop.permute.xlu0 %3138
        %3140 = vrot.lane.b32.xlu0 %v3129, 16
        %v3141 = vpop.permute.xlu0 %3140
        %3142 = vrot.lane.b32.xlu0 %v3130, 16
        %v3143 = vpop.permute.xlu0 %3142
        %3144 = vrot.lane.b32.xlu0 %v3131, 16
        %v3145 = vpop.permute.xlu0 %3144
        %3146 = vrot.lane.b32.xlu0 %v3132, 16
        %v3147 = vpop.permute.xlu0 %3146
        %3148 = vrot.lane.b32.xlu0 %v3133, 16
        %v3149 = vpop.permute.xlu0 %3148
        %3150 = vrot.lane.b32.xlu0 %v3134, 16
        %v3151 = vpop.permute.xlu0 %3150
        %3152 = vrot.lane.b32.xlu0 %v3135, 16
        %v3153 = vpop.permute.xlu0 %3152
        %3154 = vrot.lane.b32.xlu0 %v3136, 16
        %v3155 = vpop.permute.xlu0 %3154
        %3156 = vrot.lane.b32.xlu0 %v3137, 16
        %v3157 = vpop.permute.xlu0 %3156
        %v3160 = vsel %vm2591, %v2968, %v3109
        %v3163 = vsel %vm2591, %v2970, %v3111
        %v3166 = vsel %vm2591, %v2972, %v3113
        %v3169 = vsel %vm2591, %v2974, %v3115
        %v3172 = vsel %vm2591, %v2976, %v3117
        %v3175 = vsel %vm2591, %v2978, %v3119
        %v3178 = vsel %vm2591, %v2980, %v3121
        %v3181 = vsel %vm2591, %v2982, %v3123
        %v3184 = vsel %vm2591, %v2984, %v3125
        %v3187 = vsel %vm2591, %v2986, %v3127
        %v3189 = vsel %vm2622, %v3160, %v3139
        %v3191 = vsel %vm2622, %v3163, %v3141
        %v3193 = vsel %vm2622, %v3166, %v3143
        %v3195 = vsel %vm2622, %v3169, %v3145
        %v3197 = vsel %vm2622, %v3172, %v3147
        %v3199 = vsel %vm2622, %v3175, %v3149
        %v3201 = vsel %vm2622, %v3178, %v3151
        %v3203 = vsel %vm2622, %v3181, %v3153
        %v3205 = vsel %vm2622, %v3184, %v3155
        %v3207 = vsel %vm2622, %v3187, %v3157
        %s3208 = scalar_lea.vmem %s4, 36
        %v3209 = vld [vmem:[%s3208] sm:$0xf]
        %v3210 = vld [vmem:[%s3208 + $0x4] sm:$0xf]
        %v3211 = vld [vmem:[%s3208 + $0x8] sm:$0xf]
        %s3212 = scalar_lea.vmem %s4, 48
        %v3213 = vld [vmem:[%s3212] sm:$0xf]
        %v3214 = vld [vmem:[%s3212 + $0x4] sm:$0xf]
        %v3215 = vld [vmem:[%s3212 + $0x8] sm:$0xf]
        %v3224 = vunpack.c.l.b16 %v3191
        %v3225 = vunpack.c.l.b16 %v3193
        %v3226 = vunpack.c.l.b16 %v3195
        %v3227 = vunpack.c.l.b16 %v3197
        %v3228 = vunpack.c.l.b16 %v3199
        %v3229 = vunpack.c.l.b16 %v3201
        %v3230 = vunpack.c.l.b16 %v3203
        %v3231 = vunpack.c.l.b16 %v3205
        %v3232 = vpack.c.b16 %v3225, %v3224
        %v3233 = vpack.c.b16 %v3227, %v3226
        %v3234 = vpack.c.b16 %v3229, %v3228
        %v3235 = vpack.c.b16 %v3231, %v3230
        %v3239 = vunpack.c.l.b16 %v3213
        %v3240 = vunpack.c.l.b16 %v3214
        %v3241 = vunpack.c.l.b16 %v3215
        %v3242 = vpack.c.b16 %v3240, %v3239
        %v3243 = vpack.c.b16 %v3241, %v3241
        %v3246 = vsel %vm2679, %v3232, 0
        %v3249 = vsel %vm2679, %v3233, 0
        %v3252 = vsel %vm2679, %v3234, 0
        %v3255 = vsel %vm2679, %v3235, 0
        %v3258 = vsel %vm2692, %v3243, 0
        %3260 = vmatprep.subr.bf16.mxu0 0
        %3261 = vmatpush1.bf16.msra.mxu0 %v3242
        %3262 = vmatprep.subr.bf16.mxu0 0
        %3263 = vmatpush1.bf16.msra.mxu0 %v3258
        %3264 = vmatprep.subr.bf16.mxu0 0
        %3265 = vmatpush1.bf16.msra.mxu0 0
        %3266 = vmatprep.subr.bf16.mxu0 0
        %3267 = vmatpush1.bf16.msra.mxu0 0
        %3268 = vmatprep.subr.bf16.mxu0 0
        %3269 = vmatpush1.bf16.msra.mxu0 0
        %3270 = vmatprep.subr.bf16.mxu0 0
        %3271 = vmatpush1.bf16.msra.mxu0 0
        %3272 = vmatprep.subr.bf16.mxu0 0
        %3273 = vmatpush1.bf16.msra.mxu0 0
        %3274 = vmatprep.subr.bf16.mxu0 0
        %3275 = vmatpush1.bf16.msra.mxu0 0
        %3276 = vmatprep.subr.bf16.mxu0 0
        %3277 = vmatpush1.bf16.msra.mxu0 0
        %3278 = vmatprep.subr.bf16.mxu0 0
        %3279 = vmatpush1.bf16.msra.mxu0 0
        %3280 = vmatprep.subr.bf16.mxu0 0
        %3281 = vmatpush1.bf16.msra.mxu0 0
        %3282 = vmatprep.subr.bf16.mxu0 0
        %3283 = vmatpush1.bf16.msra.mxu0 0
        %3284 = vmatprep.subr.bf16.mxu0 0
        %3285 = vmatpush1.bf16.msra.mxu0 0
        %3286 = vmatprep.subr.bf16.mxu0 0
        %3287 = vmatpush1.bf16.msra.mxu0 0
        %3288 = vmatprep.subr.bf16.mxu0 0
        %3289 = vmatpush1.bf16.msra.mxu0 0
        %3290 = vmatprep.subr.bf16.mxu0 0
        %3291 = vmatpush1.bf16.msra.mxu0 0
        %3292 = vmatprep.mubr.bf16.mxu0 0
        %3293 = vmatmul.mubr.bf16.gmra.mrb[0].mxu0 %v3246
        %v3294 = vpop.f32.mrb[0].mxu0
        %v3295 = vadd.f32 0.0, %v3294
        %v3296 = vpop.f32.mrb[0].mxu0
        %v3297 = vpop.f32.mrb[0].mxu0
        %v3298 = vadd.f32 0.0, %v3297
        %v3299 = vpop.f32.mrb[0].mxu0
        %3300 = vmatprep.mubr.bf16.mxu0 0
        %3301 = vmatmul.mubr.bf16.gmra.mrb[0].mxu0 %v3249
        %v3302 = vpop.f32.mrb[0].mxu0
        %v3303 = vadd.f32 0.0, %v3302
        %v3304 = vpop.f32.mrb[0].mxu0
        %v3305 = vpop.f32.mrb[0].mxu0
        %v3306 = vadd.f32 0.0, %v3305
        %v3307 = vpop.f32.mrb[0].mxu0
        %3308 = vmatprep.mubr.bf16.mxu0 0
        %3309 = vmatmul.mubr.bf16.gmra.mrb[0].mxu0 %v3252
        %v3310 = vpop.f32.mrb[0].mxu0
        %v3311 = vadd.f32 0.0, %v3310
        %v3312 = vpop.f32.mrb[0].mxu0
        %v3313 = vpop.f32.mrb[0].mxu0
        %v3314 = vadd.f32 0.0, %v3313
        %v3315 = vpop.f32.mrb[0].mxu0
        %3316 = vmatprep.mubr.bf16.mxu0 0
        %3317 = vmatmul.mubr.bf16.gmra.mrb[0].mxu0 %v3255
        %v3318 = vpop.f32.mrb[0].mxu0
        %v3319 = vadd.f32 0.0, %v3318
        %v3320 = vpop.f32.mrb[0].mxu0
        %v3321 = vpop.f32.mrb[0].mxu0
        %v3322 = vadd.f32 0.0, %v3321
        %v3323 = vpop.f32.mrb[0].mxu0
        %3324 = vdwg.mxu0
        %v3326 = vunpack.c.l.b16 %v3189
        %v3327 = vpack.c.b16 %v3224, %v3326
        %v3328 = vpack.c.b16 %v3226, %v3225
        %v3329 = vpack.c.b16 %v3228, %v3227
        %v3330 = vpack.c.b16 %v3230, %v3229
        %v3334 = vunpack.c.l.b16 %v3209
        %v3335 = vunpack.c.l.b16 %v3210
        %v3336 = vunpack.c.l.b16 %v3211
        %v3337 = vpack.c.b16 %v3335, %v3334
        %v3338 = vpack.c.b16 %v3336, %v3336
        %v3341 = vsel %vm2679, %v3327, 0
        %v3344 = vsel %vm2679, %v3328, 0
        %v3347 = vsel %vm2679, %v3329, 0
        %v3350 = vsel %vm2679, %v3330, 0
        %v3353 = vsel %vm2692, %v3338, 0
        %3355 = vmatprep.subr.bf16.mxu0 0
        %3356 = vmatpush1.bf16.msra.mxu0 %v3337
        %3357 = vmatprep.subr.bf16.mxu0 0
        %3358 = vmatpush1.bf16.msra.mxu0 %v3353
        %3359 = vmatprep.subr.bf16.mxu0 0
        %3360 = vmatpush1.bf16.msra.mxu0 0
        %3361 = vmatprep.subr.bf16.mxu0 0
        %3362 = vmatpush1.bf16.msra.mxu0 0
        %3363 = vmatprep.subr.bf16.mxu0 0
        %3364 = vmatpush1.bf16.msra.mxu0 0
        %3365 = vmatprep.subr.bf16.mxu0 0
        %3366 = vmatpush1.bf16.msra.mxu0 0
        %3367 = vmatprep.subr.bf16.mxu0 0
        %3368 = vmatpush1.bf16.msra.mxu0 0
        %3369 = vmatprep.subr.bf16.mxu0 0
        %3370 = vmatpush1.bf16.msra.mxu0 0
        %3371 = vmatprep.subr.bf16.mxu0 0
        %3372 = vmatpush1.bf16.msra.mxu0 0
        %3373 = vmatprep.subr.bf16.mxu0 0
        %3374 = vmatpush1.bf16.msra.mxu0 0
        %3375 = vmatprep.subr.bf16.mxu0 0
        %3376 = vmatpush1.bf16.msra.mxu0 0
        %3377 = vmatprep.subr.bf16.mxu0 0
        %3378 = vmatpush1.bf16.msra.mxu0 0
        %3379 = vmatprep.subr.bf16.mxu0 0
        %3380 = vmatpush1.bf16.msra.mxu0 0
        %3381 = vmatprep.subr.bf16.mxu0 0
        %3382 = vmatpush1.bf16.msra.mxu0 0
        %3383 = vmatprep.subr.bf16.mxu0 0
        %3384 = vmatpush1.bf16.msra.mxu0 0
        %3385 = vmatprep.subr.bf16.mxu0 0
        %3386 = vmatpush1.bf16.msra.mxu0 0
        %3387 = vmatprep.mubr.bf16.mxu0 0
        %3388 = vmatmul.mubr.bf16.gmra.mrb[0].mxu0 %v3341
        %v3389 = vpop.f32.mrb[0].mxu0
        %v3390 = vadd.f32 %v3295, %v3389
        %v3391 = vpop.f32.mrb[0].mxu0
        %v3392 = vpop.f32.mrb[0].mxu0
        %v3393 = vadd.f32 %v3298, %v3392
        %v3394 = vpop.f32.mrb[0].mxu0
        %3395 = vmatprep.mubr.bf16.mxu0 0
        %3396 = vmatmul.mubr.bf16.gmra.mrb[0].mxu0 %v3344
        %v3397 = vpop.f32.mrb[0].mxu0
        %v3398 = vadd.f32 %v3303, %v3397
        %v3399 = vpop.f32.mrb[0].mxu0
        %v3400 = vpop.f32.mrb[0].mxu0
        %v3401 = vadd.f32 %v3306, %v3400
        %v3402 = vpop.f32.mrb[0].mxu0
        %3403 = vmatprep.mubr.bf16.mxu0 0
        %3404 = vmatmul.mubr.bf16.gmra.mrb[0].mxu0 %v3347
        %v3405 = vpop.f32.mrb[0].mxu0
        %v3406 = vadd.f32 %v3311, %v3405
        %v3407 = vpop.f32.mrb[0].mxu0
        %v3408 = vpop.f32.mrb[0].mxu0
        %v3409 = vadd.f32 %v3314, %v3408
        %v3410 = vpop.f32.mrb[0].mxu0
        %3411 = vmatprep.mubr.bf16.mxu0 0
        %3412 = vmatmul.mubr.bf16.gmra.mrb[0].mxu0 %v3350
        %v3413 = vpop.f32.mrb[0].mxu0
        %v3414 = vadd.f32 %v3319, %v3413
        %v3415 = vpop.f32.mrb[0].mxu0
        %v3416 = vpop.f32.mrb[0].mxu0
        %v3417 = vadd.f32 %v3322, %v3416
        %v3418 = vpop.f32.mrb[0].mxu0
        %3419 = vdwg.mxu0
        %s3420 = scalar_lea.vmem %s4, 60
        %v3421 = vld [vmem:[%s3420] sm:$0xf]
        %v3422 = vld [vmem:[%s3420 + $0x4] sm:$0xf]
        %v3423 = vld [vmem:[%s3420 + $0x8] sm:$0xf]
        %v3425 = vunpack.c.l.b16 %v3207
        %v3426 = vpack.c.b16 %v3425, %v3231
        %v3430 = vunpack.c.l.b16 %v3421
        %v3431 = vunpack.c.l.b16 %v3422
        %v3432 = vunpack.c.l.b16 %v3423
        %v3433 = vpack.c.b16 %v3431, %v3430
        %v3434 = vpack.c.b16 %v3432, %v3432
        %v3437 = vsel %vm2679, %v3426, 0
        %v3440 = vsel %vm2692, %v3434, 0
        %3442 = vmatprep.subr.bf16.mxu0 0
        %3443 = vmatpush1.bf16.msra.mxu0 %v3433
        %3444 = vmatprep.subr.bf16.mxu0 0
        %3445 = vmatpush1.bf16.msra.mxu0 %v3440
        %3446 = vmatprep.subr.bf16.mxu0 0
        %3447 = vmatpush1.bf16.msra.mxu0 0
        %3448 = vmatprep.subr.bf16.mxu0 0
        %3449 = vmatpush1.bf16.msra.mxu0 0
        %3450 = vmatprep.subr.bf16.mxu0 0
        %3451 = vmatpush1.bf16.msra.mxu0 0
        %3452 = vmatprep.subr.bf16.mxu0 0
        %3453 = vmatpush1.bf16.msra.mxu0 0
        %3454 = vmatprep.subr.bf16.mxu0 0
        %3455 = vmatpush1.bf16.msra.mxu0 0
        %3456 = vmatprep.subr.bf16.mxu0 0
        %3457 = vmatpush1.bf16.msra.mxu0 0
        %3458 = vmatprep.subr.bf16.mxu0 0
        %3459 = vmatpush1.bf16.msra.mxu0 0
        %3460 = vmatprep.subr.bf16.mxu0 0
        %3461 = vmatpush1.bf16.msra.mxu0 0
        %3462 = vmatprep.subr.bf16.mxu0 0
        %3463 = vmatpush1.bf16.msra.mxu0 0
        %3464 = vmatprep.subr.bf16.mxu0 0
        %3465 = vmatpush1.bf16.msra.mxu0 0
        %3466 = vmatprep.subr.bf16.mxu0 0
        %3467 = vmatpush1.bf16.msra.mxu0 0
        %3468 = vmatprep.subr.bf16.mxu0 0
        %3469 = vmatpush1.bf16.msra.mxu0 0
        %3470 = vmatprep.subr.bf16.mxu0 0
        %3471 = vmatpush1.bf16.msra.mxu0 0
        %3472 = vmatprep.subr.bf16.mxu0 0
        %3473 = vmatpush1.bf16.msra.mxu0 0
        %3474 = vmatprep.mubr.bf16.mxu0 0
        %3475 = vmatmul.mubr.bf16.gmra.mrb[0].mxu0 %v3344
        %v3476 = vpop.f32.mrb[0].mxu0
        %v3477 = vadd.f32 0.0, %v3476
        %v3478 = vpop.f32.mrb[0].mxu0
        %v3479 = vpop.f32.mrb[0].mxu0
        %v3480 = vadd.f32 0.0, %v3479
        %v3481 = vpop.f32.mrb[0].mxu0
        %3482 = vmatprep.mubr.bf16.mxu0 0
        %3483 = vmatmul.mubr.bf16.gmra.mrb[0].mxu0 %v3347
        %v3484 = vpop.f32.mrb[0].mxu0
        %v3485 = vadd.f32 0.0, %v3484
        %v3486 = vpop.f32.mrb[0].mxu0
        %v3487 = vpop.f32.mrb[0].mxu0
        %v3488 = vadd.f32 0.0, %v3487
        %v3489 = vpop.f32.mrb[0].mxu0
        %3490 = vmatprep.mubr.bf16.mxu0 0
        %3491 = vmatmul.mubr.bf16.gmra.mrb[0].mxu0 %v3350
        %v3492 = vpop.f32.mrb[0].mxu0
        %v3493 = vadd.f32 0.0, %v3492
        %v3494 = vpop.f32.mrb[0].mxu0
        %v3495 = vpop.f32.mrb[0].mxu0
        %v3496 = vadd.f32 0.0, %v3495
        %v3497 = vpop.f32.mrb[0].mxu0
        %3498 = vmatprep.mubr.bf16.mxu0 0
        %3499 = vmatmul.mubr.bf16.gmra.mrb[0].mxu0 %v3437
        %v3500 = vpop.f32.mrb[0].mxu0
        %v3501 = vadd.f32 0.0, %v3500
        %v3502 = vpop.f32.mrb[0].mxu0
        %v3503 = vpop.f32.mrb[0].mxu0
        %v3504 = vadd.f32 0.0, %v3503
        %v3505 = vpop.f32.mrb[0].mxu0
        %3506 = vdwg.mxu0
        %v3507 = vadd.f32 %v3390, %v3477
        %v3508 = vadd.f32 %v3393, %v3480
        %v3509 = vadd.f32 %v3398, %v3485
        %v3510 = vadd.f32 %v3401, %v3488
        %v3511 = vadd.f32 %v3406, %v3493
        %v3512 = vadd.f32 %v3409, %v3496
        %v3513 = vadd.f32 %v3414, %v3501
        %v3514 = vadd.f32 %v3417, %v3504
        %v3515 = vadd.f32 %v2943, %v3507
        %v3516 = vadd.f32 %v2944, %v3508
        %v3517 = vadd.f32 %v2945, %v3509
        %v3518 = vadd.f32 %v2946, %v3510
        %v3519 = vadd.f32 %v2947, %v3511
        %v3520 = vadd.f32 %v2948, %v3512
        %v3521 = vadd.f32 %v2949, %v3513
        %v3522 = vadd.f32 %v2950, %v3514
        %s3523 = sadd.s32 %s23, 4
        %p3524 = scmp.lt.s32.totalorder %s3523, 0
        %s3525 = ssub.s32 0, %s3523
        %s3526 = scalar_select %p3524, %s3525, %s3523
        %s3527 = sdiv.u32.pop %s3526, 3
        %s3528 = srem.u32.pop %s3526, 3
        %s3529 = ssub.s32 0, %s3528
        %s3530 = scalar_select %p3524, %s3529, %s3528
        %p3531 = scmp.ne.s32.totalorder %s3530, 0
        %p3532 = scmp.lt.s32.totalorder %s3530, 0
        %p3533 = pnand %p3532, %p3531
        %p3534 = pneg %p3533
        %s3535 = sadd.s32 %s3530, 3
        %s3536 = scalar_select %p3534, %s3535, %s3530
        %s3537 = smul.u32 %s3536, 20
        %s3538 = smul.addr %s3537, 4
        %s3539 = scalar_lea.vmem [#allocation3], %s3538
        %v3540 = vld [vmem:[%s3539] sm:$0xf]
        %v3541 = vld [vmem:[%s3539 + $0x4] sm:$0x1]
        %v3542 = vld [vmem:[%s3539 + $0x8] sm:$0xf]
        %v3543 = vld [vmem:[%s3539 + $0xc] sm:$0x1]
        %v3544 = vld [vmem:[%s3539 + $0x10] sm:$0xf]
        %v3545 = vld [vmem:[%s3539 + $0x14] sm:$0x1]
        %v3546 = vld [vmem:[%s3539 + $0x18] sm:$0xf]
        %v3547 = vld [vmem:[%s3539 + $0x1c] sm:$0x1]
        %v3548 = vld [vmem:[%s3539 + $0x20] sm:$0xf]
        %v3549 = vld [vmem:[%s3539 + $0x24] sm:$0x1]
        %v3550 = vld [vmem:[%s3539 + $0x28] sm:$0xf]
        %v3551 = vld [vmem:[%s3539 + $0x2c] sm:$0x1]
        %v3552 = vld [vmem:[%s3539 + $0x30] sm:$0xf]
        %v3553 = vld [vmem:[%s3539 + $0x34] sm:$0x1]
        %v3554 = vld [vmem:[%s3539 + $0x38] sm:$0xf]
        %v3555 = vld [vmem:[%s3539 + $0x3c] sm:$0x1]
        %v3556 = vld [vmem:[%s3539 + $0x40] sm:$0xf]
        %v3557 = vld [vmem:[%s3539 + $0x44] sm:$0x1]
        %v3558 = vld [vmem:[%s3539 + $0x48] sm:$0xf]
        %v3559 = vld [vmem:[%s3539 + $0x4c] sm:$0x1]
        %v3580 = vunpack.c.l.b16 %v3540
        %v3581 = vunpack.c.l.b16 %v3541
        %v3582 = vunpack.c.l.b16 %v3542
        %v3583 = vunpack.c.l.b16 %v3543
        %v3584 = vunpack.c.l.b16 %v3544
        %v3585 = vunpack.c.l.b16 %v3545
        %v3586 = vunpack.c.l.b16 %v3546
        %v3587 = vunpack.c.l.b16 %v3547
        %v3588 = vunpack.c.l.b16 %v3548
        %v3589 = vunpack.c.l.b16 %v3549
        %v3590 = vunpack.c.l.b16 %v3550
        %v3591 = vunpack.c.l.b16 %v3551
        %v3592 = vunpack.c.l.b16 %v3552
        %v3593 = vunpack.c.l.b16 %v3553
        %v3594 = vunpack.c.l.b16 %v3554
        %v3595 = vunpack.c.l.b16 %v3555
        %v3596 = vunpack.c.l.b16 %v3556
        %v3597 = vunpack.c.l.b16 %v3557
        %v3598 = vunpack.c.l.b16 %v3558
        %v3599 = vunpack.c.l.b16 %v3559
        %v3600 = vpack.c.b16 %v3581, %v3580
        %v3601 = vpack.c.b16 %v3583, %v3582
        %v3602 = vpack.c.b16 %v3585, %v3584
        %v3603 = vpack.c.b16 %v3587, %v3586
        %v3604 = vpack.c.b16 %v3589, %v3588
        %v3605 = vpack.c.b16 %v3591, %v3590
        %v3606 = vpack.c.b16 %v3593, %v3592
        %v3607 = vpack.c.b16 %v3595, %v3594
        %v3608 = vpack.c.b16 %v3597, %v3596
        %v3609 = vpack.c.b16 %v3599, %v3598
        %v3611 = vshrl.u32 %v3600, 16
        %v3613 = vshll.u32 %v3600, 16
        %v3615 = vrot.slane %v3613, 1
        %v3616 = vor.u32 %v3611, %v3615
        %v3618 = vshrl.u32 %v3601, 16
        %v3620 = vshll.u32 %v3601, 16
        %v3622 = vrot.slane %v3620, 1
        %v3623 = vor.u32 %v3618, %v3622
        %v3625 = vshrl.u32 %v3602, 16
        %v3627 = vshll.u32 %v3602, 16
        %v3629 = vrot.slane %v3627, 1
        %v3630 = vor.u32 %v3625, %v3629
        %v3632 = vshrl.u32 %v3603, 16
        %v3634 = vshll.u32 %v3603, 16
        %v3636 = vrot.slane %v3634, 1
        %v3637 = vor.u32 %v3632, %v3636
        %v3639 = vshrl.u32 %v3604, 16
        %v3641 = vshll.u32 %v3604, 16
        %v3643 = vrot.slane %v3641, 1
        %v3644 = vor.u32 %v3639, %v3643
        %v3646 = vshrl.u32 %v3605, 16
        %v3648 = vshll.u32 %v3605, 16
        %v3650 = vrot.slane %v3648, 1
        %v3651 = vor.u32 %v3646, %v3650
        %v3653 = vshrl.u32 %v3606, 16
        %v3655 = vshll.u32 %v3606, 16
        %v3657 = vrot.slane %v3655, 1
        %v3658 = vor.u32 %v3653, %v3657
        %v3660 = vshrl.u32 %v3607, 16
        %v3662 = vshll.u32 %v3607, 16
        %v3664 = vrot.slane %v3662, 1
        %v3665 = vor.u32 %v3660, %v3664
        %v3667 = vshrl.u32 %v3608, 16
        %v3669 = vshll.u32 %v3608, 16
        %v3671 = vrot.slane %v3669, 1
        %v3672 = vor.u32 %v3667, %v3671
        %v3674 = vshrl.u32 %v3609, 16
        %v3676 = vshll.u32 %v3609, 16
        %v3678 = vrot.slane %v3676, 1
        %v3679 = vor.u32 %v3674, %v3678
        %3680 = vrot.lane.b32.xlu0 %v3616, 8
        %v3681 = vpop.permute.xlu0 %3680
        %3682 = vrot.lane.b32.xlu0 %v3623, 8
        %v3683 = vpop.permute.xlu0 %3682
        %3684 = vrot.lane.b32.xlu0 %v3630, 8
        %v3685 = vpop.permute.xlu0 %3684
        %3686 = vrot.lane.b32.xlu0 %v3637, 8
        %v3687 = vpop.permute.xlu0 %3686
        %3688 = vrot.lane.b32.xlu0 %v3644, 8
        %v3689 = vpop.permute.xlu0 %3688
        %3690 = vrot.lane.b32.xlu0 %v3651, 8
        %v3691 = vpop.permute.xlu0 %3690
        %3692 = vrot.lane.b32.xlu0 %v3658, 8
        %v3693 = vpop.permute.xlu0 %3692
        %3694 = vrot.lane.b32.xlu0 %v3665, 8
        %v3695 = vpop.permute.xlu0 %3694
        %3696 = vrot.lane.b32.xlu0 %v3672, 8
        %v3697 = vpop.permute.xlu0 %3696
        %3698 = vrot.lane.b32.xlu0 %v3679, 8
        %v3699 = vpop.permute.xlu0 %3698
        %v3700 = vrot.slane %v3600, 1
        %v3701 = vrot.slane %v3601, 1
        %v3702 = vrot.slane %v3602, 1
        %v3703 = vrot.slane %v3603, 1
        %v3704 = vrot.slane %v3604, 1
        %v3705 = vrot.slane %v3605, 1
        %v3706 = vrot.slane %v3606, 1
        %v3707 = vrot.slane %v3607, 1
        %v3708 = vrot.slane %v3608, 1
        %v3709 = vrot.slane %v3609, 1
        %3710 = vrot.lane.b32.xlu0 %v3700, 16
        %v3711 = vpop.permute.xlu0 %3710
        %3712 = vrot.lane.b32.xlu0 %v3701, 16
        %v3713 = vpop.permute.xlu0 %3712
        %3714 = vrot.lane.b32.xlu0 %v3702, 16
        %v3715 = vpop.permute.xlu0 %3714
        %3716 = vrot.lane.b32.xlu0 %v3703, 16
        %v3717 = vpop.permute.xlu0 %3716
        %3718 = vrot.lane.b32.xlu0 %v3704, 16
        %v3719 = vpop.permute.xlu0 %3718
        %3720 = vrot.lane.b32.xlu0 %v3705, 16
        %v3721 = vpop.permute.xlu0 %3720
        %3722 = vrot.lane.b32.xlu0 %v3706, 16
        %v3723 = vpop.permute.xlu0 %3722
        %3724 = vrot.lane.b32.xlu0 %v3707, 16
        %v3725 = vpop.permute.xlu0 %3724
        %3726 = vrot.lane.b32.xlu0 %v3708, 16
        %v3727 = vpop.permute.xlu0 %3726
        %3728 = vrot.lane.b32.xlu0 %v3709, 16
        %v3729 = vpop.permute.xlu0 %3728
        %v3732 = vsel %vm2591, %v3540, %v3681
        %v3735 = vsel %vm2591, %v3542, %v3683
        %v3738 = vsel %vm2591, %v3544, %v3685
        %v3741 = vsel %vm2591, %v3546, %v3687
        %v3744 = vsel %vm2591, %v3548, %v3689
        %v3747 = vsel %vm2591, %v3550, %v3691
        %v3750 = vsel %vm2591, %v3552, %v3693
        %v3753 = vsel %vm2591, %v3554, %v3695
        %v3756 = vsel %vm2591, %v3556, %v3697
        %v3759 = vsel %vm2591, %v3558, %v3699
        %v3761 = vsel %vm2622, %v3732, %v3711
        %v3763 = vsel %vm2622, %v3735, %v3713
        %v3765 = vsel %vm2622, %v3738, %v3715
        %v3767 = vsel %vm2622, %v3741, %v3717
        %v3769 = vsel %vm2622, %v3744, %v3719
        %v3771 = vsel %vm2622, %v3747, %v3721
        %v3773 = vsel %vm2622, %v3750, %v3723
        %v3775 = vsel %vm2622, %v3753, %v3725
        %v3777 = vsel %vm2622, %v3756, %v3727
        %v3779 = vsel %vm2622, %v3759, %v3729
        %s3780 = scalar_lea.vmem %s4, 72
        %v3781 = vld [vmem:[%s3780] sm:$0xf]
        %v3782 = vld [vmem:[%s3780 + $0x4] sm:$0xf]
        %v3783 = vld [vmem:[%s3780 + $0x8] sm:$0xf]
        %s3784 = scalar_lea.vmem %s4, 84
        %v3785 = vld [vmem:[%s3784] sm:$0xf]
        %v3786 = vld [vmem:[%s3784 + $0x4] sm:$0xf]
        %v3787 = vld [vmem:[%s3784 + $0x8] sm:$0xf]
        %v3796 = vunpack.c.l.b16 %v3763
        %v3797 = vunpack.c.l.b16 %v3765
        %v3798 = vunpack.c.l.b16 %v3767
        %v3799 = vunpack.c.l.b16 %v3769
        %v3800 = vunpack.c.l.b16 %v3771
        %v3801 = vunpack.c.l.b16 %v3773
        %v3802 = vunpack.c.l.b16 %v3775
        %v3803 = vunpack.c.l.b16 %v3777
        %v3804 = vpack.c.b16 %v3797, %v3796
        %v3805 = vpack.c.b16 %v3799, %v3798
        %v3806 = vpack.c.b16 %v3801, %v3800
        %v3807 = vpack.c.b16 %v3803, %v3802
        %v3811 = vunpack.c.l.b16 %v3785
        %v3812 = vunpack.c.l.b16 %v3786
        %v3813 = vunpack.c.l.b16 %v3787
        %v3814 = vpack.c.b16 %v3812, %v3811
        %v3815 = vpack.c.b16 %v3813, %v3813
        %v3818 = vsel %vm2679, %v3804, 0
        %v3821 = vsel %vm2679, %v3805, 0
        %v3824 = vsel %vm2679, %v3806, 0
        %v3827 = vsel %vm2679, %v3807, 0
        %v3830 = vsel %vm2692, %v3815, 0
        %3832 = vmatprep.subr.bf16.mxu0 0
        %3833 = vmatpush1.bf16.msra.mxu0 %v3814
        %3834 = vmatprep.subr.bf16.mxu0 0
        %3835 = vmatpush1.bf16.msra.mxu0 %v3830
        %3836 = vmatprep.subr.bf16.mxu0 0
        %3837 = vmatpush1.bf16.msra.mxu0 0
        %3838 = vmatprep.subr.bf16.mxu0 0
        %3839 = vmatpush1.bf16.msra.mxu0 0
        %3840 = vmatprep.subr.bf16.mxu0 0
        %3841 = vmatpush1.bf16.msra.mxu0 0
        %3842 = vmatprep.subr.bf16.mxu0 0
        %3843 = vmatpush1.bf16.msra.mxu0 0
        %3844 = vmatprep.subr.bf16.mxu0 0
        %3845 = vmatpush1.bf16.msra.mxu0 0
        %3846 = vmatprep.subr.bf16.mxu0 0
        %3847 = vmatpush1.bf16.msra.mxu0 0
        %3848 = vmatprep.subr.bf16.mxu0 0
        %3849 = vmatpush1.bf16.msra.mxu0 0
        %3850 = vmatprep.subr.bf16.mxu0 0
        %3851 = vmatpush1.bf16.msra.mxu0 0
        %3852 = vmatprep.subr.bf16.mxu0 0
        %3853 = vmatpush1.bf16.msra.mxu0 0
        %3854 = vmatprep.subr.bf16.mxu0 0
        %3855 = vmatpush1.bf16.msra.mxu0 0
        %3856 = vmatprep.subr.bf16.mxu0 0
        %3857 = vmatpush1.bf16.msra.mxu0 0
        %3858 = vmatprep.subr.bf16.mxu0 0
        %3859 = vmatpush1.bf16.msra.mxu0 0
        %3860 = vmatprep.subr.bf16.mxu0 0
        %3861 = vmatpush1.bf16.msra.mxu0 0
        %3862 = vmatprep.subr.bf16.mxu0 0
        %3863 = vmatpush1.bf16.msra.mxu0 0
        %3864 = vmatprep.mubr.bf16.mxu0 0
        %3865 = vmatmul.mubr.bf16.gmra.mrb[0].mxu0 %v3818
        %v3866 = vpop.f32.mrb[0].mxu0
        %v3867 = vadd.f32 0.0, %v3866
        %v3868 = vpop.f32.mrb[0].mxu0
        %v3869 = vpop.f32.mrb[0].mxu0
        %v3870 = vadd.f32 0.0, %v3869
        %v3871 = vpop.f32.mrb[0].mxu0
        %3872 = vmatprep.mubr.bf16.mxu0 0
        %3873 = vmatmul.mubr.bf16.gmra.mrb[0].mxu0 %v3821
        %v3874 = vpop.f32.mrb[0].mxu0
        %v3875 = vadd.f32 0.0, %v3874
        %v3876 = vpop.f32.mrb[0].mxu0
        %v3877 = vpop.f32.mrb[0].mxu0
        %v3878 = vadd.f32 0.0, %v3877
        %v3879 = vpop.f32.mrb[0].mxu0
        %3880 = vmatprep.mubr.bf16.mxu0 0
        %3881 = vmatmul.mubr.bf16.gmra.mrb[0].mxu0 %v3824
        %v3882 = vpop.f32.mrb[0].mxu0
        %v3883 = vadd.f32 0.0, %v3882
        %v3884 = vpop.f32.mrb[0].mxu0
        %v3885 = vpop.f32.mrb[0].mxu0
        %v3886 = vadd.f32 0.0, %v3885
        %v3887 = vpop.f32.mrb[0].mxu0
        %3888 = vmatprep.mubr.bf16.mxu0 0
        %3889 = vmatmul.mubr.bf16.gmra.mrb[0].mxu0 %v3827
        %v3890 = vpop.f32.mrb[0].mxu0
        %v3891 = vadd.f32 0.0, %v3890
        %v3892 = vpop.f32.mrb[0].mxu0
        %v3893 = vpop.f32.mrb[0].mxu0
        %v3894 = vadd.f32 0.0, %v3893
        %v3895 = vpop.f32.mrb[0].mxu0
        %3896 = vdwg.mxu0
        %v3898 = vunpack.c.l.b16 %v3761
        %v3899 = vpack.c.b16 %v3796, %v3898
        %v3900 = vpack.c.b16 %v3798, %v3797
        %v3901 = vpack.c.b16 %v3800, %v3799
        %v3902 = vpack.c.b16 %v3802, %v3801
        %v3906 = vunpack.c.l.b16 %v3781
        %v3907 = vunpack.c.l.b16 %v3782
        %v3908 = vunpack.c.l.b16 %v3783
        %v3909 = vpack.c.b16 %v3907, %v3906
        %v3910 = vpack.c.b16 %v3908, %v3908
        %v3913 = vsel %vm2679, %v3899, 0
        %v3916 = vsel %vm2679, %v3900, 0
        %v3919 = vsel %vm2679, %v3901, 0
        %v3922 = vsel %vm2679, %v3902, 0
        %v3925 = vsel %vm2692, %v3910, 0
        %3927 = vmatprep.subr.bf16.mxu0 0
        %3928 = vmatpush1.bf16.msra.mxu0 %v3909
        %3929 = vmatprep.subr.bf16.mxu0 0
        %3930 = vmatpush1.bf16.msra.mxu0 %v3925
        %3931 = vmatprep.subr.bf16.mxu0 0
        %3932 = vmatpush1.bf16.msra.mxu0 0
        %3933 = vmatprep.subr.bf16.mxu0 0
        %3934 = vmatpush1.bf16.msra.mxu0 0
        %3935 = vmatprep.subr.bf16.mxu0 0
        %3936 = vmatpush1.bf16.msra.mxu0 0
        %3937 = vmatprep.subr.bf16.mxu0 0
        %3938 = vmatpush1.bf16.msra.mxu0 0
        %3939 = vmatprep.subr.bf16.mxu0 0
        %3940 = vmatpush1.bf16.msra.mxu0 0
        %3941 = vmatprep.subr.bf16.mxu0 0
        %3942 = vmatpush1.bf16.msra.mxu0 0
        %3943 = vmatprep.subr.bf16.mxu0 0
        %3944 = vmatpush1.bf16.msra.mxu0 0
        %3945 = vmatprep.subr.bf16.mxu0 0
        %3946 = vmatpush1.bf16.msra.mxu0 0
        %3947 = vmatprep.subr.bf16.mxu0 0
        %3948 = vmatpush1.bf16.msra.mxu0 0
        %3949 = vmatprep.subr.bf16.mxu0 0
        %3950 = vmatpush1.bf16.msra.mxu0 0
        %3951 = vmatprep.subr.bf16.mxu0 0
        %3952 = vmatpush1.bf16.msra.mxu0 0
        %3953 = vmatprep.subr.bf16.mxu0 0
        %3954 = vmatpush1.bf16.msra.mxu0 0
        %3955 = vmatprep.subr.bf16.mxu0 0
        %3956 = vmatpush1.bf16.msra.mxu0 0
        %3957 = vmatprep.subr.bf16.mxu0 0
        %3958 = vmatpush1.bf16.msra.mxu0 0
        %3959 = vmatprep.mubr.bf16.mxu0 0
        %3960 = vmatmul.mubr.bf16.gmra.mrb[0].mxu0 %v3913
        %v3961 = vpop.f32.mrb[0].mxu0
        %v3962 = vadd.f32 %v3867, %v3961
        %v3963 = vpop.f32.mrb[0].mxu0
        %v3964 = vpop.f32.mrb[0].mxu0
        %v3965 = vadd.f32 %v3870, %v3964
        %v3966 = vpop.f32.mrb[0].mxu0
        %3967 = vmatprep.mubr.bf16.mxu0 0
        %3968 = vmatmul.mubr.bf16.gmra.mrb[0].mxu0 %v3916
        %v3969 = vpop.f32.mrb[0].mxu0
        %v3970 = vadd.f32 %v3875, %v3969
        %v3971 = vpop.f32.mrb[0].mxu0
        %v3972 = vpop.f32.mrb[0].mxu0
        %v3973 = vadd.f32 %v3878, %v3972
        %v3974 = vpop.f32.mrb[0].mxu0
        %3975 = vmatprep.mubr.bf16.mxu0 0
        %3976 = vmatmul.mubr.bf16.gmra.mrb[0].mxu0 %v3919
        %v3977 = vpop.f32.mrb[0].mxu0
        %v3978 = vadd.f32 %v3883, %v3977
        %v3979 = vpop.f32.mrb[0].mxu0
        %v3980 = vpop.f32.mrb[0].mxu0
        %v3981 = vadd.f32 %v3886, %v3980
        %v3982 = vpop.f32.mrb[0].mxu0
        %3983 = vmatprep.mubr.bf16.mxu0 0
        %3984 = vmatmul.mubr.bf16.gmra.mrb[0].mxu0 %v3922
        %v3985 = vpop.f32.mrb[0].mxu0
        %v3986 = vadd.f32 %v3891, %v3985
        %v3987 = vpop.f32.mrb[0].mxu0
        %v3988 = vpop.f32.mrb[0].mxu0
        %v3989 = vadd.f32 %v3894, %v3988
        %v3990 = vpop.f32.mrb[0].mxu0
        %3991 = vdwg.mxu0
        %s3992 = scalar_lea.vmem %s4, 96
        %v3993 = vld [vmem:[%s3992] sm:$0xf]
        %v3994 = vld [vmem:[%s3992 + $0x4] sm:$0xf]
        %v3995 = vld [vmem:[%s3992 + $0x8] sm:$0xf]
        %v3997 = vunpack.c.l.b16 %v3779
        %v3998 = vpack.c.b16 %v3997, %v3803
        %v4002 = vunpack.c.l.b16 %v3993
        %v4003 = vunpack.c.l.b16 %v3994
        %v4004 = vunpack.c.l.b16 %v3995
        %v4005 = vpack.c.b16 %v4003, %v4002
        %v4006 = vpack.c.b16 %v4004, %v4004
        %v4009 = vsel %vm2679, %v3998, 0
        %v4012 = vsel %vm2692, %v4006, 0
        %4014 = vmatprep.subr.bf16.mxu0 0
        %4015 = vmatpush1.bf16.msra.mxu0 %v4005
        %4016 = vmatprep.subr.bf16.mxu0 0
        %4017 = vmatpush1.bf16.msra.mxu0 %v4012
        %4018 = vmatprep.subr.bf16.mxu0 0
        %4019 = vmatpush1.bf16.msra.mxu0 0
        %4020 = vmatprep.subr.bf16.mxu0 0
        %4021 = vmatpush1.bf16.msra.mxu0 0
        %4022 = vmatprep.subr.bf16.mxu0 0
        %4023 = vmatpush1.bf16.msra.mxu0 0
        %4024 = vmatprep.subr.bf16.mxu0 0
        %4025 = vmatpush1.bf16.msra.mxu0 0
        %4026 = vmatprep.subr.bf16.mxu0 0
        %4027 = vmatpush1.bf16.msra.mxu0 0
        %4028 = vmatprep.subr.bf16.mxu0 0
        %4029 = vmatpush1.bf16.msra.mxu0 0
        %4030 = vmatprep.subr.bf16.mxu0 0
        %4031 = vmatpush1.bf16.msra.mxu0 0
        %4032 = vmatprep.subr.bf16.mxu0 0
        %4033 = vmatpush1.bf16.msra.mxu0 0
        %4034 = vmatprep.subr.bf16.mxu0 0
        %4035 = vmatpush1.bf16.msra.mxu0 0
        %4036 = vmatprep.subr.bf16.mxu0 0
        %4037 = vmatpush1.bf16.msra.mxu0 0
        %4038 = vmatprep.subr.bf16.mxu0 0
        %4039 = vmatpush1.bf16.msra.mxu0 0
        %4040 = vmatprep.subr.bf16.mxu0 0
        %4041 = vmatpush1.bf16.msra.mxu0 0
        %4042 = vmatprep.subr.bf16.mxu0 0
        %4043 = vmatpush1.bf16.msra.mxu0 0
        %4044 = vmatprep.subr.bf16.mxu0 0
        %4045 = vmatpush1.bf16.msra.mxu0 0
        %4046 = vmatprep.mubr.bf16.mxu0 0
        %4047 = vmatmul.mubr.bf16.gmra.mrb[0].mxu0 %v3916
        %v4048 = vpop.f32.mrb[0].mxu0
        %v4049 = vadd.f32 0.0, %v4048
        %v4050 = vpop.f32.mrb[0].mxu0
        %v4051 = vpop.f32.mrb[0].mxu0
        %v4052 = vadd.f32 0.0, %v4051
        %v4053 = vpop.f32.mrb[0].mxu0
        %4054 = vmatprep.mubr.bf16.mxu0 0
        %4055 = vmatmul.mubr.bf16.gmra.mrb[0].mxu0 %v3919
        %v4056 = vpop.f32.mrb[0].mxu0
        %v4057 = vadd.f32 0.0, %v4056
        %v4058 = vpop.f32.mrb[0].mxu0
        %v4059 = vpop.f32.mrb[0].mxu0
        %v4060 = vadd.f32 0.0, %v4059
        %v4061 = vpop.f32.mrb[0].mxu0
        %4062 = vmatprep.mubr.bf16.mxu0 0
        %4063 = vmatmul.mubr.bf16.gmra.mrb[0].mxu0 %v3922
        %v4064 = vpop.f32.mrb[0].mxu0
        %v4065 = vadd.f32 0.0, %v4064
        %v4066 = vpop.f32.mrb[0].mxu0
        %v4067 = vpop.f32.mrb[0].mxu0
        %v4068 = vadd.f32 0.0, %v4067
        %v4069 = vpop.f32.mrb[0].mxu0
        %4070 = vmatprep.mubr.bf16.mxu0 0
        %4071 = vmatmul.mubr.bf16.gmra.mrb[0].mxu0 %v4009
        %v4072 = vpop.f32.mrb[0].mxu0
        %v4073 = vadd.f32 0.0, %v4072
        %v4074 = vpop.f32.mrb[0].mxu0
        %v4075 = vpop.f32.mrb[0].mxu0
        %v4076 = vadd.f32 0.0, %v4075
        %v4077 = vpop.f32.mrb[0].mxu0
        %4078 = vdwg.mxu0
        %v4079 = vadd.f32 %v3962, %v4049
        %v4080 = vadd.f32 %v3965, %v4052
        %v4081 = vadd.f32 %v3970, %v4057
        %v4082 = vadd.f32 %v3973, %v4060
        %v4083 = vadd.f32 %v3978, %v4065
        %v4084 = vadd.f32 %v3981, %v4068
        %v4085 = vadd.f32 %v3986, %v4073
        %v4086 = vadd.f32 %v3989, %v4076
        %v4087 = vadd.f32 %v3515, %v4079
        %v4088 = vadd.f32 %v3516, %v4080
        %v4089 = vadd.f32 %v3517, %v4081
        %v4090 = vadd.f32 %v3518, %v4082
        %v4091 = vadd.f32 %v3519, %v4083
        %v4092 = vadd.f32 %v3520, %v4084
        %v4093 = vadd.f32 %v3521, %v4085
        %v4094 = vadd.f32 %v3522, %v4086
        %v4095 = vld [vmem:[%s5] sm:$0x1]
        %v4097 = vlaneseq
        %v4098 = vshrl.u32 %v4097, 7
        %v4099 = vsub.s32 0, %v4098
        %v4100 = vrot.slane %v4095, %v4099
        %v4102 = vmul.f32 %v4087, %v4100
        %v4103 = vmul.f32 %v4088, %v4100
        %v4104 = vmul.f32 %v4089, %v4100
        %v4105 = vmul.f32 %v4090, %v4100
        %v4106 = vmul.f32 %v4091, %v4100
        %v4107 = vmul.f32 %v4092, %v4100
        %v4108 = vmul.f32 %v4093, %v4100
        %v4109 = vmul.f32 %v4094, %v4100
        %v4110 = vld [vmem:[%s6] sm:$0x1]
        %v4112 = vlaneseq
        %v4113 = vshrl.u32 %v4112, 7
        %v4114 = vsub.s32 0, %v4113
        %v4115 = vrot.slane %v4110, %v4114
        %v4117 = vadd.f32 %v4102, %v4115
        %v4118 = vadd.f32 %v4103, %v4115
        %v4119 = vadd.f32 %v4104, %v4115
        %v4120 = vadd.f32 %v4105, %v4115
        %v4121 = vadd.f32 %v4106, %v4115
        %v4122 = vadd.f32 %v4107, %v4115
        %v4123 = vadd.f32 %v4108, %v4115
        %v4124 = vadd.f32 %v4109, %v4115
        %v4125 = vmax.f32 %v4117, 0.0
        %v4126 = vmax.f32 %v4118, 0.0
        %v4127 = vmax.f32 %v4119, 0.0
        %v4128 = vmax.f32 %v4120, 0.0
        %v4129 = vmax.f32 %v4121, 0.0
        %v4130 = vmax.f32 %v4122, 0.0
        %v4131 = vmax.f32 %v4123, 0.0
        %v4132 = vmax.f32 %v4124, 0.0
        %4133 = vst.msk [vmem:[%s326] sm:$0xff] %vm2591, %v4125
        %4134 = vst.msk [vmem:[%s326 + $0x8] sm:$0xff] %vm2591, %v4126
        %4135 = vst.msk [vmem:[%s326 + $0x10] sm:$0xff] %vm2591, %v4127
        %4136 = vst.msk [vmem:[%s326 + $0x18] sm:$0xff] %vm2591, %v4128
        %4137 = vst.msk [vmem:[%s326 + $0x20] sm:$0xff] %vm2591, %v4129
        %4138 = vst.msk [vmem:[%s326 + $0x28] sm:$0xff] %vm2591, %v4130
        %4139 = vst.msk [vmem:[%s326 + $0x30] sm:$0xff] %vm2591, %v4131
        %4140 = vst.msk [vmem:[%s326 + $0x38] sm:$0xff] %vm2591, %v4132
      $region68: #{double_conv3d_dec.1} parent=47 // pred_fallthru
        _
      %s4141 = ssub.s32 %s23, 3
      %p4142 = scmp.gt.s32.totalorder %s4141, 0
      %s4143 = scalar_select %p4142, %s4141, 0
      %p4144 = scmp.lt.s32.totalorder %s22, 1
      %s4145 = scalar_select %p4144, %s22, 1
      %p4146 = scmp.lt.s32.totalorder %s4143, 7
      %s4147 = scalar_select %p4146, %s4143, 7
      %s4148 = smul.addr %s4147, 8
      %s4149 = smul.addr %s4145, 64
      %s4150 = sadd.s32 %s4148, %s4149
      %s4151 = smul.addr %s4150, 8
      %s4152 = scalar_lea.vmem %s7, %s4151
      // Predicated region
      $region69: #{double_conv3d_dec.1} parent=47 // pred_check
        %p4153 = pneg %p210
      $region70: #{double_conv3d_dec.1} parent=47 // pred_check_branch
        %4155 = sbr.rel (%p4153) target = $region72
      $region71: #{double_conv3d_dec.1} parent=47 // pred_region
        %s4156 = ssub.s32 %s23, 3
        %p4157 = scmp.gt.s32.totalorder %s4156, 0
        %s4158 = scalar_select %p4157, %s4156, 0
      $region72: #{double_conv3d_dec.1} parent=47 // pred_fallthru
        _
    $region48: #{double_conv3d_dec.1} parent=5 // pred_fallthru
      _
    %p4159 = scmp.le.s32.totalorder 2, %s13
    // Predicated region
    $region73: #{double_conv3d_dec.1} parent=5 // pred_check
      %p4160 = pneg %p4159
    $region74: #{double_conv3d_dec.1} parent=5 // pred_check_branch
      %4162 = sbr.rel (%p4160) target = $region76
    $region75: #{double_conv3d_dec.1} parent=5 // pred_region
      %s4163 = ssub.s32 %s13, 2
      // Predicated region
      $region77: #{double_conv3d_dec.1} parent=75 // pred_check
        %p4164 = pneg %p216
      $region78: #{double_conv3d_dec.1} parent=75 // pred_check_branch
        %4166 = sbr.rel (%p4164) target = $region80
      $region79: #{double_conv3d_dec.1} parent=75 // pred_region
        %s4167 = ssub.s32 %s25, 3
        %p4168 = scmp.gt.s32.totalorder %s4167, 0
        %s4169 = scalar_select %p4168, %s4167, 0
        %p4170 = scmp.lt.s32.totalorder %s24, 1
        %s4171 = scalar_select %p4170, %s24, 1
        %p4172 = scmp.lt.s32.totalorder %s4169, 7
        %s4173 = scalar_select %p4172, %s4169, 7
        %s4174 = smul.addr %s4173, 8
        %s4175 = smul.addr %s4171, 64
        %s4176 = sadd.s32 %s4174, %s4175
        %s4177 = smul.addr %s4176, 8
        %s4178 = scalar_lea.vmem %s7, %s4177
      $region80: #{double_conv3d_dec.1} parent=75 // pred_fallthru
        _
    $region76: #{double_conv3d_dec.1} parent=5 // pred_fallthru
      _
  $region6: #{double_conv3d_dec.1} parent=0 // loop_footer
    %s17 = sadd.s32 1, %s13
  $region7: #{double_conv3d_dec.1} parent=0 // loop_footer_branch
    %12 = sbr.rel target = $region3
  $region8: #{double_conv3d_dec.1} parent=0 // loop_exit
    _

</llo_original>
